<compile_context>
chip_gen: v5e
topology: v5e:2x2
jax: 0.10.0
libtpu: 0.0.40
codegen_flags: <defaults>
</compile_context>

<pallas_src>
import functools

import jax
import jax.numpy as jnp
from jax.experimental import pallas as pl
from jax.experimental.pallas import tpu as pltpu


def _pinn_kernel(n_hid, n_hl, t_ref, w_in_ref, b_in_ref, *rest):
    """MLP forward, feature-major: activations are (features, tile_b)."""
    if n_hl >= 1:
        w_h_ref, b_h_ref, w_out_ref, b_out_ref, out_ref = rest
    else:
        w_out_ref, b_out_ref, out_ref = rest
        w_h_ref = b_h_ref = None

    def affine(w, x, b):
        # y = w @ x + b with x feature-major (K, TB), w torch-convention (M, K).
        k_dim = w.shape[1]
        if k_dim < 128:
            # Tiny contraction: K broadcast-FMAs on the VPU instead of a mostly
            # wasted MXU pass; avoids serial MXU-push -> result-FIFO-pop links.
            acc = b + w[:, 0:1] * x[0:1, :]          # bias broadcast hoisted once
            for k in range(1, k_dim):
                acc = acc + w[:, k:k + 1] * x[k:k + 1, :]
            return acc
        return jnp.dot(w, x, preferred_element_type=jnp.float32) + b

    # First layer (K = n_in, typically 1 for the pendulum PINN).
    h = jnp.tanh(affine(w_in_ref[...], t_ref[...], b_in_ref[...]))

    # Hidden layers: static unroll, weights lane-packed as (H, L*H) / (H, L).
    if n_hl >= 1:
        w_h = w_h_ref[...]
        b_h = b_h_ref[...]
        for l in range(n_hl):
            w_l = w_h[:, l * n_hid:(l + 1) * n_hid]   # (H, H)
            b_l = b_h[:, l:l + 1]                     # (H, 1)
            h = jnp.tanh(affine(w_l, h, b_l))

    # Output layer: lane-dense (n_out, TB) slab, unmasked vector stores.
    out_ref[...] = affine(w_out_ref[...], h, b_out_ref[...]).astype(out_ref.dtype)


def _choose_tile_b(batch):
    """One full-batch tile by default (no per-step pipeline overhead, maximum
    lane width per layer pass). Only split when every shard still gets >= 512
    lane-columns -- enough serial matmul+tanh work to amortize the ~0.35us/step
    cost and keep v7x's two TensorCores busy; on single-TC v5e/v6e the single
    tile is still the right answer and any split is pure overhead."""
    if batch > 1024:
        for tb in (4096, 2048, 1024, 512):
            if batch % tb == 0:
                return tb
    return batch


def pinn_forward(t, params, *, tile_b=None):
    """Run the PINN MLP forward pass with a Pallas TPU kernel.

    t: (B, N_INPUT) float32, batch-major (torch layout).
    params: dict with torch-convention (out_features, in_features) weights:
        w_in (H, N_IN), b_in (H, 1), w_h (L, H, H), b_h (L, H, 1),
        w_out (N_OUT, H), b_out (N_OUT, 1), plus n_hidden_layers (int).
    """
    B, n_in = t.shape
    n_hid = params["w_in"].shape[0]
    n_out = params["w_out"].shape[0]
    n_hl = int(params["n_hidden_layers"])

    if tile_b is None:
        tile_b = _choose_tile_b(B)
    else:
        if B % tile_b != 0:
            raise ValueError(f"tile_b={tile_b} must divide batch={B}")
        if tile_b != B and tile_b % 128 != 0:
            raise ValueError("tile_b must be a multiple of 128 or the full batch")
    grid = (B // tile_b,)

    # Transpose to feature-major (batch on lanes); (B,1)->(1,B) is a cheap reshape.
    t_t = t.T                                         # (n_in, B)

    kernel = functools.partial(_pinn_kernel, n_hid, n_hl)

    in_specs = [
        pl.BlockSpec((n_in, tile_b), lambda i: (0, i)),        # t (feature-major)
        pl.BlockSpec((n_hid, n_in), lambda i: (0, 0)),         # w_in
        pl.BlockSpec((n_hid, 1), lambda i: (0, 0)),            # b_in
    ]
    args = [t_t, params["w_in"], params["b_in"]]

    if n_hl >= 1:
        # Lane-major repack: (L,H,H)->(H, L*H), (L,H,1)->(H, L). One lane-dense
        # DMA for the whole stack; only the real layers are fetched.
        w_h_packed = jnp.swapaxes(params["w_h"][:n_hl], 0, 1).reshape(
            n_hid, n_hl * n_hid)
        b_h_packed = jnp.swapaxes(params["b_h"][:n_hl], 0, 1).reshape(n_hid, n_hl)
        in_specs += [
            pl.BlockSpec((n_hid, n_hl * n_hid), lambda i: (0, 0)),
            pl.BlockSpec((n_hid, n_hl), lambda i: (0, 0)),
        ]
        args += [w_h_packed, b_h_packed]

    in_specs += [
        pl.BlockSpec((n_out, n_hid), lambda i: (0, 0)),        # w_out
        pl.BlockSpec((n_out, 1), lambda i: (0, 0)),            # b_out
    ]
    args += [params["w_out"], params["b_out"]]

    out_specs = pl.BlockSpec((n_out, tile_b), lambda i: (0, i))

    # Conservative VMEM footprint guard (weights grid-invariant but potentially
    # double-buffered, plus activations/temps); clamped so it is valid on all
    # of v5e/v6e/v7x. Very large H/L configs should stream layers instead.
    weight_bytes = 4 * (n_hid * n_in + n_hid + n_hl * n_hid * n_hid
                        + n_hl * n_hid + n_out * n_hid + n_out)
    act_bytes = 4 * tile_b * (2 * n_in + 2 * n_out + 4 * n_hid)
    vmem_limit = max(32 << 20, min(2 * weight_bytes + act_bytes + (2 << 20),
                                   48 << 20))

    # Advisory cost hint for XLA's scheduler (kernel is tiny vs. its overhead).
    flops = 2 * B * n_hid * (n_in + n_hl * n_hid + n_out)
    transcendentals = B * n_hid * (1 + n_hl)
    bytes_accessed = 4 * B * (n_in + n_out) + weight_bytes

    out_t = pl.pallas_call(
        kernel,
        out_shape=jax.ShapeDtypeStruct((n_out, B), t.dtype),
        grid_spec=pltpu.PrefetchScalarGridSpec(
            num_scalar_prefetch=0,
            grid=grid,
            in_specs=in_specs,
            out_specs=out_specs,
        ),
        compiler_params=pltpu.CompilerParams(
            dimension_semantics=("parallel",),
            vmem_limit_bytes=vmem_limit),
        cost_estimate=pl.CostEstimate(
            flops=flops,
            transcendentals=transcendentals,
            bytes_accessed=bytes_accessed),
    )(*args)

    return out_t.T                                    # (B, n_out)


def init_pinn_params(key, n_input, n_output, n_hidden, n_layers):
    """Deterministic init matching torch.nn.Linear's U(-1/sqrt(fan_in), ...).

    Weights are stored in torch's (out_features, in_features) convention and
    biases as (out_features, 1) columns; hidden layers as an (L, H, H) stack
    with L = n_layers - 1 (may be 0)."""
    ks = jax.random.split(key, 6)

    def lin(kw, kb, fan_in, fan_out):
        bound = 1.0 / float(fan_in) ** 0.5
        w = jax.random.uniform(kw, (fan_out, fan_in), jnp.float32, -bound, bound)
        b = jax.random.uniform(kb, (fan_out, 1), jnp.float32, -bound, bound)
        return w, b

    w_in, b_in = lin(ks[0], ks[1], n_input, n_hidden)

    n_hl = n_layers - 1
    if n_hl > 0:
        kws = jax.random.split(ks[2], n_hl)
        kbs = jax.random.split(ks[3], n_hl)
        w_list, b_list = [], []
        for l in range(n_hl):
            w, b = lin(kws[l], kbs[l], n_hidden, n_hidden)
            w_list.append(w)
            b_list.append(b)
        w_h = jnp.stack(w_list)
        b_h = jnp.stack(b_list)
    else:
        w_h = jnp.zeros((0, n_hidden, n_hidden), jnp.float32)
        b_h = jnp.zeros((0, n_hidden, 1), jnp.float32)

    w_out, b_out = lin(ks[4], ks[5], n_hidden, n_output)
    return dict(w_in=w_in, b_in=b_in, w_h=w_h, b_h=b_h,
                w_out=w_out, b_out=b_out, n_hidden_layers=n_hl)


def pinn_reference(t, params):
    """Pure-JAX reference (batch-major, torch semantics)."""
    h = jnp.tanh(t @ params["w_in"].T + params["b_in"].T)
    for l in range(int(params["n_hidden_layers"])):
        h = jnp.tanh(h @ params["w_h"][l].T + params["b_h"][l].T)
    return h @ params["w_out"].T + params["b_out"].T


if __name__ == "__main__":
    # Small, pendulum-like configuration: t -> phi (1 input, 1 output).
    N_INPUT, N_OUTPUT, N_HIDDEN, N_LAYERS = 1, 1, 32, 3
    BATCH = 256  # single full-batch lane-dense tile, grid=(1,)

    key = jax.random.PRNGKey(0)
    k_params, k_t = jax.random.split(key)
    params = init_pinn_params(k_params, N_INPUT, N_OUTPUT, N_HIDDEN, N_LAYERS)
    t = jax.random.uniform(k_t, (BATCH, N_INPUT), jnp.float32, 0.0, 1.0)

    phi = pinn_forward(t, params)
    phi = jax.block_until_ready(phi)

    ref = pinn_reference(t, params)
    assert phi.shape == (BATCH, N_OUTPUT)
    assert jnp.allclose(phi, ref, atol=1e-5, rtol=1e-5), "mismatch vs reference"

    print("KERNEL_OK")
</pallas_src>

<mosaic_0001>
module attributes {stable_mosaic.version = 11 : i64} {
  func.func @_pinn_kernel(%arg0: i32, %arg1: memref<1x256xf32, #tpu.memory_space<vmem>>, %arg2: memref<32x1xf32, #tpu.memory_space<vmem>>, %arg3: memref<32x1xf32, #tpu.memory_space<vmem>>, %arg4: memref<32x64xf32, #tpu.memory_space<vmem>>, %arg5: memref<32x2xf32, #tpu.memory_space<vmem>>, %arg6: memref<1x32xf32, #tpu.memory_space<vmem>>, %arg7: memref<1x1xf32, #tpu.memory_space<vmem>>, %arg8: memref<1x256xf32, #tpu.memory_space<vmem>>) attributes {dimension_semantics = [#tpu.dimension_semantics<parallel>], iteration_bounds = array<i64: 1>, scalar_prefetch = 0 : i64, scratch_operands = 0 : i64, tpu.core_type = #tpu.core_type<tc>, window_params = [{transform_indices = @transform_0, window_bounds = array<i64: 1, 256>}, {pipeline_mode = #tpu.pipeline_mode<synchronous>, transform_indices = @transform_1, window_bounds = array<i64: 32, 1>}, {pipeline_mode = #tpu.pipeline_mode<synchronous>, transform_indices = @transform_2, window_bounds = array<i64: 32, 1>}, {pipeline_mode = #tpu.pipeline_mode<synchronous>, transform_indices = @transform_3, window_bounds = array<i64: 32, 64>}, {pipeline_mode = #tpu.pipeline_mode<synchronous>, transform_indices = @transform_4, window_bounds = array<i64: 32, 2>}, {pipeline_mode = #tpu.pipeline_mode<synchronous>, transform_indices = @transform_5, window_bounds = array<i64: 1, 32>}, {pipeline_mode = #tpu.pipeline_mode<synchronous>, transform_indices = @transform_6, window_bounds = array<i64: 1, 1>}, {transform_indices = @transform_7, window_bounds = array<i64: 1, 256>}]} {
    %c0 = arith.constant 0 : index
    %c0_0 = arith.constant 0 : index
    %0 = vector.load %arg2[%c0, %c0_0] : memref<32x1xf32, #tpu.memory_space<vmem>>, vector<32x1xf32>
    %c0_1 = arith.constant 0 : index
    %c0_2 = arith.constant 0 : index
    %1 = vector.load %arg1[%c0_1, %c0_2] : memref<1x256xf32, #tpu.memory_space<vmem>>, vector<1x256xf32>
    %c0_3 = arith.constant 0 : index
    %c0_4 = arith.constant 0 : index
    %2 = vector.load %arg3[%c0_3, %c0_4] : memref<32x1xf32, #tpu.memory_space<vmem>>, vector<32x1xf32>
    %3 = vector.broadcast %0 : vector<32x1xf32> to vector<32x256xf32>
    %4 = vector.broadcast %1 : vector<1x256xf32> to vector<32x256xf32>
    %5 = arith.mulf %3, %4 : vector<32x256xf32>
    %6 = vector.broadcast %2 : vector<32x1xf32> to vector<32x256xf32>
    %7 = arith.addf %6, %5 : vector<32x256xf32>
    %8 = math.tanh %7 : vector<32x256xf32>
    %c0_5 = arith.constant 0 : index
    %c0_6 = arith.constant 0 : index
    %9 = vector.load %arg4[%c0_5, %c0_6] : memref<32x64xf32, #tpu.memory_space<vmem>>, vector<32x64xf32>
    %c0_7 = arith.constant 0 : index
    %c0_8 = arith.constant 0 : index
    %10 = vector.load %arg5[%c0_7, %c0_8] : memref<32x2xf32, #tpu.memory_space<vmem>>, vector<32x2xf32>
    %11 = vector.extract_strided_slice %9 {offsets = [0, 0], sizes = [32, 32], strides = [1, 1]} : vector<32x64xf32> to vector<32x32xf32>
    %12 = vector.extract_strided_slice %10 {offsets = [0, 0], sizes = [32, 1], strides = [1, 1]} : vector<32x2xf32> to vector<32x1xf32>
    %13 = vector.extract_strided_slice %11 {offsets = [0, 0], sizes = [32, 1], strides = [1, 1]} : vector<32x32xf32> to vector<32x1xf32>
    %14 = vector.extract_strided_slice %8 {offsets = [0, 0], sizes = [1, 256], strides = [1, 1]} : vector<32x256xf32> to vector<1x256xf32>
    %15 = vector.broadcast %13 : vector<32x1xf32> to vector<32x256xf32>
    %16 = vector.broadcast %14 : vector<1x256xf32> to vector<32x256xf32>
    %17 = arith.mulf %15, %16 : vector<32x256xf32>
    %18 = vector.broadcast %12 : vector<32x1xf32> to vector<32x256xf32>
    %19 = arith.addf %18, %17 : vector<32x256xf32>
    %20 = vector.extract_strided_slice %11 {offsets = [0, 1], sizes = [32, 1], strides = [1, 1]} : vector<32x32xf32> to vector<32x1xf32>
    %21 = vector.extract_strided_slice %8 {offsets = [1, 0], sizes = [1, 256], strides = [1, 1]} : vector<32x256xf32> to vector<1x256xf32>
    %22 = vector.broadcast %20 : vector<32x1xf32> to vector<32x256xf32>
    %23 = vector.broadcast %21 : vector<1x256xf32> to vector<32x256xf32>
    %24 = arith.mulf %22, %23 : vector<32x256xf32>
    %25 = arith.addf %19, %24 : vector<32x256xf32>
    %26 = vector.extract_strided_slice %11 {offsets = [0, 2], sizes = [32, 1], strides = [1, 1]} : vector<32x32xf32> to vector<32x1xf32>
    %27 = vector.extract_strided_slice %8 {offsets = [2, 0], sizes = [1, 256], strides = [1, 1]} : vector<32x256xf32> to vector<1x256xf32>
    %28 = vector.broadcast %26 : vector<32x1xf32> to vector<32x256xf32>
    %29 = vector.broadcast %27 : vector<1x256xf32> to vector<32x256xf32>
    %30 = arith.mulf %28, %29 : vector<32x256xf32>
    %31 = arith.addf %25, %30 : vector<32x256xf32>
    %32 = vector.extract_strided_slice %11 {offsets = [0, 3], sizes = [32, 1], strides = [1, 1]} : vector<32x32xf32> to vector<32x1xf32>
    %33 = vector.extract_strided_slice %8 {offsets = [3, 0], sizes = [1, 256], strides = [1, 1]} : vector<32x256xf32> to vector<1x256xf32>
    %34 = vector.broadcast %32 : vector<32x1xf32> to vector<32x256xf32>
    %35 = vector.broadcast %33 : vector<1x256xf32> to vector<32x256xf32>
    %36 = arith.mulf %34, %35 : vector<32x256xf32>
    %37 = arith.addf %31, %36 : vector<32x256xf32>
    %38 = vector.extract_strided_slice %11 {offsets = [0, 4], sizes = [32, 1], strides = [1, 1]} : vector<32x32xf32> to vector<32x1xf32>
    %39 = vector.extract_strided_slice %8 {offsets = [4, 0], sizes = [1, 256], strides = [1, 1]} : vector<32x256xf32> to vector<1x256xf32>
    %40 = vector.broadcast %38 : vector<32x1xf32> to vector<32x256xf32>
    %41 = vector.broadcast %39 : vector<1x256xf32> to vector<32x256xf32>
    %42 = arith.mulf %40, %41 : vector<32x256xf32>
    %43 = arith.addf %37, %42 : vector<32x256xf32>
    %44 = vector.extract_strided_slice %11 {offsets = [0, 5], sizes = [32, 1], strides = [1, 1]} : vector<32x32xf32> to vector<32x1xf32>
    %45 = vector.extract_strided_slice %8 {offsets = [5, 0], sizes = [1, 256], strides = [1, 1]} : vector<32x256xf32> to vector<1x256xf32>
    %46 = vector.broadcast %44 : vector<32x1xf32> to vector<32x256xf32>
    %47 = vector.broadcast %45 : vector<1x256xf32> to vector<32x256xf32>
    %48 = arith.mulf %46, %47 : vector<32x256xf32>
    %49 = arith.addf %43, %48 : vector<32x256xf32>
    %50 = vector.extract_strided_slice %11 {offsets = [0, 6], sizes = [32, 1], strides = [1, 1]} : vector<32x32xf32> to vector<32x1xf32>
    %51 = vector.extract_strided_slice %8 {offsets = [6, 0], sizes = [1, 256], strides = [1, 1]} : vector<32x256xf32> to vector<1x256xf32>
    %52 = vector.broadcast %50 : vector<32x1xf32> to vector<32x256xf32>
    %53 = vector.broadcast %51 : vector<1x256xf32> to vector<32x256xf32>
    %54 = arith.mulf %52, %53 : vector<32x256xf32>
    %55 = arith.addf %49, %54 : vector<32x256xf32>
    %56 = vector.extract_strided_slice %11 {offsets = [0, 7], sizes = [32, 1], strides = [1, 1]} : vector<32x32xf32> to vector<32x1xf32>
    %57 = vector.extract_strided_slice %8 {offsets = [7, 0], sizes = [1, 256], strides = [1, 1]} : vector<32x256xf32> to vector<1x256xf32>
    %58 = vector.broadcast %56 : vector<32x1xf32> to vector<32x256xf32>
    %59 = vector.broadcast %57 : vector<1x256xf32> to vector<32x256xf32>
    %60 = arith.mulf %58, %59 : vector<32x256xf32>
    %61 = arith.addf %55, %60 : vector<32x256xf32>
    %62 = vector.extract_strided_slice %11 {offsets = [0, 8], sizes = [32, 1], strides = [1, 1]} : vector<32x32xf32> to vector<32x1xf32>
    %63 = vector.extract_strided_slice %8 {offsets = [8, 0], sizes = [1, 256], strides = [1, 1]} : vector<32x256xf32> to vector<1x256xf32>
    %64 = vector.broadcast %62 : vector<32x1xf32> to vector<32x256xf32>
    %65 = vector.broadcast %63 : vector<1x256xf32> to vector<32x256xf32>
    %66 = arith.mulf %64, %65 : vector<32x256xf32>
    %67 = arith.addf %61, %66 : vector<32x256xf32>
    %68 = vector.extract_strided_slice %11 {offsets = [0, 9], sizes = [32, 1], strides = [1, 1]} : vector<32x32xf32> to vector<32x1xf32>
    %69 = vector.extract_strided_slice %8 {offsets = [9, 0], sizes = [1, 256], strides = [1, 1]} : vector<32x256xf32> to vector<1x256xf32>
    %70 = vector.broadcast %68 : vector<32x1xf32> to vector<32x256xf32>
    %71 = vector.broadcast %69 : vector<1x256xf32> to vector<32x256xf32>
    %72 = arith.mulf %70, %71 : vector<32x256xf32>
    %73 = arith.addf %67, %72 : vector<32x256xf32>
    %74 = vector.extract_strided_slice %11 {offsets = [0, 10], sizes = [32, 1], strides = [1, 1]} : vector<32x32xf32> to vector<32x1xf32>
    %75 = vector.extract_strided_slice %8 {offsets = [10, 0], sizes = [1, 256], strides = [1, 1]} : vector<32x256xf32> to vector<1x256xf32>
    %76 = vector.broadcast %74 : vector<32x1xf32> to vector<32x256xf32>
    %77 = vector.broadcast %75 : vector<1x256xf32> to vector<32x256xf32>
    %78 = arith.mulf %76, %77 : vector<32x256xf32>
    %79 = arith.addf %73, %78 : vector<32x256xf32>
    %80 = vector.extract_strided_slice %11 {offsets = [0, 11], sizes = [32, 1], strides = [1, 1]} : vector<32x32xf32> to vector<32x1xf32>
    %81 = vector.extract_strided_slice %8 {offsets = [11, 0], sizes = [1, 256], strides = [1, 1]} : vector<32x256xf32> to vector<1x256xf32>
    %82 = vector.broadcast %80 : vector<32x1xf32> to vector<32x256xf32>
    %83 = vector.broadcast %81 : vector<1x256xf32> to vector<32x256xf32>
    %84 = arith.mulf %82, %83 : vector<32x256xf32>
    %85 = arith.addf %79, %84 : vector<32x256xf32>
    %86 = vector.extract_strided_slice %11 {offsets = [0, 12], sizes = [32, 1], strides = [1, 1]} : vector<32x32xf32> to vector<32x1xf32>
    %87 = vector.extract_strided_slice %8 {offsets = [12, 0], sizes = [1, 256], strides = [1, 1]} : vector<32x256xf32> to vector<1x256xf32>
    %88 = vector.broadcast %86 : vector<32x1xf32> to vector<32x256xf32>
    %89 = vector.broadcast %87 : vector<1x256xf32> to vector<32x256xf32>
    %90 = arith.mulf %88, %89 : vector<32x256xf32>
    %91 = arith.addf %85, %90 : vector<32x256xf32>
    %92 = vector.extract_strided_slice %11 {offsets = [0, 13], sizes = [32, 1], strides = [1, 1]} : vector<32x32xf32> to vector<32x1xf32>
    %93 = vector.extract_strided_slice %8 {offsets = [13, 0], sizes = [1, 256], strides = [1, 1]} : vector<32x256xf32> to vector<1x256xf32>
    %94 = vector.broadcast %92 : vector<32x1xf32> to vector<32x256xf32>
    %95 = vector.broadcast %93 : vector<1x256xf32> to vector<32x256xf32>
    %96 = arith.mulf %94, %95 : vector<32x256xf32>
    %97 = arith.addf %91, %96 : vector<32x256xf32>
    %98 = vector.extract_strided_slice %11 {offsets = [0, 14], sizes = [32, 1], strides = [1, 1]} : vector<32x32xf32> to vector<32x1xf32>
    %99 = vector.extract_strided_slice %8 {offsets = [14, 0], sizes = [1, 256], strides = [1, 1]} : vector<32x256xf32> to vector<1x256xf32>
    %100 = vector.broadcast %98 : vector<32x1xf32> to vector<32x256xf32>
    %101 = vector.broadcast %99 : vector<1x256xf32> to vector<32x256xf32>
    %102 = arith.mulf %100, %101 : vector<32x256xf32>
    %103 = arith.addf %97, %102 : vector<32x256xf32>
    %104 = vector.extract_strided_slice %11 {offsets = [0, 15], sizes = [32, 1], strides = [1, 1]} : vector<32x32xf32> to vector<32x1xf32>
    %105 = vector.extract_strided_slice %8 {offsets = [15, 0], sizes = [1, 256], strides = [1, 1]} : vector<32x256xf32> to vector<1x256xf32>
    %106 = vector.broadcast %104 : vector<32x1xf32> to vector<32x256xf32>
    %107 = vector.broadcast %105 : vector<1x256xf32> to vector<32x256xf32>
    %108 = arith.mulf %106, %107 : vector<32x256xf32>
    %109 = arith.addf %103, %108 : vector<32x256xf32>
    %110 = vector.extract_strided_slice %11 {offsets = [0, 16], sizes = [32, 1], strides = [1, 1]} : vector<32x32xf32> to vector<32x1xf32>
    %111 = vector.extract_strided_slice %8 {offsets = [16, 0], sizes = [1, 256], strides = [1, 1]} : vector<32x256xf32> to vector<1x256xf32>
    %112 = vector.broadcast %110 : vector<32x1xf32> to vector<32x256xf32>
    %113 = vector.broadcast %111 : vector<1x256xf32> to vector<32x256xf32>
    %114 = arith.mulf %112, %113 : vector<32x256xf32>
    %115 = arith.addf %109, %114 : vector<32x256xf32>
    %116 = vector.extract_strided_slice %11 {offsets = [0, 17], sizes = [32, 1], strides = [1, 1]} : vector<32x32xf32> to vector<32x1xf32>
    %117 = vector.extract_strided_slice %8 {offsets = [17, 0], sizes = [1, 256], strides = [1, 1]} : vector<32x256xf32> to vector<1x256xf32>
    %118 = vector.broadcast %116 : vector<32x1xf32> to vector<32x256xf32>
    %119 = vector.broadcast %117 : vector<1x256xf32> to vector<32x256xf32>
    %120 = arith.mulf %118, %119 : vector<32x256xf32>
    %121 = arith.addf %115, %120 : vector<32x256xf32>
    %122 = vector.extract_strided_slice %11 {offsets = [0, 18], sizes = [32, 1], strides = [1, 1]} : vector<32x32xf32> to vector<32x1xf32>
    %123 = vector.extract_strided_slice %8 {offsets = [18, 0], sizes = [1, 256], strides = [1, 1]} : vector<32x256xf32> to vector<1x256xf32>
    %124 = vector.broadcast %122 : vector<32x1xf32> to vector<32x256xf32>
    %125 = vector.broadcast %123 : vector<1x256xf32> to vector<32x256xf32>
    %126 = arith.mulf %124, %125 : vector<32x256xf32>
    %127 = arith.addf %121, %126 : vector<32x256xf32>
    %128 = vector.extract_strided_slice %11 {offsets = [0, 19], sizes = [32, 1], strides = [1, 1]} : vector<32x32xf32> to vector<32x1xf32>
    %129 = vector.extract_strided_slice %8 {offsets = [19, 0], sizes = [1, 256], strides = [1, 1]} : vector<32x256xf32> to vector<1x256xf32>
    %130 = vector.broadcast %128 : vector<32x1xf32> to vector<32x256xf32>
    %131 = vector.broadcast %129 : vector<1x256xf32> to vector<32x256xf32>
    %132 = arith.mulf %130, %131 : vector<32x256xf32>
    %133 = arith.addf %127, %132 : vector<32x256xf32>
    %134 = vector.extract_strided_slice %11 {offsets = [0, 20], sizes = [32, 1], strides = [1, 1]} : vector<32x32xf32> to vector<32x1xf32>
    %135 = vector.extract_strided_slice %8 {offsets = [20, 0], sizes = [1, 256], strides = [1, 1]} : vector<32x256xf32> to vector<1x256xf32>
    %136 = vector.broadcast %134 : vector<32x1xf32> to vector<32x256xf32>
    %137 = vector.broadcast %135 : vector<1x256xf32> to vector<32x256xf32>
    %138 = arith.mulf %136, %137 : vector<32x256xf32>
    %139 = arith.addf %133, %138 : vector<32x256xf32>
    %140 = vector.extract_strided_slice %11 {offsets = [0, 21], sizes = [32, 1], strides = [1, 1]} : vector<32x32xf32> to vector<32x1xf32>
    %141 = vector.extract_strided_slice %8 {offsets = [21, 0], sizes = [1, 256], strides = [1, 1]} : vector<32x256xf32> to vector<1x256xf32>
    %142 = vector.broadcast %140 : vector<32x1xf32> to vector<32x256xf32>
    %143 = vector.broadcast %141 : vector<1x256xf32> to vector<32x256xf32>
    %144 = arith.mulf %142, %143 : vector<32x256xf32>
    %145 = arith.addf %139, %144 : vector<32x256xf32>
    %146 = vector.extract_strided_slice %11 {offsets = [0, 22], sizes = [32, 1], strides = [1, 1]} : vector<32x32xf32> to vector<32x1xf32>
    %147 = vector.extract_strided_slice %8 {offsets = [22, 0], sizes = [1, 256], strides = [1, 1]} : vector<32x256xf32> to vector<1x256xf32>
    %148 = vector.broadcast %146 : vector<32x1xf32> to vector<32x256xf32>
    %149 = vector.broadcast %147 : vector<1x256xf32> to vector<32x256xf32>
    %150 = arith.mulf %148, %149 : vector<32x256xf32>
    %151 = arith.addf %145, %150 : vector<32x256xf32>
    %152 = vector.extract_strided_slice %11 {offsets = [0, 23], sizes = [32, 1], strides = [1, 1]} : vector<32x32xf32> to vector<32x1xf32>
    %153 = vector.extract_strided_slice %8 {offsets = [23, 0], sizes = [1, 256], strides = [1, 1]} : vector<32x256xf32> to vector<1x256xf32>
    %154 = vector.broadcast %152 : vector<32x1xf32> to vector<32x256xf32>
    %155 = vector.broadcast %153 : vector<1x256xf32> to vector<32x256xf32>
    %156 = arith.mulf %154, %155 : vector<32x256xf32>
    %157 = arith.addf %151, %156 : vector<32x256xf32>
    %158 = vector.extract_strided_slice %11 {offsets = [0, 24], sizes = [32, 1], strides = [1, 1]} : vector<32x32xf32> to vector<32x1xf32>
    %159 = vector.extract_strided_slice %8 {offsets = [24, 0], sizes = [1, 256], strides = [1, 1]} : vector<32x256xf32> to vector<1x256xf32>
    %160 = vector.broadcast %158 : vector<32x1xf32> to vector<32x256xf32>
    %161 = vector.broadcast %159 : vector<1x256xf32> to vector<32x256xf32>
    %162 = arith.mulf %160, %161 : vector<32x256xf32>
    %163 = arith.addf %157, %162 : vector<32x256xf32>
    %164 = vector.extract_strided_slice %11 {offsets = [0, 25], sizes = [32, 1], strides = [1, 1]} : vector<32x32xf32> to vector<32x1xf32>
    %165 = vector.extract_strided_slice %8 {offsets = [25, 0], sizes = [1, 256], strides = [1, 1]} : vector<32x256xf32> to vector<1x256xf32>
    %166 = vector.broadcast %164 : vector<32x1xf32> to vector<32x256xf32>
    %167 = vector.broadcast %165 : vector<1x256xf32> to vector<32x256xf32>
    %168 = arith.mulf %166, %167 : vector<32x256xf32>
    %169 = arith.addf %163, %168 : vector<32x256xf32>
    %170 = vector.extract_strided_slice %11 {offsets = [0, 26], sizes = [32, 1], strides = [1, 1]} : vector<32x32xf32> to vector<32x1xf32>
    %171 = vector.extract_strided_slice %8 {offsets = [26, 0], sizes = [1, 256], strides = [1, 1]} : vector<32x256xf32> to vector<1x256xf32>
    %172 = vector.broadcast %170 : vector<32x1xf32> to vector<32x256xf32>
    %173 = vector.broadcast %171 : vector<1x256xf32> to vector<32x256xf32>
    %174 = arith.mulf %172, %173 : vector<32x256xf32>
    %175 = arith.addf %169, %174 : vector<32x256xf32>
    %176 = vector.extract_strided_slice %11 {offsets = [0, 27], sizes = [32, 1], strides = [1, 1]} : vector<32x32xf32> to vector<32x1xf32>
    %177 = vector.extract_strided_slice %8 {offsets = [27, 0], sizes = [1, 256], strides = [1, 1]} : vector<32x256xf32> to vector<1x256xf32>
    %178 = vector.broadcast %176 : vector<32x1xf32> to vector<32x256xf32>
    %179 = vector.broadcast %177 : vector<1x256xf32> to vector<32x256xf32>
    %180 = arith.mulf %178, %179 : vector<32x256xf32>
    %181 = arith.addf %175, %180 : vector<32x256xf32>
    %182 = vector.extract_strided_slice %11 {offsets = [0, 28], sizes = [32, 1], strides = [1, 1]} : vector<32x32xf32> to vector<32x1xf32>
    %183 = vector.extract_strided_slice %8 {offsets = [28, 0], sizes = [1, 256], strides = [1, 1]} : vector<32x256xf32> to vector<1x256xf32>
    %184 = vector.broadcast %182 : vector<32x1xf32> to vector<32x256xf32>
    %185 = vector.broadcast %183 : vector<1x256xf32> to vector<32x256xf32>
    %186 = arith.mulf %184, %185 : vector<32x256xf32>
    %187 = arith.addf %181, %186 : vector<32x256xf32>
    %188 = vector.extract_strided_slice %11 {offsets = [0, 29], sizes = [32, 1], strides = [1, 1]} : vector<32x32xf32> to vector<32x1xf32>
    %189 = vector.extract_strided_slice %8 {offsets = [29, 0], sizes = [1, 256], strides = [1, 1]} : vector<32x256xf32> to vector<1x256xf32>
    %190 = vector.broadcast %188 : vector<32x1xf32> to vector<32x256xf32>
    %191 = vector.broadcast %189 : vector<1x256xf32> to vector<32x256xf32>
    %192 = arith.mulf %190, %191 : vector<32x256xf32>
    %193 = arith.addf %187, %192 : vector<32x256xf32>
    %194 = vector.extract_strided_slice %11 {offsets = [0, 30], sizes = [32, 1], strides = [1, 1]} : vector<32x32xf32> to vector<32x1xf32>
    %195 = vector.extract_strided_slice %8 {offsets = [30, 0], sizes = [1, 256], strides = [1, 1]} : vector<32x256xf32> to vector<1x256xf32>
    %196 = vector.broadcast %194 : vector<32x1xf32> to vector<32x256xf32>
    %197 = vector.broadcast %195 : vector<1x256xf32> to vector<32x256xf32>
    %198 = arith.mulf %196, %197 : vector<32x256xf32>
    %199 = arith.addf %193, %198 : vector<32x256xf32>
    %200 = vector.extract_strided_slice %11 {offsets = [0, 31], sizes = [32, 1], strides = [1, 1]} : vector<32x32xf32> to vector<32x1xf32>
    %201 = vector.extract_strided_slice %8 {offsets = [31, 0], sizes = [1, 256], strides = [1, 1]} : vector<32x256xf32> to vector<1x256xf32>
    %202 = vector.broadcast %200 : vector<32x1xf32> to vector<32x256xf32>
    %203 = vector.broadcast %201 : vector<1x256xf32> to vector<32x256xf32>
    %204 = arith.mulf %202, %203 : vector<32x256xf32>
    %205 = arith.addf %199, %204 : vector<32x256xf32>
    %206 = math.tanh %205 : vector<32x256xf32>
    %207 = vector.extract_strided_slice %9 {offsets = [0, 32], sizes = [32, 32], strides = [1, 1]} : vector<32x64xf32> to vector<32x32xf32>
    %208 = vector.extract_strided_slice %10 {offsets = [0, 1], sizes = [32, 1], strides = [1, 1]} : vector<32x2xf32> to vector<32x1xf32>
    %209 = vector.extract_strided_slice %207 {offsets = [0, 0], sizes = [32, 1], strides = [1, 1]} : vector<32x32xf32> to vector<32x1xf32>
    %210 = vector.extract_strided_slice %206 {offsets = [0, 0], sizes = [1, 256], strides = [1, 1]} : vector<32x256xf32> to vector<1x256xf32>
    %211 = vector.broadcast %209 : vector<32x1xf32> to vector<32x256xf32>
    %212 = vector.broadcast %210 : vector<1x256xf32> to vector<32x256xf32>
    %213 = arith.mulf %211, %212 : vector<32x256xf32>
    %214 = vector.broadcast %208 : vector<32x1xf32> to vector<32x256xf32>
    %215 = arith.addf %214, %213 : vector<32x256xf32>
    %216 = vector.extract_strided_slice %207 {offsets = [0, 1], sizes = [32, 1], strides = [1, 1]} : vector<32x32xf32> to vector<32x1xf32>
    %217 = vector.extract_strided_slice %206 {offsets = [1, 0], sizes = [1, 256], strides = [1, 1]} : vector<32x256xf32> to vector<1x256xf32>
    %218 = vector.broadcast %216 : vector<32x1xf32> to vector<32x256xf32>
    %219 = vector.broadcast %217 : vector<1x256xf32> to vector<32x256xf32>
    %220 = arith.mulf %218, %219 : vector<32x256xf32>
    %221 = arith.addf %215, %220 : vector<32x256xf32>
    %222 = vector.extract_strided_slice %207 {offsets = [0, 2], sizes = [32, 1], strides = [1, 1]} : vector<32x32xf32> to vector<32x1xf32>
    %223 = vector.extract_strided_slice %206 {offsets = [2, 0], sizes = [1, 256], strides = [1, 1]} : vector<32x256xf32> to vector<1x256xf32>
    %224 = vector.broadcast %222 : vector<32x1xf32> to vector<32x256xf32>
    %225 = vector.broadcast %223 : vector<1x256xf32> to vector<32x256xf32>
    %226 = arith.mulf %224, %225 : vector<32x256xf32>
    %227 = arith.addf %221, %226 : vector<32x256xf32>
    %228 = vector.extract_strided_slice %207 {offsets = [0, 3], sizes = [32, 1], strides = [1, 1]} : vector<32x32xf32> to vector<32x1xf32>
    %229 = vector.extract_strided_slice %206 {offsets = [3, 0], sizes = [1, 256], strides = [1, 1]} : vector<32x256xf32> to vector<1x256xf32>
    %230 = vector.broadcast %228 : vector<32x1xf32> to vector<32x256xf32>
    %231 = vector.broadcast %229 : vector<1x256xf32> to vector<32x256xf32>
    %232 = arith.mulf %230, %231 : vector<32x256xf32>
    %233 = arith.addf %227, %232 : vector<32x256xf32>
    %234 = vector.extract_strided_slice %207 {offsets = [0, 4], sizes = [32, 1], strides = [1, 1]} : vector<32x32xf32> to vector<32x1xf32>
    %235 = vector.extract_strided_slice %206 {offsets = [4, 0], sizes = [1, 256], strides = [1, 1]} : vector<32x256xf32> to vector<1x256xf32>
    %236 = vector.broadcast %234 : vector<32x1xf32> to vector<32x256xf32>
    %237 = vector.broadcast %235 : vector<1x256xf32> to vector<32x256xf32>
    %238 = arith.mulf %236, %237 : vector<32x256xf32>
    %239 = arith.addf %233, %238 : vector<32x256xf32>
    %240 = vector.extract_strided_slice %207 {offsets = [0, 5], sizes = [32, 1], strides = [1, 1]} : vector<32x32xf32> to vector<32x1xf32>
    %241 = vector.extract_strided_slice %206 {offsets = [5, 0], sizes = [1, 256], strides = [1, 1]} : vector<32x256xf32> to vector<1x256xf32>
    %242 = vector.broadcast %240 : vector<32x1xf32> to vector<32x256xf32>
    %243 = vector.broadcast %241 : vector<1x256xf32> to vector<32x256xf32>
    %244 = arith.mulf %242, %243 : vector<32x256xf32>
    %245 = arith.addf %239, %244 : vector<32x256xf32>
    %246 = vector.extract_strided_slice %207 {offsets = [0, 6], sizes = [32, 1], strides = [1, 1]} : vector<32x32xf32> to vector<32x1xf32>
    %247 = vector.extract_strided_slice %206 {offsets = [6, 0], sizes = [1, 256], strides = [1, 1]} : vector<32x256xf32> to vector<1x256xf32>
    %248 = vector.broadcast %246 : vector<32x1xf32> to vector<32x256xf32>
    %249 = vector.broadcast %247 : vector<1x256xf32> to vector<32x256xf32>
    %250 = arith.mulf %248, %249 : vector<32x256xf32>
    %251 = arith.addf %245, %250 : vector<32x256xf32>
    %252 = vector.extract_strided_slice %207 {offsets = [0, 7], sizes = [32, 1], strides = [1, 1]} : vector<32x32xf32> to vector<32x1xf32>
    %253 = vector.extract_strided_slice %206 {offsets = [7, 0], sizes = [1, 256], strides = [1, 1]} : vector<32x256xf32> to vector<1x256xf32>
    %254 = vector.broadcast %252 : vector<32x1xf32> to vector<32x256xf32>
    %255 = vector.broadcast %253 : vector<1x256xf32> to vector<32x256xf32>
    %256 = arith.mulf %254, %255 : vector<32x256xf32>
    %257 = arith.addf %251, %256 : vector<32x256xf32>
    %258 = vector.extract_strided_slice %207 {offsets = [0, 8], sizes = [32, 1], strides = [1, 1]} : vector<32x32xf32> to vector<32x1xf32>
    %259 = vector.extract_strided_slice %206 {offsets = [8, 0], sizes = [1, 256], strides = [1, 1]} : vector<32x256xf32> to vector<1x256xf32>
    %260 = vector.broadcast %258 : vector<32x1xf32> to vector<32x256xf32>
    %261 = vector.broadcast %259 : vector<1x256xf32> to vector<32x256xf32>
    %262 = arith.mulf %260, %261 : vector<32x256xf32>
    %263 = arith.addf %257, %262 : vector<32x256xf32>
    %264 = vector.extract_strided_slice %207 {offsets = [0, 9], sizes = [32, 1], strides = [1, 1]} : vector<32x32xf32> to vector<32x1xf32>
    %265 = vector.extract_strided_slice %206 {offsets = [9, 0], sizes = [1, 256], strides = [1, 1]} : vector<32x256xf32> to vector<1x256xf32>
    %266 = vector.broadcast %264 : vector<32x1xf32> to vector<32x256xf32>
    %267 = vector.broadcast %265 : vector<1x256xf32> to vector<32x256xf32>
    %268 = arith.mulf %266, %267 : vector<32x256xf32>
    %269 = arith.addf %263, %268 : vector<32x256xf32>
    %270 = vector.extract_strided_slice %207 {offsets = [0, 10], sizes = [32, 1], strides = [1, 1]} : vector<32x32xf32> to vector<32x1xf32>
    %271 = vector.extract_strided_slice %206 {offsets = [10, 0], sizes = [1, 256], strides = [1, 1]} : vector<32x256xf32> to vector<1x256xf32>
    %272 = vector.broadcast %270 : vector<32x1xf32> to vector<32x256xf32>
    %273 = vector.broadcast %271 : vector<1x256xf32> to vector<32x256xf32>
    %274 = arith.mulf %272, %273 : vector<32x256xf32>
    %275 = arith.addf %269, %274 : vector<32x256xf32>
    %276 = vector.extract_strided_slice %207 {offsets = [0, 11], sizes = [32, 1], strides = [1, 1]} : vector<32x32xf32> to vector<32x1xf32>
    %277 = vector.extract_strided_slice %206 {offsets = [11, 0], sizes = [1, 256], strides = [1, 1]} : vector<32x256xf32> to vector<1x256xf32>
    %278 = vector.broadcast %276 : vector<32x1xf32> to vector<32x256xf32>
    %279 = vector.broadcast %277 : vector<1x256xf32> to vector<32x256xf32>
    %280 = arith.mulf %278, %279 : vector<32x256xf32>
    %281 = arith.addf %275, %280 : vector<32x256xf32>
    %282 = vector.extract_strided_slice %207 {offsets = [0, 12], sizes = [32, 1], strides = [1, 1]} : vector<32x32xf32> to vector<32x1xf32>
    %283 = vector.extract_strided_slice %206 {offsets = [12, 0], sizes = [1, 256], strides = [1, 1]} : vector<32x256xf32> to vector<1x256xf32>
    %284 = vector.broadcast %282 : vector<32x1xf32> to vector<32x256xf32>
    %285 = vector.broadcast %283 : vector<1x256xf32> to vector<32x256xf32>
    %286 = arith.mulf %284, %285 : vector<32x256xf32>
    %287 = arith.addf %281, %286 : vector<32x256xf32>
    %288 = vector.extract_strided_slice %207 {offsets = [0, 13], sizes = [32, 1], strides = [1, 1]} : vector<32x32xf32> to vector<32x1xf32>
    %289 = vector.extract_strided_slice %206 {offsets = [13, 0], sizes = [1, 256], strides = [1, 1]} : vector<32x256xf32> to vector<1x256xf32>
    %290 = vector.broadcast %288 : vector<32x1xf32> to vector<32x256xf32>
    %291 = vector.broadcast %289 : vector<1x256xf32> to vector<32x256xf32>
    %292 = arith.mulf %290, %291 : vector<32x256xf32>
    %293 = arith.addf %287, %292 : vector<32x256xf32>
    %294 = vector.extract_strided_slice %207 {offsets = [0, 14], sizes = [32, 1], strides = [1, 1]} : vector<32x32xf32> to vector<32x1xf32>
    %295 = vector.extract_strided_slice %206 {offsets = [14, 0], sizes = [1, 256], strides = [1, 1]} : vector<32x256xf32> to vector<1x256xf32>
    %296 = vector.broadcast %294 : vector<32x1xf32> to vector<32x256xf32>
    %297 = vector.broadcast %295 : vector<1x256xf32> to vector<32x256xf32>
    %298 = arith.mulf %296, %297 : vector<32x256xf32>
    %299 = arith.addf %293, %298 : vector<32x256xf32>
    %300 = vector.extract_strided_slice %207 {offsets = [0, 15], sizes = [32, 1], strides = [1, 1]} : vector<32x32xf32> to vector<32x1xf32>
    %301 = vector.extract_strided_slice %206 {offsets = [15, 0], sizes = [1, 256], strides = [1, 1]} : vector<32x256xf32> to vector<1x256xf32>
    %302 = vector.broadcast %300 : vector<32x1xf32> to vector<32x256xf32>
    %303 = vector.broadcast %301 : vector<1x256xf32> to vector<32x256xf32>
    %304 = arith.mulf %302, %303 : vector<32x256xf32>
    %305 = arith.addf %299, %304 : vector<32x256xf32>
    %306 = vector.extract_strided_slice %207 {offsets = [0, 16], sizes = [32, 1], strides = [1, 1]} : vector<32x32xf32> to vector<32x1xf32>
    %307 = vector.extract_strided_slice %206 {offsets = [16, 0], sizes = [1, 256], strides = [1, 1]} : vector<32x256xf32> to vector<1x256xf32>
    %308 = vector.broadcast %306 : vector<32x1xf32> to vector<32x256xf32>
    %309 = vector.broadcast %307 : vector<1x256xf32> to vector<32x256xf32>
    %310 = arith.mulf %308, %309 : vector<32x256xf32>
    %311 = arith.addf %305, %310 : vector<32x256xf32>
    %312 = vector.extract_strided_slice %207 {offsets = [0, 17], sizes = [32, 1], strides = [1, 1]} : vector<32x32xf32> to vector<32x1xf32>
    %313 = vector.extract_strided_slice %206 {offsets = [17, 0], sizes = [1, 256], strides = [1, 1]} : vector<32x256xf32> to vector<1x256xf32>
    %314 = vector.broadcast %312 : vector<32x1xf32> to vector<32x256xf32>
    %315 = vector.broadcast %313 : vector<1x256xf32> to vector<32x256xf32>
    %316 = arith.mulf %314, %315 : vector<32x256xf32>
    %317 = arith.addf %311, %316 : vector<32x256xf32>
    %318 = vector.extract_strided_slice %207 {offsets = [0, 18], sizes = [32, 1], strides = [1, 1]} : vector<32x32xf32> to vector<32x1xf32>
    %319 = vector.extract_strided_slice %206 {offsets = [18, 0], sizes = [1, 256], strides = [1, 1]} : vector<32x256xf32> to vector<1x256xf32>
    %320 = vector.broadcast %318 : vector<32x1xf32> to vector<32x256xf32>
    %321 = vector.broadcast %319 : vector<1x256xf32> to vector<32x256xf32>
    %322 = arith.mulf %320, %321 : vector<32x256xf32>
    %323 = arith.addf %317, %322 : vector<32x256xf32>
    %324 = vector.extract_strided_slice %207 {offsets = [0, 19], sizes = [32, 1], strides = [1, 1]} : vector<32x32xf32> to vector<32x1xf32>
    %325 = vector.extract_strided_slice %206 {offsets = [19, 0], sizes = [1, 256], strides = [1, 1]} : vector<32x256xf32> to vector<1x256xf32>
    %326 = vector.broadcast %324 : vector<32x1xf32> to vector<32x256xf32>
    %327 = vector.broadcast %325 : vector<1x256xf32> to vector<32x256xf32>
    %328 = arith.mulf %326, %327 : vector<32x256xf32>
    %329 = arith.addf %323, %328 : vector<32x256xf32>
    %330 = vector.extract_strided_slice %207 {offsets = [0, 20], sizes = [32, 1], strides = [1, 1]} : vector<32x32xf32> to vector<32x1xf32>
    %331 = vector.extract_strided_slice %206 {offsets = [20, 0], sizes = [1, 256], strides = [1, 1]} : vector<32x256xf32> to vector<1x256xf32>
    %332 = vector.broadcast %330 : vector<32x1xf32> to vector<32x256xf32>
    %333 = vector.broadcast %331 : vector<1x256xf32> to vector<32x256xf32>
    %334 = arith.mulf %332, %333 : vector<32x256xf32>
    %335 = arith.addf %329, %334 : vector<32x256xf32>
    %336 = vector.extract_strided_slice %207 {offsets = [0, 21], sizes = [32, 1], strides = [1, 1]} : vector<32x32xf32> to vector<32x1xf32>
    %337 = vector.extract_strided_slice %206 {offsets = [21, 0], sizes = [1, 256], strides = [1, 1]} : vector<32x256xf32> to vector<1x256xf32>
    %338 = vector.broadcast %336 : vector<32x1xf32> to vector<32x256xf32>
    %339 = vector.broadcast %337 : vector<1x256xf32> to vector<32x256xf32>
    %340 = arith.mulf %338, %339 : vector<32x256xf32>
    %341 = arith.addf %335, %340 : vector<32x256xf32>
    %342 = vector.extract_strided_slice %207 {offsets = [0, 22], sizes = [32, 1], strides = [1, 1]} : vector<32x32xf32> to vector<32x1xf32>
    %343 = vector.extract_strided_slice %206 {offsets = [22, 0], sizes = [1, 256], strides = [1, 1]} : vector<32x256xf32> to vector<1x256xf32>
    %344 = vector.broadcast %342 : vector<32x1xf32> to vector<32x256xf32>
    %345 = vector.broadcast %343 : vector<1x256xf32> to vector<32x256xf32>
    %346 = arith.mulf %344, %345 : vector<32x256xf32>
    %347 = arith.addf %341, %346 : vector<32x256xf32>
    %348 = vector.extract_strided_slice %207 {offsets = [0, 23], sizes = [32, 1], strides = [1, 1]} : vector<32x32xf32> to vector<32x1xf32>
    %349 = vector.extract_strided_slice %206 {offsets = [23, 0], sizes = [1, 256], strides = [1, 1]} : vector<32x256xf32> to vector<1x256xf32>
    %350 = vector.broadcast %348 : vector<32x1xf32> to vector<32x256xf32>
    %351 = vector.broadcast %349 : vector<1x256xf32> to vector<32x256xf32>
    %352 = arith.mulf %350, %351 : vector<32x256xf32>
    %353 = arith.addf %347, %352 : vector<32x256xf32>
    %354 = vector.extract_strided_slice %207 {offsets = [0, 24], sizes = [32, 1], strides = [1, 1]} : vector<32x32xf32> to vector<32x1xf32>
    %355 = vector.extract_strided_slice %206 {offsets = [24, 0], sizes = [1, 256], strides = [1, 1]} : vector<32x256xf32> to vector<1x256xf32>
    %356 = vector.broadcast %354 : vector<32x1xf32> to vector<32x256xf32>
    %357 = vector.broadcast %355 : vector<1x256xf32> to vector<32x256xf32>
    %358 = arith.mulf %356, %357 : vector<32x256xf32>
    %359 = arith.addf %353, %358 : vector<32x256xf32>
    %360 = vector.extract_strided_slice %207 {offsets = [0, 25], sizes = [32, 1], strides = [1, 1]} : vector<32x32xf32> to vector<32x1xf32>
    %361 = vector.extract_strided_slice %206 {offsets = [25, 0], sizes = [1, 256], strides = [1, 1]} : vector<32x256xf32> to vector<1x256xf32>
    %362 = vector.broadcast %360 : vector<32x1xf32> to vector<32x256xf32>
    %363 = vector.broadcast %361 : vector<1x256xf32> to vector<32x256xf32>
    %364 = arith.mulf %362, %363 : vector<32x256xf32>
    %365 = arith.addf %359, %364 : vector<32x256xf32>
    %366 = vector.extract_strided_slice %207 {offsets = [0, 26], sizes = [32, 1], strides = [1, 1]} : vector<32x32xf32> to vector<32x1xf32>
    %367 = vector.extract_strided_slice %206 {offsets = [26, 0], sizes = [1, 256], strides = [1, 1]} : vector<32x256xf32> to vector<1x256xf32>
    %368 = vector.broadcast %366 : vector<32x1xf32> to vector<32x256xf32>
    %369 = vector.broadcast %367 : vector<1x256xf32> to vector<32x256xf32>
    %370 = arith.mulf %368, %369 : vector<32x256xf32>
    %371 = arith.addf %365, %370 : vector<32x256xf32>
    %372 = vector.extract_strided_slice %207 {offsets = [0, 27], sizes = [32, 1], strides = [1, 1]} : vector<32x32xf32> to vector<32x1xf32>
    %373 = vector.extract_strided_slice %206 {offsets = [27, 0], sizes = [1, 256], strides = [1, 1]} : vector<32x256xf32> to vector<1x256xf32>
    %374 = vector.broadcast %372 : vector<32x1xf32> to vector<32x256xf32>
    %375 = vector.broadcast %373 : vector<1x256xf32> to vector<32x256xf32>
    %376 = arith.mulf %374, %375 : vector<32x256xf32>
    %377 = arith.addf %371, %376 : vector<32x256xf32>
    %378 = vector.extract_strided_slice %207 {offsets = [0, 28], sizes = [32, 1], strides = [1, 1]} : vector<32x32xf32> to vector<32x1xf32>
    %379 = vector.extract_strided_slice %206 {offsets = [28, 0], sizes = [1, 256], strides = [1, 1]} : vector<32x256xf32> to vector<1x256xf32>
    %380 = vector.broadcast %378 : vector<32x1xf32> to vector<32x256xf32>
    %381 = vector.broadcast %379 : vector<1x256xf32> to vector<32x256xf32>
    %382 = arith.mulf %380, %381 : vector<32x256xf32>
    %383 = arith.addf %377, %382 : vector<32x256xf32>
    %384 = vector.extract_strided_slice %207 {offsets = [0, 29], sizes = [32, 1], strides = [1, 1]} : vector<32x32xf32> to vector<32x1xf32>
    %385 = vector.extract_strided_slice %206 {offsets = [29, 0], sizes = [1, 256], strides = [1, 1]} : vector<32x256xf32> to vector<1x256xf32>
    %386 = vector.broadcast %384 : vector<32x1xf32> to vector<32x256xf32>
    %387 = vector.broadcast %385 : vector<1x256xf32> to vector<32x256xf32>
    %388 = arith.mulf %386, %387 : vector<32x256xf32>
    %389 = arith.addf %383, %388 : vector<32x256xf32>
    %390 = vector.extract_strided_slice %207 {offsets = [0, 30], sizes = [32, 1], strides = [1, 1]} : vector<32x32xf32> to vector<32x1xf32>
    %391 = vector.extract_strided_slice %206 {offsets = [30, 0], sizes = [1, 256], strides = [1, 1]} : vector<32x256xf32> to vector<1x256xf32>
    %392 = vector.broadcast %390 : vector<32x1xf32> to vector<32x256xf32>
    %393 = vector.broadcast %391 : vector<1x256xf32> to vector<32x256xf32>
    %394 = arith.mulf %392, %393 : vector<32x256xf32>
    %395 = arith.addf %389, %394 : vector<32x256xf32>
    %396 = vector.extract_strided_slice %207 {offsets = [0, 31], sizes = [32, 1], strides = [1, 1]} : vector<32x32xf32> to vector<32x1xf32>
    %397 = vector.extract_strided_slice %206 {offsets = [31, 0], sizes = [1, 256], strides = [1, 1]} : vector<32x256xf32> to vector<1x256xf32>
    %398 = vector.broadcast %396 : vector<32x1xf32> to vector<32x256xf32>
    %399 = vector.broadcast %397 : vector<1x256xf32> to vector<32x256xf32>
    %400 = arith.mulf %398, %399 : vector<32x256xf32>
    %401 = arith.addf %395, %400 : vector<32x256xf32>
    %402 = math.tanh %401 : vector<32x256xf32>
    %c0_9 = arith.constant 0 : index
    %c0_10 = arith.constant 0 : index
    %403 = vector.load %arg6[%c0_9, %c0_10] : memref<1x32xf32, #tpu.memory_space<vmem>>, vector<1x32xf32>
    %c0_11 = arith.constant 0 : index
    %c0_12 = arith.constant 0 : index
    %404 = vector.load %arg7[%c0_11, %c0_12] : memref<1x1xf32, #tpu.memory_space<vmem>>, vector<1x1xf32>
    %405 = vector.extract_strided_slice %403 {offsets = [0, 0], sizes = [1, 1], strides = [1, 1]} : vector<1x32xf32> to vector<1x1xf32>
    %406 = vector.extract_strided_slice %402 {offsets = [0, 0], sizes = [1, 256], strides = [1, 1]} : vector<32x256xf32> to vector<1x256xf32>
    %407 = vector.broadcast %405 : vector<1x1xf32> to vector<1x256xf32>
    %408 = arith.mulf %407, %406 : vector<1x256xf32>
    %409 = vector.broadcast %404 : vector<1x1xf32> to vector<1x256xf32>
    %410 = arith.addf %409, %408 : vector<1x256xf32>
    %411 = vector.extract_strided_slice %403 {offsets = [0, 1], sizes = [1, 1], strides = [1, 1]} : vector<1x32xf32> to vector<1x1xf32>
    %412 = vector.extract_strided_slice %402 {offsets = [1, 0], sizes = [1, 256], strides = [1, 1]} : vector<32x256xf32> to vector<1x256xf32>
    %413 = vector.broadcast %411 : vector<1x1xf32> to vector<1x256xf32>
    %414 = arith.mulf %413, %412 : vector<1x256xf32>
    %415 = arith.addf %410, %414 : vector<1x256xf32>
    %416 = vector.extract_strided_slice %403 {offsets = [0, 2], sizes = [1, 1], strides = [1, 1]} : vector<1x32xf32> to vector<1x1xf32>
    %417 = vector.extract_strided_slice %402 {offsets = [2, 0], sizes = [1, 256], strides = [1, 1]} : vector<32x256xf32> to vector<1x256xf32>
    %418 = vector.broadcast %416 : vector<1x1xf32> to vector<1x256xf32>
    %419 = arith.mulf %418, %417 : vector<1x256xf32>
    %420 = arith.addf %415, %419 : vector<1x256xf32>
    %421 = vector.extract_strided_slice %403 {offsets = [0, 3], sizes = [1, 1], strides = [1, 1]} : vector<1x32xf32> to vector<1x1xf32>
    %422 = vector.extract_strided_slice %402 {offsets = [3, 0], sizes = [1, 256], strides = [1, 1]} : vector<32x256xf32> to vector<1x256xf32>
    %423 = vector.broadcast %421 : vector<1x1xf32> to vector<1x256xf32>
    %424 = arith.mulf %423, %422 : vector<1x256xf32>
    %425 = arith.addf %420, %424 : vector<1x256xf32>
    %426 = vector.extract_strided_slice %403 {offsets = [0, 4], sizes = [1, 1], strides = [1, 1]} : vector<1x32xf32> to vector<1x1xf32>
    %427 = vector.extract_strided_slice %402 {offsets = [4, 0], sizes = [1, 256], strides = [1, 1]} : vector<32x256xf32> to vector<1x256xf32>
    %428 = vector.broadcast %426 : vector<1x1xf32> to vector<1x256xf32>
    %429 = arith.mulf %428, %427 : vector<1x256xf32>
    %430 = arith.addf %425, %429 : vector<1x256xf32>
    %431 = vector.extract_strided_slice %403 {offsets = [0, 5], sizes = [1, 1], strides = [1, 1]} : vector<1x32xf32> to vector<1x1xf32>
    %432 = vector.extract_strided_slice %402 {offsets = [5, 0], sizes = [1, 256], strides = [1, 1]} : vector<32x256xf32> to vector<1x256xf32>
    %433 = vector.broadcast %431 : vector<1x1xf32> to vector<1x256xf32>
    %434 = arith.mulf %433, %432 : vector<1x256xf32>
    %435 = arith.addf %430, %434 : vector<1x256xf32>
    %436 = vector.extract_strided_slice %403 {offsets = [0, 6], sizes = [1, 1], strides = [1, 1]} : vector<1x32xf32> to vector<1x1xf32>
    %437 = vector.extract_strided_slice %402 {offsets = [6, 0], sizes = [1, 256], strides = [1, 1]} : vector<32x256xf32> to vector<1x256xf32>
    %438 = vector.broadcast %436 : vector<1x1xf32> to vector<1x256xf32>
    %439 = arith.mulf %438, %437 : vector<1x256xf32>
    %440 = arith.addf %435, %439 : vector<1x256xf32>
    %441 = vector.extract_strided_slice %403 {offsets = [0, 7], sizes = [1, 1], strides = [1, 1]} : vector<1x32xf32> to vector<1x1xf32>
    %442 = vector.extract_strided_slice %402 {offsets = [7, 0], sizes = [1, 256], strides = [1, 1]} : vector<32x256xf32> to vector<1x256xf32>
    %443 = vector.broadcast %441 : vector<1x1xf32> to vector<1x256xf32>
    %444 = arith.mulf %443, %442 : vector<1x256xf32>
    %445 = arith.addf %440, %444 : vector<1x256xf32>
    %446 = vector.extract_strided_slice %403 {offsets = [0, 8], sizes = [1, 1], strides = [1, 1]} : vector<1x32xf32> to vector<1x1xf32>
    %447 = vector.extract_strided_slice %402 {offsets = [8, 0], sizes = [1, 256], strides = [1, 1]} : vector<32x256xf32> to vector<1x256xf32>
    %448 = vector.broadcast %446 : vector<1x1xf32> to vector<1x256xf32>
    %449 = arith.mulf %448, %447 : vector<1x256xf32>
    %450 = arith.addf %445, %449 : vector<1x256xf32>
    %451 = vector.extract_strided_slice %403 {offsets = [0, 9], sizes = [1, 1], strides = [1, 1]} : vector<1x32xf32> to vector<1x1xf32>
    %452 = vector.extract_strided_slice %402 {offsets = [9, 0], sizes = [1, 256], strides = [1, 1]} : vector<32x256xf32> to vector<1x256xf32>
    %453 = vector.broadcast %451 : vector<1x1xf32> to vector<1x256xf32>
    %454 = arith.mulf %453, %452 : vector<1x256xf32>
    %455 = arith.addf %450, %454 : vector<1x256xf32>
    %456 = vector.extract_strided_slice %403 {offsets = [0, 10], sizes = [1, 1], strides = [1, 1]} : vector<1x32xf32> to vector<1x1xf32>
    %457 = vector.extract_strided_slice %402 {offsets = [10, 0], sizes = [1, 256], strides = [1, 1]} : vector<32x256xf32> to vector<1x256xf32>
    %458 = vector.broadcast %456 : vector<1x1xf32> to vector<1x256xf32>
    %459 = arith.mulf %458, %457 : vector<1x256xf32>
    %460 = arith.addf %455, %459 : vector<1x256xf32>
    %461 = vector.extract_strided_slice %403 {offsets = [0, 11], sizes = [1, 1], strides = [1, 1]} : vector<1x32xf32> to vector<1x1xf32>
    %462 = vector.extract_strided_slice %402 {offsets = [11, 0], sizes = [1, 256], strides = [1, 1]} : vector<32x256xf32> to vector<1x256xf32>
    %463 = vector.broadcast %461 : vector<1x1xf32> to vector<1x256xf32>
    %464 = arith.mulf %463, %462 : vector<1x256xf32>
    %465 = arith.addf %460, %464 : vector<1x256xf32>
    %466 = vector.extract_strided_slice %403 {offsets = [0, 12], sizes = [1, 1], strides = [1, 1]} : vector<1x32xf32> to vector<1x1xf32>
    %467 = vector.extract_strided_slice %402 {offsets = [12, 0], sizes = [1, 256], strides = [1, 1]} : vector<32x256xf32> to vector<1x256xf32>
    %468 = vector.broadcast %466 : vector<1x1xf32> to vector<1x256xf32>
    %469 = arith.mulf %468, %467 : vector<1x256xf32>
    %470 = arith.addf %465, %469 : vector<1x256xf32>
    %471 = vector.extract_strided_slice %403 {offsets = [0, 13], sizes = [1, 1], strides = [1, 1]} : vector<1x32xf32> to vector<1x1xf32>
    %472 = vector.extract_strided_slice %402 {offsets = [13, 0], sizes = [1, 256], strides = [1, 1]} : vector<32x256xf32> to vector<1x256xf32>
    %473 = vector.broadcast %471 : vector<1x1xf32> to vector<1x256xf32>
    %474 = arith.mulf %473, %472 : vector<1x256xf32>
    %475 = arith.addf %470, %474 : vector<1x256xf32>
    %476 = vector.extract_strided_slice %403 {offsets = [0, 14], sizes = [1, 1], strides = [1, 1]} : vector<1x32xf32> to vector<1x1xf32>
    %477 = vector.extract_strided_slice %402 {offsets = [14, 0], sizes = [1, 256], strides = [1, 1]} : vector<32x256xf32> to vector<1x256xf32>
    %478 = vector.broadcast %476 : vector<1x1xf32> to vector<1x256xf32>
    %479 = arith.mulf %478, %477 : vector<1x256xf32>
    %480 = arith.addf %475, %479 : vector<1x256xf32>
    %481 = vector.extract_strided_slice %403 {offsets = [0, 15], sizes = [1, 1], strides = [1, 1]} : vector<1x32xf32> to vector<1x1xf32>
    %482 = vector.extract_strided_slice %402 {offsets = [15, 0], sizes = [1, 256], strides = [1, 1]} : vector<32x256xf32> to vector<1x256xf32>
    %483 = vector.broadcast %481 : vector<1x1xf32> to vector<1x256xf32>
    %484 = arith.mulf %483, %482 : vector<1x256xf32>
    %485 = arith.addf %480, %484 : vector<1x256xf32>
    %486 = vector.extract_strided_slice %403 {offsets = [0, 16], sizes = [1, 1], strides = [1, 1]} : vector<1x32xf32> to vector<1x1xf32>
    %487 = vector.extract_strided_slice %402 {offsets = [16, 0], sizes = [1, 256], strides = [1, 1]} : vector<32x256xf32> to vector<1x256xf32>
    %488 = vector.broadcast %486 : vector<1x1xf32> to vector<1x256xf32>
    %489 = arith.mulf %488, %487 : vector<1x256xf32>
    %490 = arith.addf %485, %489 : vector<1x256xf32>
    %491 = vector.extract_strided_slice %403 {offsets = [0, 17], sizes = [1, 1], strides = [1, 1]} : vector<1x32xf32> to vector<1x1xf32>
    %492 = vector.extract_strided_slice %402 {offsets = [17, 0], sizes = [1, 256], strides = [1, 1]} : vector<32x256xf32> to vector<1x256xf32>
    %493 = vector.broadcast %491 : vector<1x1xf32> to vector<1x256xf32>
    %494 = arith.mulf %493, %492 : vector<1x256xf32>
    %495 = arith.addf %490, %494 : vector<1x256xf32>
    %496 = vector.extract_strided_slice %403 {offsets = [0, 18], sizes = [1, 1], strides = [1, 1]} : vector<1x32xf32> to vector<1x1xf32>
    %497 = vector.extract_strided_slice %402 {offsets = [18, 0], sizes = [1, 256], strides = [1, 1]} : vector<32x256xf32> to vector<1x256xf32>
    %498 = vector.broadcast %496 : vector<1x1xf32> to vector<1x256xf32>
    %499 = arith.mulf %498, %497 : vector<1x256xf32>
    %500 = arith.addf %495, %499 : vector<1x256xf32>
    %501 = vector.extract_strided_slice %403 {offsets = [0, 19], sizes = [1, 1], strides = [1, 1]} : vector<1x32xf32> to vector<1x1xf32>
    %502 = vector.extract_strided_slice %402 {offsets = [19, 0], sizes = [1, 256], strides = [1, 1]} : vector<32x256xf32> to vector<1x256xf32>
    %503 = vector.broadcast %501 : vector<1x1xf32> to vector<1x256xf32>
    %504 = arith.mulf %503, %502 : vector<1x256xf32>
    %505 = arith.addf %500, %504 : vector<1x256xf32>
    %506 = vector.extract_strided_slice %403 {offsets = [0, 20], sizes = [1, 1], strides = [1, 1]} : vector<1x32xf32> to vector<1x1xf32>
    %507 = vector.extract_strided_slice %402 {offsets = [20, 0], sizes = [1, 256], strides = [1, 1]} : vector<32x256xf32> to vector<1x256xf32>
    %508 = vector.broadcast %506 : vector<1x1xf32> to vector<1x256xf32>
    %509 = arith.mulf %508, %507 : vector<1x256xf32>
    %510 = arith.addf %505, %509 : vector<1x256xf32>
    %511 = vector.extract_strided_slice %403 {offsets = [0, 21], sizes = [1, 1], strides = [1, 1]} : vector<1x32xf32> to vector<1x1xf32>
    %512 = vector.extract_strided_slice %402 {offsets = [21, 0], sizes = [1, 256], strides = [1, 1]} : vector<32x256xf32> to vector<1x256xf32>
    %513 = vector.broadcast %511 : vector<1x1xf32> to vector<1x256xf32>
    %514 = arith.mulf %513, %512 : vector<1x256xf32>
    %515 = arith.addf %510, %514 : vector<1x256xf32>
    %516 = vector.extract_strided_slice %403 {offsets = [0, 22], sizes = [1, 1], strides = [1, 1]} : vector<1x32xf32> to vector<1x1xf32>
    %517 = vector.extract_strided_slice %402 {offsets = [22, 0], sizes = [1, 256], strides = [1, 1]} : vector<32x256xf32> to vector<1x256xf32>
    %518 = vector.broadcast %516 : vector<1x1xf32> to vector<1x256xf32>
    %519 = arith.mulf %518, %517 : vector<1x256xf32>
    %520 = arith.addf %515, %519 : vector<1x256xf32>
    %521 = vector.extract_strided_slice %403 {offsets = [0, 23], sizes = [1, 1], strides = [1, 1]} : vector<1x32xf32> to vector<1x1xf32>
    %522 = vector.extract_strided_slice %402 {offsets = [23, 0], sizes = [1, 256], strides = [1, 1]} : vector<32x256xf32> to vector<1x256xf32>
    %523 = vector.broadcast %521 : vector<1x1xf32> to vector<1x256xf32>
    %524 = arith.mulf %523, %522 : vector<1x256xf32>
    %525 = arith.addf %520, %524 : vector<1x256xf32>
    %526 = vector.extract_strided_slice %403 {offsets = [0, 24], sizes = [1, 1], strides = [1, 1]} : vector<1x32xf32> to vector<1x1xf32>
    %527 = vector.extract_strided_slice %402 {offsets = [24, 0], sizes = [1, 256], strides = [1, 1]} : vector<32x256xf32> to vector<1x256xf32>
    %528 = vector.broadcast %526 : vector<1x1xf32> to vector<1x256xf32>
    %529 = arith.mulf %528, %527 : vector<1x256xf32>
    %530 = arith.addf %525, %529 : vector<1x256xf32>
    %531 = vector.extract_strided_slice %403 {offsets = [0, 25], sizes = [1, 1], strides = [1, 1]} : vector<1x32xf32> to vector<1x1xf32>
    %532 = vector.extract_strided_slice %402 {offsets = [25, 0], sizes = [1, 256], strides = [1, 1]} : vector<32x256xf32> to vector<1x256xf32>
    %533 = vector.broadcast %531 : vector<1x1xf32> to vector<1x256xf32>
    %534 = arith.mulf %533, %532 : vector<1x256xf32>
    %535 = arith.addf %530, %534 : vector<1x256xf32>
    %536 = vector.extract_strided_slice %403 {offsets = [0, 26], sizes = [1, 1], strides = [1, 1]} : vector<1x32xf32> to vector<1x1xf32>
    %537 = vector.extract_strided_slice %402 {offsets = [26, 0], sizes = [1, 256], strides = [1, 1]} : vector<32x256xf32> to vector<1x256xf32>
    %538 = vector.broadcast %536 : vector<1x1xf32> to vector<1x256xf32>
    %539 = arith.mulf %538, %537 : vector<1x256xf32>
    %540 = arith.addf %535, %539 : vector<1x256xf32>
    %541 = vector.extract_strided_slice %403 {offsets = [0, 27], sizes = [1, 1], strides = [1, 1]} : vector<1x32xf32> to vector<1x1xf32>
    %542 = vector.extract_strided_slice %402 {offsets = [27, 0], sizes = [1, 256], strides = [1, 1]} : vector<32x256xf32> to vector<1x256xf32>
    %543 = vector.broadcast %541 : vector<1x1xf32> to vector<1x256xf32>
    %544 = arith.mulf %543, %542 : vector<1x256xf32>
    %545 = arith.addf %540, %544 : vector<1x256xf32>
    %546 = vector.extract_strided_slice %403 {offsets = [0, 28], sizes = [1, 1], strides = [1, 1]} : vector<1x32xf32> to vector<1x1xf32>
    %547 = vector.extract_strided_slice %402 {offsets = [28, 0], sizes = [1, 256], strides = [1, 1]} : vector<32x256xf32> to vector<1x256xf32>
    %548 = vector.broadcast %546 : vector<1x1xf32> to vector<1x256xf32>
    %549 = arith.mulf %548, %547 : vector<1x256xf32>
    %550 = arith.addf %545, %549 : vector<1x256xf32>
    %551 = vector.extract_strided_slice %403 {offsets = [0, 29], sizes = [1, 1], strides = [1, 1]} : vector<1x32xf32> to vector<1x1xf32>
    %552 = vector.extract_strided_slice %402 {offsets = [29, 0], sizes = [1, 256], strides = [1, 1]} : vector<32x256xf32> to vector<1x256xf32>
    %553 = vector.broadcast %551 : vector<1x1xf32> to vector<1x256xf32>
    %554 = arith.mulf %553, %552 : vector<1x256xf32>
    %555 = arith.addf %550, %554 : vector<1x256xf32>
    %556 = vector.extract_strided_slice %403 {offsets = [0, 30], sizes = [1, 1], strides = [1, 1]} : vector<1x32xf32> to vector<1x1xf32>
    %557 = vector.extract_strided_slice %402 {offsets = [30, 0], sizes = [1, 256], strides = [1, 1]} : vector<32x256xf32> to vector<1x256xf32>
    %558 = vector.broadcast %556 : vector<1x1xf32> to vector<1x256xf32>
    %559 = arith.mulf %558, %557 : vector<1x256xf32>
    %560 = arith.addf %555, %559 : vector<1x256xf32>
    %561 = vector.extract_strided_slice %403 {offsets = [0, 31], sizes = [1, 1], strides = [1, 1]} : vector<1x32xf32> to vector<1x1xf32>
    %562 = vector.extract_strided_slice %402 {offsets = [31, 0], sizes = [1, 256], strides = [1, 1]} : vector<32x256xf32> to vector<1x256xf32>
    %563 = vector.broadcast %561 : vector<1x1xf32> to vector<1x256xf32>
    %564 = arith.mulf %563, %562 : vector<1x256xf32>
    %565 = arith.addf %560, %564 : vector<1x256xf32>
    %c0_13 = arith.constant 0 : index
    %c0_14 = arith.constant 0 : index
    %566 = vector.load %arg8[%c0_13, %c0_14] : memref<1x256xf32, #tpu.memory_space<vmem>>, vector<1x256xf32>
    tpu.vector_store %arg8[%c0_13, %c0_14], %565 {strides = array<i32>} : memref<1x256xf32, #tpu.memory_space<vmem>>, vector<1x256xf32>,
    return
  }
  func.func @transform_0(%arg0: i32) -> (i32, i32) {
    %c0_i32 = arith.constant 0 : i32
    %c0_i32_0 = arith.constant 0 : i32
    return %c0_i32, %arg0 : i32, i32
  }
  func.func @transform_1(%arg0: i32) -> (i32, i32) {
    %c0_i32 = arith.constant 0 : i32
    %c0_i32_0 = arith.constant 0 : i32
    %c0_i32_1 = arith.constant 0 : i32
    return %c0_i32, %c0_i32_0 : i32, i32
  }
  func.func @transform_2(%arg0: i32) -> (i32, i32) {
    %c0_i32 = arith.constant 0 : i32
    %c0_i32_0 = arith.constant 0 : i32
    %c0_i32_1 = arith.constant 0 : i32
    return %c0_i32, %c0_i32_0 : i32, i32
  }
  func.func @transform_3(%arg0: i32) -> (i32, i32) {
    %c0_i32 = arith.constant 0 : i32
    %c0_i32_0 = arith.constant 0 : i32
    %c0_i32_1 = arith.constant 0 : i32
    return %c0_i32, %c0_i32_0 : i32, i32
  }
  func.func @transform_4(%arg0: i32) -> (i32, i32) {
    %c0_i32 = arith.constant 0 : i32
    %c0_i32_0 = arith.constant 0 : i32
    %c0_i32_1 = arith.constant 0 : i32
    return %c0_i32, %c0_i32_0 : i32, i32
  }
  func.func @transform_5(%arg0: i32) -> (i32, i32) {
    %c0_i32 = arith.constant 0 : i32
    %c0_i32_0 = arith.constant 0 : i32
    %c0_i32_1 = arith.constant 0 : i32
    return %c0_i32, %c0_i32_0 : i32, i32
  }
  func.func @transform_6(%arg0: i32) -> (i32, i32) {
    %c0_i32 = arith.constant 0 : i32
    %c0_i32_0 = arith.constant 0 : i32
    %c0_i32_1 = arith.constant 0 : i32
    return %c0_i32, %c0_i32_0 : i32, i32
  }
  func.func @transform_7(%arg0: i32) -> (i32, i32) {
    %c0_i32 = arith.constant 0 : i32
    %c0_i32_0 = arith.constant 0 : i32
    return %c0_i32, %arg0 : i32, i32
  }
}

</mosaic_0001>

<llo_original>
// kernel: tpu_custom_call.1
$region0: #{tpu_custom_call.1}
  #allocation0 [shape = 'u32[]', space=smem, size = 0x4, offset = 0x4, fixed_abs, tag = 'smem constant byte address 0x4 - core index']
  #allocation1 [shape = 'u32[72,128]{1,0:T(1,128)}', space=vmem, size = 0x9000, scoped, tag = 'internal scratch']
  #allocation2 [shape = 'f32[1,1]{1,0:T(1,128)S(1)}', space=vmem, size = 0x200, scoped, tag = 'scoped memory for tpu_custom_call.1']
  %s0 = inlined_call_operand.vmem [shape: f32[1,256], index: 0, kind: input, shape index: {}]
  %s1 = inlined_call_operand.vmem [shape: f32[32,1], index: 1, kind: input, shape index: {}]
  %s2 = inlined_call_operand.vmem [shape: f32[32,1], index: 2, kind: input, shape index: {}]
  %s3 = inlined_call_operand.vmem [shape: f32[32,64], index: 3, kind: input, shape index: {}]
  %s4 = inlined_call_operand.vmem [shape: f32[32,2], index: 4, kind: input, shape index: {}]
  %s5 = inlined_call_operand.vmem [shape: f32[1,32], index: 5, kind: input, shape index: {}]
  %s6 = inlined_call_operand.<no memory space> [shape: f32[1,1], index: 6, kind: input, shape index: {}]
  %s7 = inlined_call_operand.hbm [shape: f32[1,256], index: 7, kind: output, shape index: {}]
  %s8 = sld [smem:[#allocation0]]
  $region38: #{tpu_custom_call.1} parent=0
    _
  %s10 = ssub.s32 1, %s8
  %s11 = scalar_select 0, %s10, %s8
  %v12 = vstv %s6
  %13 = vst [vmem:[#allocation2] sm:$0x1] %v12
  $region1: #{tpu_custom_call.1} parent=0
    #allocation3 [shape = 'u8[1024]{0}', space=vmem, size = 0x400, scoped, tag = 'output window, operand 0, single buffered']
    #allocation4 [shape = 's32[1]{0}', space=sflag, size = 0x4, scoped, tag = 'scoped memory for tpu_custom_call.1']
    %14 = vsyncpa [#allocation4], 0
    // Predicated region
    $region2: #{tpu_custom_call.1} parent=1 // pred_check
      _
    $region3: #{tpu_custom_call.1} parent=1 // pred_check_branch
      %16 = sbr.rel (0) target = $region5
    $region4: #{tpu_custom_call.1} parent=1 // pred_region
      _
    $region5: #{tpu_custom_call.1} parent=1 // pred_fallthru
      _
    // Predicated region
    $region6: #{tpu_custom_call.1} parent=1 // pred_check
      _
    $region7: #{tpu_custom_call.1} parent=1 // pred_check_branch
      %18 = sbr.rel (0) target = $region9
    $region8: #{tpu_custom_call.1} parent=1 // pred_region
      _
    $region9: #{tpu_custom_call.1} parent=1 // pred_fallthru
      _
    // Predicated region
    $region10: #{tpu_custom_call.1} parent=1 // pred_check
      _
    $region11: #{tpu_custom_call.1} parent=1 // pred_check_branch
      %20 = sbr.rel (0) target = $region13
    $region12: #{tpu_custom_call.1} parent=1 // pred_region
      _
    $region13: #{tpu_custom_call.1} parent=1 // pred_fallthru
      _
    // Predicated region
    $region14: #{tpu_custom_call.1} parent=1 // pred_check
      _
    $region15: #{tpu_custom_call.1} parent=1 // pred_check_branch
      %22 = sbr.rel (0) target = $region17
    $region16: #{tpu_custom_call.1} parent=1 // pred_region
      _
    $region17: #{tpu_custom_call.1} parent=1 // pred_fallthru
      _
    // Predicated region
    $region18: #{tpu_custom_call.1} parent=1 // pred_check
      _
    $region19: #{tpu_custom_call.1} parent=1 // pred_check_branch
      %24 = sbr.rel (0) target = $region21
    $region20: #{tpu_custom_call.1} parent=1 // pred_region
      _
    $region21: #{tpu_custom_call.1} parent=1 // pred_fallthru
      _
    // Predicated region
    $region22: #{tpu_custom_call.1} parent=1 // pred_check
      _
    $region23: #{tpu_custom_call.1} parent=1 // pred_check_branch
      %26 = sbr.rel (0) target = $region25
    $region24: #{tpu_custom_call.1} parent=1 // pred_region
      _
    $region25: #{tpu_custom_call.1} parent=1 // pred_fallthru
      _
    // Predicated region
    $region26: #{tpu_custom_call.1} parent=1 // pred_check
      _
    $region27: #{tpu_custom_call.1} parent=1 // pred_check_branch
      %28 = sbr.rel (0) target = $region29
    $region28: #{tpu_custom_call.1} parent=1 // pred_region
      _
    $region29: #{tpu_custom_call.1} parent=1 // pred_fallthru
      _
    %v29 = vld [vmem:[%s1] sm:$0xff]
    %v30 = vld [vmem:[%s1 + $0x8] sm:$0xff]
    %v31 = vld [vmem:[%s1 + $0x10] sm:$0xff]
    %v32 = vld [vmem:[%s1 + $0x18] sm:$0xff]
    %v33 = vld [vmem:[%s0] sm:$0x3]
    %v34 = vld [vmem:[%s2] sm:$0xff]
    %v35 = vld [vmem:[%s2 + $0x8] sm:$0xff]
    %v36 = vld [vmem:[%s2 + $0x10] sm:$0xff]
    %v37 = vld [vmem:[%s2 + $0x18] sm:$0xff]
    %39 = vset.pattern.permute.xlu0 0
    %40 = vperm.xlu0 %39, %v29
    %v41 = vpop.permute.xlu0 %40
    %44 = vset.pattern.permute.xlu0 0
    %45 = vperm.xlu0 %44, %v30
    %v46 = vpop.permute.xlu0 %45
    %49 = vset.pattern.permute.xlu0 0
    %50 = vperm.xlu0 %49, %v31
    %v51 = vpop.permute.xlu0 %50
    %54 = vset.pattern.permute.xlu0 0
    %55 = vperm.xlu0 %54, %v32
    %v56 = vpop.permute.xlu0 %55
    %v59 = vperm.slane %v33, 0
    %v60 = vperm.slane %v33, 1
    %v63 = vmul.f32 %v41, %v59
    %v64 = vmul.f32 %v41, %v60
    %v65 = vmul.f32 %v46, %v59
    %v66 = vmul.f32 %v46, %v60
    %v67 = vmul.f32 %v51, %v59
    %v68 = vmul.f32 %v51, %v60
    %v69 = vmul.f32 %v56, %v59
    %v70 = vmul.f32 %v56, %v60
    %72 = vset.pattern.permute.xlu0 0
    %73 = vperm.xlu0 %72, %v34
    %v74 = vpop.permute.xlu0 %73
    %77 = vset.pattern.permute.xlu0 0
    %78 = vperm.xlu0 %77, %v35
    %v79 = vpop.permute.xlu0 %78
    %82 = vset.pattern.permute.xlu0 0
    %83 = vperm.xlu0 %82, %v36
    %v84 = vpop.permute.xlu0 %83
    %87 = vset.pattern.permute.xlu0 0
    %88 = vperm.xlu0 %87, %v37
    %v89 = vpop.permute.xlu0 %88
    %v91 = vadd.f32 %v74, %v63
    %v92 = vadd.f32 %v74, %v64
    %v93 = vadd.f32 %v79, %v65
    %v94 = vadd.f32 %v79, %v66
    %v95 = vadd.f32 %v84, %v67
    %v96 = vadd.f32 %v84, %v68
    %v97 = vadd.f32 %v89, %v69
    %v98 = vadd.f32 %v89, %v70
    %v99 = vtanh.pop %v91
    %v100 = vtanh.pop %v92
    %v101 = vtanh.pop %v93
    %v102 = vtanh.pop %v94
    %v103 = vtanh.pop %v95
    %v104 = vtanh.pop %v96
    %v105 = vtanh.pop %v97
    %v106 = vtanh.pop %v98
    %v107 = vld [vmem:[%s3] sm:$0xff]
    %v108 = vld [vmem:[%s3 + $0x8] sm:$0xff]
    %v109 = vld [vmem:[%s3 + $0x10] sm:$0xff]
    %v110 = vld [vmem:[%s3 + $0x18] sm:$0xff]
    %v111 = vld [vmem:[%s4] sm:$0xff]
    %v112 = vld [vmem:[%s4 + $0x8] sm:$0xff]
    %v113 = vld [vmem:[%s4 + $0x10] sm:$0xff]
    %v114 = vld [vmem:[%s4 + $0x18] sm:$0xff]
    %116 = vset.pattern.permute.xlu0 0
    %117 = vperm.xlu0 %116, %v107
    %v118 = vpop.permute.xlu0 %117
    %121 = vset.pattern.permute.xlu0 0
    %122 = vperm.xlu0 %121, %v108
    %v123 = vpop.permute.xlu0 %122
    %126 = vset.pattern.permute.xlu0 0
    %127 = vperm.xlu0 %126, %v109
    %v128 = vpop.permute.xlu0 %127
    %131 = vset.pattern.permute.xlu0 0
    %132 = vperm.xlu0 %131, %v110
    %v133 = vpop.permute.xlu0 %132
    %v135 = vperm.slane %v99, 0
    %v136 = vperm.slane %v100, 0
    %v137 = vmul.f32 %v118, %v135
    %v138 = vmul.f32 %v118, %v136
    %v139 = vmul.f32 %v123, %v135
    %v140 = vmul.f32 %v123, %v136
    %v141 = vmul.f32 %v128, %v135
    %v142 = vmul.f32 %v128, %v136
    %v143 = vmul.f32 %v133, %v135
    %v144 = vmul.f32 %v133, %v136
    %146 = vset.pattern.permute.xlu0 0
    %147 = vperm.xlu0 %146, %v111
    %v148 = vpop.permute.xlu0 %147
    %151 = vset.pattern.permute.xlu0 0
    %152 = vperm.xlu0 %151, %v112
    %v153 = vpop.permute.xlu0 %152
    %156 = vset.pattern.permute.xlu0 0
    %157 = vperm.xlu0 %156, %v113
    %v158 = vpop.permute.xlu0 %157
    %161 = vset.pattern.permute.xlu0 0
    %162 = vperm.xlu0 %161, %v114
    %v163 = vpop.permute.xlu0 %162
    %v165 = vadd.f32 %v148, %v137
    %v166 = vadd.f32 %v148, %v138
    %v167 = vadd.f32 %v153, %v139
    %v168 = vadd.f32 %v153, %v140
    %v169 = vadd.f32 %v158, %v141
    %v170 = vadd.f32 %v158, %v142
    %v171 = vadd.f32 %v163, %v143
    %v172 = vadd.f32 %v163, %v144
    %173 = vset.pattern.permute.xlu0 1
    %174 = vperm.xlu0 %173, %v107
    %v175 = vpop.permute.xlu0 %174
    %177 = vset.pattern.permute.xlu0 1
    %178 = vperm.xlu0 %177, %v108
    %v179 = vpop.permute.xlu0 %178
    %181 = vset.pattern.permute.xlu0 1
    %182 = vperm.xlu0 %181, %v109
    %v183 = vpop.permute.xlu0 %182
    %185 = vset.pattern.permute.xlu0 1
    %186 = vperm.xlu0 %185, %v110
    %v187 = vpop.permute.xlu0 %186
    %v189 = vperm.slane %v99, 1
    %v190 = vperm.slane %v100, 1
    %v191 = vmul.f32 %v175, %v189
    %v192 = vmul.f32 %v175, %v190
    %v193 = vmul.f32 %v179, %v189
    %v194 = vmul.f32 %v179, %v190
    %v195 = vmul.f32 %v183, %v189
    %v196 = vmul.f32 %v183, %v190
    %v197 = vmul.f32 %v187, %v189
    %v198 = vmul.f32 %v187, %v190
    %v199 = vadd.f32 %v165, %v191
    %v200 = vadd.f32 %v166, %v192
    %v201 = vadd.f32 %v167, %v193
    %v202 = vadd.f32 %v168, %v194
    %v203 = vadd.f32 %v169, %v195
    %v204 = vadd.f32 %v170, %v196
    %v205 = vadd.f32 %v171, %v197
    %v206 = vadd.f32 %v172, %v198
    %207 = vset.pattern.permute.xlu0 2
    %208 = vperm.xlu0 %207, %v107
    %v209 = vpop.permute.xlu0 %208
    %211 = vset.pattern.permute.xlu0 2
    %212 = vperm.xlu0 %211, %v108
    %v213 = vpop.permute.xlu0 %212
    %215 = vset.pattern.permute.xlu0 2
    %216 = vperm.xlu0 %215, %v109
    %v217 = vpop.permute.xlu0 %216
    %219 = vset.pattern.permute.xlu0 2
    %220 = vperm.xlu0 %219, %v110
    %v221 = vpop.permute.xlu0 %220
    %v223 = vperm.slane %v99, 2
    %v224 = vperm.slane %v100, 2
    %v225 = vmul.f32 %v209, %v223
    %v226 = vmul.f32 %v209, %v224
    %v227 = vmul.f32 %v213, %v223
    %v228 = vmul.f32 %v213, %v224
    %v229 = vmul.f32 %v217, %v223
    %v230 = vmul.f32 %v217, %v224
    %v231 = vmul.f32 %v221, %v223
    %v232 = vmul.f32 %v221, %v224
    %v233 = vadd.f32 %v199, %v225
    %v234 = vadd.f32 %v200, %v226
    %v235 = vadd.f32 %v201, %v227
    %v236 = vadd.f32 %v202, %v228
    %v237 = vadd.f32 %v203, %v229
    %v238 = vadd.f32 %v204, %v230
    %v239 = vadd.f32 %v205, %v231
    %v240 = vadd.f32 %v206, %v232
    %241 = vset.pattern.permute.xlu0 3
    %242 = vperm.xlu0 %241, %v107
    %v243 = vpop.permute.xlu0 %242
    %245 = vset.pattern.permute.xlu0 3
    %246 = vperm.xlu0 %245, %v108
    %v247 = vpop.permute.xlu0 %246
    %249 = vset.pattern.permute.xlu0 3
    %250 = vperm.xlu0 %249, %v109
    %v251 = vpop.permute.xlu0 %250
    %253 = vset.pattern.permute.xlu0 3
    %254 = vperm.xlu0 %253, %v110
    %v255 = vpop.permute.xlu0 %254
    %v257 = vperm.slane %v99, 3
    %v258 = vperm.slane %v100, 3
    %v259 = vmul.f32 %v243, %v257
    %v260 = vmul.f32 %v243, %v258
    %v261 = vmul.f32 %v247, %v257
    %v262 = vmul.f32 %v247, %v258
    %v263 = vmul.f32 %v251, %v257
    %v264 = vmul.f32 %v251, %v258
    %v265 = vmul.f32 %v255, %v257
    %v266 = vmul.f32 %v255, %v258
    %v267 = vadd.f32 %v233, %v259
    %v268 = vadd.f32 %v234, %v260
    %v269 = vadd.f32 %v235, %v261
    %v270 = vadd.f32 %v236, %v262
    %v271 = vadd.f32 %v237, %v263
    %v272 = vadd.f32 %v238, %v264
    %v273 = vadd.f32 %v239, %v265
    %v274 = vadd.f32 %v240, %v266
    %275 = vset.pattern.permute.xlu0 4
    %276 = vperm.xlu0 %275, %v107
    %v277 = vpop.permute.xlu0 %276
    %279 = vset.pattern.permute.xlu0 4
    %280 = vperm.xlu0 %279, %v108
    %v281 = vpop.permute.xlu0 %280
    %283 = vset.pattern.permute.xlu0 4
    %284 = vperm.xlu0 %283, %v109
    %v285 = vpop.permute.xlu0 %284
    %287 = vset.pattern.permute.xlu0 4
    %288 = vperm.xlu0 %287, %v110
    %v289 = vpop.permute.xlu0 %288
    %v291 = vperm.slane %v99, 4
    %v292 = vperm.slane %v100, 4
    %v293 = vmul.f32 %v277, %v291
    %v294 = vmul.f32 %v277, %v292
    %v295 = vmul.f32 %v281, %v291
    %v296 = vmul.f32 %v281, %v292
    %v297 = vmul.f32 %v285, %v291
    %v298 = vmul.f32 %v285, %v292
    %v299 = vmul.f32 %v289, %v291
    %v300 = vmul.f32 %v289, %v292
    %v301 = vadd.f32 %v267, %v293
    %v302 = vadd.f32 %v268, %v294
    %v303 = vadd.f32 %v269, %v295
    %v304 = vadd.f32 %v270, %v296
    %v305 = vadd.f32 %v271, %v297
    %v306 = vadd.f32 %v272, %v298
    %v307 = vadd.f32 %v273, %v299
    %v308 = vadd.f32 %v274, %v300
    %309 = vset.pattern.permute.xlu0 5
    %310 = vperm.xlu0 %309, %v107
    %v311 = vpop.permute.xlu0 %310
    %313 = vset.pattern.permute.xlu0 5
    %314 = vperm.xlu0 %313, %v108
    %v315 = vpop.permute.xlu0 %314
    %317 = vset.pattern.permute.xlu0 5
    %318 = vperm.xlu0 %317, %v109
    %v319 = vpop.permute.xlu0 %318
    %321 = vset.pattern.permute.xlu0 5
    %322 = vperm.xlu0 %321, %v110
    %v323 = vpop.permute.xlu0 %322
    %v325 = vperm.slane %v99, 5
    %v326 = vperm.slane %v100, 5
    %v327 = vmul.f32 %v311, %v325
    %v328 = vmul.f32 %v311, %v326
    %v329 = vmul.f32 %v315, %v325
    %v330 = vmul.f32 %v315, %v326
    %v331 = vmul.f32 %v319, %v325
    %v332 = vmul.f32 %v319, %v326
    %v333 = vmul.f32 %v323, %v325
    %v334 = vmul.f32 %v323, %v326
    %v335 = vadd.f32 %v301, %v327
    %v336 = vadd.f32 %v302, %v328
    %v337 = vadd.f32 %v303, %v329
    %v338 = vadd.f32 %v304, %v330
    %v339 = vadd.f32 %v305, %v331
    %v340 = vadd.f32 %v306, %v332
    %v341 = vadd.f32 %v307, %v333
    %v342 = vadd.f32 %v308, %v334
    %343 = vset.pattern.permute.xlu0 6
    %344 = vperm.xlu0 %343, %v107
    %v345 = vpop.permute.xlu0 %344
    %347 = vset.pattern.permute.xlu0 6
    %348 = vperm.xlu0 %347, %v108
    %v349 = vpop.permute.xlu0 %348
    %351 = vset.pattern.permute.xlu0 6
    %352 = vperm.xlu0 %351, %v109
    %v353 = vpop.permute.xlu0 %352
    %355 = vset.pattern.permute.xlu0 6
    %356 = vperm.xlu0 %355, %v110
    %v357 = vpop.permute.xlu0 %356
    %v359 = vperm.slane %v99, 6
    %v360 = vperm.slane %v100, 6
    %v361 = vmul.f32 %v345, %v359
    %v362 = vmul.f32 %v345, %v360
    %v363 = vmul.f32 %v349, %v359
    %v364 = vmul.f32 %v349, %v360
    %v365 = vmul.f32 %v353, %v359
    %v366 = vmul.f32 %v353, %v360
    %v367 = vmul.f32 %v357, %v359
    %v368 = vmul.f32 %v357, %v360
    %v369 = vadd.f32 %v335, %v361
    %v370 = vadd.f32 %v336, %v362
    %v371 = vadd.f32 %v337, %v363
    %v372 = vadd.f32 %v338, %v364
    %v373 = vadd.f32 %v339, %v365
    %v374 = vadd.f32 %v340, %v366
    %v375 = vadd.f32 %v341, %v367
    %v376 = vadd.f32 %v342, %v368
    %377 = vset.pattern.permute.xlu0 7
    %378 = vperm.xlu0 %377, %v107
    %v379 = vpop.permute.xlu0 %378
    %381 = vset.pattern.permute.xlu0 7
    %382 = vperm.xlu0 %381, %v108
    %v383 = vpop.permute.xlu0 %382
    %385 = vset.pattern.permute.xlu0 7
    %386 = vperm.xlu0 %385, %v109
    %v387 = vpop.permute.xlu0 %386
    %389 = vset.pattern.permute.xlu0 7
    %390 = vperm.xlu0 %389, %v110
    %v391 = vpop.permute.xlu0 %390
    %v393 = vperm.slane %v99, 7
    %v394 = vperm.slane %v100, 7
    %v395 = vmul.f32 %v379, %v393
    %v396 = vmul.f32 %v379, %v394
    %v397 = vmul.f32 %v383, %v393
    %v398 = vmul.f32 %v383, %v394
    %v399 = vmul.f32 %v387, %v393
    %v400 = vmul.f32 %v387, %v394
    %v401 = vmul.f32 %v391, %v393
    %v402 = vmul.f32 %v391, %v394
    %v403 = vadd.f32 %v369, %v395
    %v404 = vadd.f32 %v370, %v396
    %v405 = vadd.f32 %v371, %v397
    %v406 = vadd.f32 %v372, %v398
    %v407 = vadd.f32 %v373, %v399
    %v408 = vadd.f32 %v374, %v400
    %v409 = vadd.f32 %v375, %v401
    %v410 = vadd.f32 %v376, %v402
    %411 = vset.pattern.permute.xlu0 8
    %412 = vperm.xlu0 %411, %v107
    %v413 = vpop.permute.xlu0 %412
    %415 = vset.pattern.permute.xlu0 8
    %416 = vperm.xlu0 %415, %v108
    %v417 = vpop.permute.xlu0 %416
    %419 = vset.pattern.permute.xlu0 8
    %420 = vperm.xlu0 %419, %v109
    %v421 = vpop.permute.xlu0 %420
    %423 = vset.pattern.permute.xlu0 8
    %424 = vperm.xlu0 %423, %v110
    %v425 = vpop.permute.xlu0 %424
    %v427 = vperm.slane %v101, 0
    %v428 = vperm.slane %v102, 0
    %v429 = vmul.f32 %v413, %v427
    %v430 = vmul.f32 %v413, %v428
    %v431 = vmul.f32 %v417, %v427
    %v432 = vmul.f32 %v417, %v428
    %v433 = vmul.f32 %v421, %v427
    %v434 = vmul.f32 %v421, %v428
    %v435 = vmul.f32 %v425, %v427
    %v436 = vmul.f32 %v425, %v428
    %v437 = vadd.f32 %v403, %v429
    %v438 = vadd.f32 %v404, %v430
    %v439 = vadd.f32 %v405, %v431
    %v440 = vadd.f32 %v406, %v432
    %v441 = vadd.f32 %v407, %v433
    %v442 = vadd.f32 %v408, %v434
    %v443 = vadd.f32 %v409, %v435
    %v444 = vadd.f32 %v410, %v436
    %445 = vset.pattern.permute.xlu0 9
    %446 = vperm.xlu0 %445, %v107
    %v447 = vpop.permute.xlu0 %446
    %449 = vset.pattern.permute.xlu0 9
    %450 = vperm.xlu0 %449, %v108
    %v451 = vpop.permute.xlu0 %450
    %453 = vset.pattern.permute.xlu0 9
    %454 = vperm.xlu0 %453, %v109
    %v455 = vpop.permute.xlu0 %454
    %457 = vset.pattern.permute.xlu0 9
    %458 = vperm.xlu0 %457, %v110
    %v459 = vpop.permute.xlu0 %458
    %v461 = vperm.slane %v101, 1
    %v462 = vperm.slane %v102, 1
    %v463 = vmul.f32 %v447, %v461
    %v464 = vmul.f32 %v447, %v462
    %v465 = vmul.f32 %v451, %v461
    %v466 = vmul.f32 %v451, %v462
    %v467 = vmul.f32 %v455, %v461
    %v468 = vmul.f32 %v455, %v462
    %v469 = vmul.f32 %v459, %v461
    %v470 = vmul.f32 %v459, %v462
    %v471 = vadd.f32 %v437, %v463
    %v472 = vadd.f32 %v438, %v464
    %v473 = vadd.f32 %v439, %v465
    %v474 = vadd.f32 %v440, %v466
    %v475 = vadd.f32 %v441, %v467
    %v476 = vadd.f32 %v442, %v468
    %v477 = vadd.f32 %v443, %v469
    %v478 = vadd.f32 %v444, %v470
    %479 = vset.pattern.permute.xlu0 10
    %480 = vperm.xlu0 %479, %v107
    %v481 = vpop.permute.xlu0 %480
    %483 = vset.pattern.permute.xlu0 10
    %484 = vperm.xlu0 %483, %v108
    %v485 = vpop.permute.xlu0 %484
    %487 = vset.pattern.permute.xlu0 10
    %488 = vperm.xlu0 %487, %v109
    %v489 = vpop.permute.xlu0 %488
    %491 = vset.pattern.permute.xlu0 10
    %492 = vperm.xlu0 %491, %v110
    %v493 = vpop.permute.xlu0 %492
    %v495 = vperm.slane %v101, 2
    %v496 = vperm.slane %v102, 2
    %v497 = vmul.f32 %v481, %v495
    %v498 = vmul.f32 %v481, %v496
    %v499 = vmul.f32 %v485, %v495
    %v500 = vmul.f32 %v485, %v496
    %v501 = vmul.f32 %v489, %v495
    %v502 = vmul.f32 %v489, %v496
    %v503 = vmul.f32 %v493, %v495
    %v504 = vmul.f32 %v493, %v496
    %v505 = vadd.f32 %v471, %v497
    %v506 = vadd.f32 %v472, %v498
    %v507 = vadd.f32 %v473, %v499
    %v508 = vadd.f32 %v474, %v500
    %v509 = vadd.f32 %v475, %v501
    %v510 = vadd.f32 %v476, %v502
    %v511 = vadd.f32 %v477, %v503
    %v512 = vadd.f32 %v478, %v504
    %513 = vset.pattern.permute.xlu0 11
    %514 = vperm.xlu0 %513, %v107
    %v515 = vpop.permute.xlu0 %514
    %517 = vset.pattern.permute.xlu0 11
    %518 = vperm.xlu0 %517, %v108
    %v519 = vpop.permute.xlu0 %518
    %521 = vset.pattern.permute.xlu0 11
    %522 = vperm.xlu0 %521, %v109
    %v523 = vpop.permute.xlu0 %522
    %525 = vset.pattern.permute.xlu0 11
    %526 = vperm.xlu0 %525, %v110
    %v527 = vpop.permute.xlu0 %526
    %v529 = vperm.slane %v101, 3
    %v530 = vperm.slane %v102, 3
    %v531 = vmul.f32 %v515, %v529
    %v532 = vmul.f32 %v515, %v530
    %v533 = vmul.f32 %v519, %v529
    %v534 = vmul.f32 %v519, %v530
    %v535 = vmul.f32 %v523, %v529
    %v536 = vmul.f32 %v523, %v530
    %v537 = vmul.f32 %v527, %v529
    %v538 = vmul.f32 %v527, %v530
    %v539 = vadd.f32 %v505, %v531
    %v540 = vadd.f32 %v506, %v532
    %v541 = vadd.f32 %v507, %v533
    %v542 = vadd.f32 %v508, %v534
    %v543 = vadd.f32 %v509, %v535
    %v544 = vadd.f32 %v510, %v536
    %v545 = vadd.f32 %v511, %v537
    %v546 = vadd.f32 %v512, %v538
    %547 = vset.pattern.permute.xlu0 12
    %548 = vperm.xlu0 %547, %v107
    %v549 = vpop.permute.xlu0 %548
    %551 = vset.pattern.permute.xlu0 12
    %552 = vperm.xlu0 %551, %v108
    %v553 = vpop.permute.xlu0 %552
    %555 = vset.pattern.permute.xlu0 12
    %556 = vperm.xlu0 %555, %v109
    %v557 = vpop.permute.xlu0 %556
    %559 = vset.pattern.permute.xlu0 12
    %560 = vperm.xlu0 %559, %v110
    %v561 = vpop.permute.xlu0 %560
    %v563 = vperm.slane %v101, 4
    %v564 = vperm.slane %v102, 4
    %v565 = vmul.f32 %v549, %v563
    %v566 = vmul.f32 %v549, %v564
    %v567 = vmul.f32 %v553, %v563
    %v568 = vmul.f32 %v553, %v564
    %v569 = vmul.f32 %v557, %v563
    %v570 = vmul.f32 %v557, %v564
    %v571 = vmul.f32 %v561, %v563
    %v572 = vmul.f32 %v561, %v564
    %v573 = vadd.f32 %v539, %v565
    %v574 = vadd.f32 %v540, %v566
    %v575 = vadd.f32 %v541, %v567
    %v576 = vadd.f32 %v542, %v568
    %v577 = vadd.f32 %v543, %v569
    %v578 = vadd.f32 %v544, %v570
    %v579 = vadd.f32 %v545, %v571
    %v580 = vadd.f32 %v546, %v572
    %581 = vset.pattern.permute.xlu0 13
    %582 = vperm.xlu0 %581, %v107
    %v583 = vpop.permute.xlu0 %582
    %585 = vset.pattern.permute.xlu0 13
    %586 = vperm.xlu0 %585, %v108
    %v587 = vpop.permute.xlu0 %586
    %589 = vset.pattern.permute.xlu0 13
    %590 = vperm.xlu0 %589, %v109
    %v591 = vpop.permute.xlu0 %590
    %593 = vset.pattern.permute.xlu0 13
    %594 = vperm.xlu0 %593, %v110
    %v595 = vpop.permute.xlu0 %594
    %v597 = vperm.slane %v101, 5
    %v598 = vperm.slane %v102, 5
    %v599 = vmul.f32 %v583, %v597
    %v600 = vmul.f32 %v583, %v598
    %v601 = vmul.f32 %v587, %v597
    %v602 = vmul.f32 %v587, %v598
    %v603 = vmul.f32 %v591, %v597
    %v604 = vmul.f32 %v591, %v598
    %v605 = vmul.f32 %v595, %v597
    %v606 = vmul.f32 %v595, %v598
    %v607 = vadd.f32 %v573, %v599
    %v608 = vadd.f32 %v574, %v600
    %v609 = vadd.f32 %v575, %v601
    %v610 = vadd.f32 %v576, %v602
    %v611 = vadd.f32 %v577, %v603
    %v612 = vadd.f32 %v578, %v604
    %v613 = vadd.f32 %v579, %v605
    %v614 = vadd.f32 %v580, %v606
    %615 = vset.pattern.permute.xlu0 14
    %616 = vperm.xlu0 %615, %v107
    %v617 = vpop.permute.xlu0 %616
    %619 = vset.pattern.permute.xlu0 14
    %620 = vperm.xlu0 %619, %v108
    %v621 = vpop.permute.xlu0 %620
    %623 = vset.pattern.permute.xlu0 14
    %624 = vperm.xlu0 %623, %v109
    %v625 = vpop.permute.xlu0 %624
    %627 = vset.pattern.permute.xlu0 14
    %628 = vperm.xlu0 %627, %v110
    %v629 = vpop.permute.xlu0 %628
    %v631 = vperm.slane %v101, 6
    %v632 = vperm.slane %v102, 6
    %v633 = vmul.f32 %v617, %v631
    %v634 = vmul.f32 %v617, %v632
    %v635 = vmul.f32 %v621, %v631
    %v636 = vmul.f32 %v621, %v632
    %v637 = vmul.f32 %v625, %v631
    %v638 = vmul.f32 %v625, %v632
    %v639 = vmul.f32 %v629, %v631
    %v640 = vmul.f32 %v629, %v632
    %v641 = vadd.f32 %v607, %v633
    %v642 = vadd.f32 %v608, %v634
    %v643 = vadd.f32 %v609, %v635
    %v644 = vadd.f32 %v610, %v636
    %v645 = vadd.f32 %v611, %v637
    %v646 = vadd.f32 %v612, %v638
    %v647 = vadd.f32 %v613, %v639
    %v648 = vadd.f32 %v614, %v640
    %649 = vset.pattern.permute.xlu0 15
    %650 = vperm.xlu0 %649, %v107
    %v651 = vpop.permute.xlu0 %650
    %653 = vset.pattern.permute.xlu0 15
    %654 = vperm.xlu0 %653, %v108
    %v655 = vpop.permute.xlu0 %654
    %657 = vset.pattern.permute.xlu0 15
    %658 = vperm.xlu0 %657, %v109
    %v659 = vpop.permute.xlu0 %658
    %661 = vset.pattern.permute.xlu0 15
    %662 = vperm.xlu0 %661, %v110
    %v663 = vpop.permute.xlu0 %662
    %v665 = vperm.slane %v101, 7
    %v666 = vperm.slane %v102, 7
    %v667 = vmul.f32 %v651, %v665
    %v668 = vmul.f32 %v651, %v666
    %v669 = vmul.f32 %v655, %v665
    %v670 = vmul.f32 %v655, %v666
    %v671 = vmul.f32 %v659, %v665
    %v672 = vmul.f32 %v659, %v666
    %v673 = vmul.f32 %v663, %v665
    %v674 = vmul.f32 %v663, %v666
    %v675 = vadd.f32 %v641, %v667
    %v676 = vadd.f32 %v642, %v668
    %v677 = vadd.f32 %v643, %v669
    %v678 = vadd.f32 %v644, %v670
    %v679 = vadd.f32 %v645, %v671
    %v680 = vadd.f32 %v646, %v672
    %v681 = vadd.f32 %v647, %v673
    %v682 = vadd.f32 %v648, %v674
    %683 = vset.pattern.permute.xlu0 16
    %684 = vperm.xlu0 %683, %v107
    %v685 = vpop.permute.xlu0 %684
    %687 = vset.pattern.permute.xlu0 16
    %688 = vperm.xlu0 %687, %v108
    %v689 = vpop.permute.xlu0 %688
    %691 = vset.pattern.permute.xlu0 16
    %692 = vperm.xlu0 %691, %v109
    %v693 = vpop.permute.xlu0 %692
    %695 = vset.pattern.permute.xlu0 16
    %696 = vperm.xlu0 %695, %v110
    %v697 = vpop.permute.xlu0 %696
    %v699 = vperm.slane %v103, 0
    %v700 = vperm.slane %v104, 0
    %v701 = vmul.f32 %v685, %v699
    %v702 = vmul.f32 %v685, %v700
    %v703 = vmul.f32 %v689, %v699
    %v704 = vmul.f32 %v689, %v700
    %v705 = vmul.f32 %v693, %v699
    %v706 = vmul.f32 %v693, %v700
    %v707 = vmul.f32 %v697, %v699
    %v708 = vmul.f32 %v697, %v700
    %v709 = vadd.f32 %v675, %v701
    %v710 = vadd.f32 %v676, %v702
    %v711 = vadd.f32 %v677, %v703
    %v712 = vadd.f32 %v678, %v704
    %v713 = vadd.f32 %v679, %v705
    %v714 = vadd.f32 %v680, %v706
    %v715 = vadd.f32 %v681, %v707
    %v716 = vadd.f32 %v682, %v708
    %717 = vset.pattern.permute.xlu0 17
    %718 = vperm.xlu0 %717, %v107
    %v719 = vpop.permute.xlu0 %718
    %721 = vset.pattern.permute.xlu0 17
    %722 = vperm.xlu0 %721, %v108
    %v723 = vpop.permute.xlu0 %722
    %725 = vset.pattern.permute.xlu0 17
    %726 = vperm.xlu0 %725, %v109
    %v727 = vpop.permute.xlu0 %726
    %729 = vset.pattern.permute.xlu0 17
    %730 = vperm.xlu0 %729, %v110
    %v731 = vpop.permute.xlu0 %730
    %v733 = vperm.slane %v103, 1
    %v734 = vperm.slane %v104, 1
    %v735 = vmul.f32 %v719, %v733
    %v736 = vmul.f32 %v719, %v734
    %v737 = vmul.f32 %v723, %v733
    %v738 = vmul.f32 %v723, %v734
    %v739 = vmul.f32 %v727, %v733
    %v740 = vmul.f32 %v727, %v734
    %v741 = vmul.f32 %v731, %v733
    %v742 = vmul.f32 %v731, %v734
    %v743 = vadd.f32 %v709, %v735
    %v744 = vadd.f32 %v710, %v736
    %v745 = vadd.f32 %v711, %v737
    %v746 = vadd.f32 %v712, %v738
    %v747 = vadd.f32 %v713, %v739
    %v748 = vadd.f32 %v714, %v740
    %v749 = vadd.f32 %v715, %v741
    %v750 = vadd.f32 %v716, %v742
    %751 = vset.pattern.permute.xlu0 18
    %752 = vperm.xlu0 %751, %v107
    %v753 = vpop.permute.xlu0 %752
    %755 = vset.pattern.permute.xlu0 18
    %756 = vperm.xlu0 %755, %v108
    %v757 = vpop.permute.xlu0 %756
    %759 = vset.pattern.permute.xlu0 18
    %760 = vperm.xlu0 %759, %v109
    %v761 = vpop.permute.xlu0 %760
    %763 = vset.pattern.permute.xlu0 18
    %764 = vperm.xlu0 %763, %v110
    %v765 = vpop.permute.xlu0 %764
    %v767 = vperm.slane %v103, 2
    %v768 = vperm.slane %v104, 2
    %v769 = vmul.f32 %v753, %v767
    %v770 = vmul.f32 %v753, %v768
    %v771 = vmul.f32 %v757, %v767
    %v772 = vmul.f32 %v757, %v768
    %v773 = vmul.f32 %v761, %v767
    %v774 = vmul.f32 %v761, %v768
    %v775 = vmul.f32 %v765, %v767
    %v776 = vmul.f32 %v765, %v768
    %v777 = vadd.f32 %v743, %v769
    %v778 = vadd.f32 %v744, %v770
    %v779 = vadd.f32 %v745, %v771
    %v780 = vadd.f32 %v746, %v772
    %v781 = vadd.f32 %v747, %v773
    %v782 = vadd.f32 %v748, %v774
    %v783 = vadd.f32 %v749, %v775
    %v784 = vadd.f32 %v750, %v776
    %785 = vset.pattern.permute.xlu0 19
    %786 = vperm.xlu0 %785, %v107
    %v787 = vpop.permute.xlu0 %786
    %789 = vset.pattern.permute.xlu0 19
    %790 = vperm.xlu0 %789, %v108
    %v791 = vpop.permute.xlu0 %790
    %793 = vset.pattern.permute.xlu0 19
    %794 = vperm.xlu0 %793, %v109
    %v795 = vpop.permute.xlu0 %794
    %797 = vset.pattern.permute.xlu0 19
    %798 = vperm.xlu0 %797, %v110
    %v799 = vpop.permute.xlu0 %798
    %v801 = vperm.slane %v103, 3
    %v802 = vperm.slane %v104, 3
    %v803 = vmul.f32 %v787, %v801
    %v804 = vmul.f32 %v787, %v802
    %v805 = vmul.f32 %v791, %v801
    %v806 = vmul.f32 %v791, %v802
    %v807 = vmul.f32 %v795, %v801
    %v808 = vmul.f32 %v795, %v802
    %v809 = vmul.f32 %v799, %v801
    %v810 = vmul.f32 %v799, %v802
    %v811 = vadd.f32 %v777, %v803
    %v812 = vadd.f32 %v778, %v804
    %v813 = vadd.f32 %v779, %v805
    %v814 = vadd.f32 %v780, %v806
    %v815 = vadd.f32 %v781, %v807
    %v816 = vadd.f32 %v782, %v808
    %v817 = vadd.f32 %v783, %v809
    %v818 = vadd.f32 %v784, %v810
    %819 = vset.pattern.permute.xlu0 20
    %820 = vperm.xlu0 %819, %v107
    %v821 = vpop.permute.xlu0 %820
    %823 = vset.pattern.permute.xlu0 20
    %824 = vperm.xlu0 %823, %v108
    %v825 = vpop.permute.xlu0 %824
    %827 = vset.pattern.permute.xlu0 20
    %828 = vperm.xlu0 %827, %v109
    %v829 = vpop.permute.xlu0 %828
    %831 = vset.pattern.permute.xlu0 20
    %832 = vperm.xlu0 %831, %v110
    %v833 = vpop.permute.xlu0 %832
    %v835 = vperm.slane %v103, 4
    %v836 = vperm.slane %v104, 4
    %v837 = vmul.f32 %v821, %v835
    %v838 = vmul.f32 %v821, %v836
    %v839 = vmul.f32 %v825, %v835
    %v840 = vmul.f32 %v825, %v836
    %v841 = vmul.f32 %v829, %v835
    %v842 = vmul.f32 %v829, %v836
    %v843 = vmul.f32 %v833, %v835
    %v844 = vmul.f32 %v833, %v836
    %v845 = vadd.f32 %v811, %v837
    %v846 = vadd.f32 %v812, %v838
    %v847 = vadd.f32 %v813, %v839
    %v848 = vadd.f32 %v814, %v840
    %v849 = vadd.f32 %v815, %v841
    %v850 = vadd.f32 %v816, %v842
    %v851 = vadd.f32 %v817, %v843
    %v852 = vadd.f32 %v818, %v844
    %853 = vset.pattern.permute.xlu0 21
    %854 = vperm.xlu0 %853, %v107
    %v855 = vpop.permute.xlu0 %854
    %857 = vset.pattern.permute.xlu0 21
    %858 = vperm.xlu0 %857, %v108
    %v859 = vpop.permute.xlu0 %858
    %861 = vset.pattern.permute.xlu0 21
    %862 = vperm.xlu0 %861, %v109
    %v863 = vpop.permute.xlu0 %862
    %865 = vset.pattern.permute.xlu0 21
    %866 = vperm.xlu0 %865, %v110
    %v867 = vpop.permute.xlu0 %866
    %v869 = vperm.slane %v103, 5
    %v870 = vperm.slane %v104, 5
    %v871 = vmul.f32 %v855, %v869
    %v872 = vmul.f32 %v855, %v870
    %v873 = vmul.f32 %v859, %v869
    %v874 = vmul.f32 %v859, %v870
    %v875 = vmul.f32 %v863, %v869
    %v876 = vmul.f32 %v863, %v870
    %v877 = vmul.f32 %v867, %v869
    %v878 = vmul.f32 %v867, %v870
    %v879 = vadd.f32 %v845, %v871
    %v880 = vadd.f32 %v846, %v872
    %v881 = vadd.f32 %v847, %v873
    %v882 = vadd.f32 %v848, %v874
    %v883 = vadd.f32 %v849, %v875
    %v884 = vadd.f32 %v850, %v876
    %v885 = vadd.f32 %v851, %v877
    %v886 = vadd.f32 %v852, %v878
    %887 = vset.pattern.permute.xlu0 22
    %888 = vperm.xlu0 %887, %v107
    %v889 = vpop.permute.xlu0 %888
    %891 = vset.pattern.permute.xlu0 22
    %892 = vperm.xlu0 %891, %v108
    %v893 = vpop.permute.xlu0 %892
    %895 = vset.pattern.permute.xlu0 22
    %896 = vperm.xlu0 %895, %v109
    %v897 = vpop.permute.xlu0 %896
    %899 = vset.pattern.permute.xlu0 22
    %900 = vperm.xlu0 %899, %v110
    %v901 = vpop.permute.xlu0 %900
    %v903 = vperm.slane %v103, 6
    %v904 = vperm.slane %v104, 6
    %v905 = vmul.f32 %v889, %v903
    %v906 = vmul.f32 %v889, %v904
    %v907 = vmul.f32 %v893, %v903
    %v908 = vmul.f32 %v893, %v904
    %v909 = vmul.f32 %v897, %v903
    %v910 = vmul.f32 %v897, %v904
    %v911 = vmul.f32 %v901, %v903
    %v912 = vmul.f32 %v901, %v904
    %v913 = vadd.f32 %v879, %v905
    %v914 = vadd.f32 %v880, %v906
    %v915 = vadd.f32 %v881, %v907
    %v916 = vadd.f32 %v882, %v908
    %v917 = vadd.f32 %v883, %v909
    %v918 = vadd.f32 %v884, %v910
    %v919 = vadd.f32 %v885, %v911
    %v920 = vadd.f32 %v886, %v912
    %921 = vset.pattern.permute.xlu0 23
    %922 = vperm.xlu0 %921, %v107
    %v923 = vpop.permute.xlu0 %922
    %925 = vset.pattern.permute.xlu0 23
    %926 = vperm.xlu0 %925, %v108
    %v927 = vpop.permute.xlu0 %926
    %929 = vset.pattern.permute.xlu0 23
    %930 = vperm.xlu0 %929, %v109
    %v931 = vpop.permute.xlu0 %930
    %933 = vset.pattern.permute.xlu0 23
    %934 = vperm.xlu0 %933, %v110
    %v935 = vpop.permute.xlu0 %934
    %v937 = vperm.slane %v103, 7
    %v938 = vperm.slane %v104, 7
    %v939 = vmul.f32 %v923, %v937
    %v940 = vmul.f32 %v923, %v938
    %v941 = vmul.f32 %v927, %v937
    %v942 = vmul.f32 %v927, %v938
    %v943 = vmul.f32 %v931, %v937
    %v944 = vmul.f32 %v931, %v938
    %v945 = vmul.f32 %v935, %v937
    %v946 = vmul.f32 %v935, %v938
    %v947 = vadd.f32 %v913, %v939
    %v948 = vadd.f32 %v914, %v940
    %v949 = vadd.f32 %v915, %v941
    %v950 = vadd.f32 %v916, %v942
    %v951 = vadd.f32 %v917, %v943
    %v952 = vadd.f32 %v918, %v944
    %v953 = vadd.f32 %v919, %v945
    %v954 = vadd.f32 %v920, %v946
    %955 = vset.pattern.permute.xlu0 24
    %956 = vperm.xlu0 %955, %v107
    %v957 = vpop.permute.xlu0 %956
    %959 = vset.pattern.permute.xlu0 24
    %960 = vperm.xlu0 %959, %v108
    %v961 = vpop.permute.xlu0 %960
    %963 = vset.pattern.permute.xlu0 24
    %964 = vperm.xlu0 %963, %v109
    %v965 = vpop.permute.xlu0 %964
    %967 = vset.pattern.permute.xlu0 24
    %968 = vperm.xlu0 %967, %v110
    %v969 = vpop.permute.xlu0 %968
    %v971 = vperm.slane %v105, 0
    %v972 = vperm.slane %v106, 0
    %v973 = vmul.f32 %v957, %v971
    %v974 = vmul.f32 %v957, %v972
    %v975 = vmul.f32 %v961, %v971
    %v976 = vmul.f32 %v961, %v972
    %v977 = vmul.f32 %v965, %v971
    %v978 = vmul.f32 %v965, %v972
    %v979 = vmul.f32 %v969, %v971
    %v980 = vmul.f32 %v969, %v972
    %v981 = vadd.f32 %v947, %v973
    %v982 = vadd.f32 %v948, %v974
    %v983 = vadd.f32 %v949, %v975
    %v984 = vadd.f32 %v950, %v976
    %v985 = vadd.f32 %v951, %v977
    %v986 = vadd.f32 %v952, %v978
    %v987 = vadd.f32 %v953, %v979
    %v988 = vadd.f32 %v954, %v980
    %989 = vset.pattern.permute.xlu0 25
    %990 = vperm.xlu0 %989, %v107
    %v991 = vpop.permute.xlu0 %990
    %993 = vset.pattern.permute.xlu0 25
    %994 = vperm.xlu0 %993, %v108
    %v995 = vpop.permute.xlu0 %994
    %997 = vset.pattern.permute.xlu0 25
    %998 = vperm.xlu0 %997, %v109
    %v999 = vpop.permute.xlu0 %998
    %1001 = vset.pattern.permute.xlu0 25
    %1002 = vperm.xlu0 %1001, %v110
    %v1003 = vpop.permute.xlu0 %1002
    %v1005 = vperm.slane %v105, 1
    %v1006 = vperm.slane %v106, 1
    %v1007 = vmul.f32 %v991, %v1005
    %v1008 = vmul.f32 %v991, %v1006
    %v1009 = vmul.f32 %v995, %v1005
    %v1010 = vmul.f32 %v995, %v1006
    %v1011 = vmul.f32 %v999, %v1005
    %v1012 = vmul.f32 %v999, %v1006
    %v1013 = vmul.f32 %v1003, %v1005
    %v1014 = vmul.f32 %v1003, %v1006
    %v1015 = vadd.f32 %v981, %v1007
    %v1016 = vadd.f32 %v982, %v1008
    %v1017 = vadd.f32 %v983, %v1009
    %v1018 = vadd.f32 %v984, %v1010
    %v1019 = vadd.f32 %v985, %v1011
    %v1020 = vadd.f32 %v986, %v1012
    %v1021 = vadd.f32 %v987, %v1013
    %v1022 = vadd.f32 %v988, %v1014
    %1023 = vset.pattern.permute.xlu0 26
    %1024 = vperm.xlu0 %1023, %v107
    %v1025 = vpop.permute.xlu0 %1024
    %1027 = vset.pattern.permute.xlu0 26
    %1028 = vperm.xlu0 %1027, %v108
    %v1029 = vpop.permute.xlu0 %1028
    %1031 = vset.pattern.permute.xlu0 26
    %1032 = vperm.xlu0 %1031, %v109
    %v1033 = vpop.permute.xlu0 %1032
    %1035 = vset.pattern.permute.xlu0 26
    %1036 = vperm.xlu0 %1035, %v110
    %v1037 = vpop.permute.xlu0 %1036
    %v1039 = vperm.slane %v105, 2
    %v1040 = vperm.slane %v106, 2
    %v1041 = vmul.f32 %v1025, %v1039
    %v1042 = vmul.f32 %v1025, %v1040
    %v1043 = vmul.f32 %v1029, %v1039
    %v1044 = vmul.f32 %v1029, %v1040
    %v1045 = vmul.f32 %v1033, %v1039
    %v1046 = vmul.f32 %v1033, %v1040
    %v1047 = vmul.f32 %v1037, %v1039
    %v1048 = vmul.f32 %v1037, %v1040
    %v1049 = vadd.f32 %v1015, %v1041
    %v1050 = vadd.f32 %v1016, %v1042
    %v1051 = vadd.f32 %v1017, %v1043
    %v1052 = vadd.f32 %v1018, %v1044
    %v1053 = vadd.f32 %v1019, %v1045
    %v1054 = vadd.f32 %v1020, %v1046
    %v1055 = vadd.f32 %v1021, %v1047
    %v1056 = vadd.f32 %v1022, %v1048
    %1057 = vset.pattern.permute.xlu0 27
    %1058 = vperm.xlu0 %1057, %v107
    %v1059 = vpop.permute.xlu0 %1058
    %1061 = vset.pattern.permute.xlu0 27
    %1062 = vperm.xlu0 %1061, %v108
    %v1063 = vpop.permute.xlu0 %1062
    %1065 = vset.pattern.permute.xlu0 27
    %1066 = vperm.xlu0 %1065, %v109
    %v1067 = vpop.permute.xlu0 %1066
    %1069 = vset.pattern.permute.xlu0 27
    %1070 = vperm.xlu0 %1069, %v110
    %v1071 = vpop.permute.xlu0 %1070
    %v1073 = vperm.slane %v105, 3
    %v1074 = vperm.slane %v106, 3
    %v1075 = vmul.f32 %v1059, %v1073
    %v1076 = vmul.f32 %v1059, %v1074
    %v1077 = vmul.f32 %v1063, %v1073
    %v1078 = vmul.f32 %v1063, %v1074
    %v1079 = vmul.f32 %v1067, %v1073
    %v1080 = vmul.f32 %v1067, %v1074
    %v1081 = vmul.f32 %v1071, %v1073
    %v1082 = vmul.f32 %v1071, %v1074
    %v1083 = vadd.f32 %v1049, %v1075
    %v1084 = vadd.f32 %v1050, %v1076
    %v1085 = vadd.f32 %v1051, %v1077
    %v1086 = vadd.f32 %v1052, %v1078
    %v1087 = vadd.f32 %v1053, %v1079
    %v1088 = vadd.f32 %v1054, %v1080
    %v1089 = vadd.f32 %v1055, %v1081
    %v1090 = vadd.f32 %v1056, %v1082
    %1091 = vset.pattern.permute.xlu0 28
    %1092 = vperm.xlu0 %1091, %v107
    %v1093 = vpop.permute.xlu0 %1092
    %1095 = vset.pattern.permute.xlu0 28
    %1096 = vperm.xlu0 %1095, %v108
    %v1097 = vpop.permute.xlu0 %1096
    %1099 = vset.pattern.permute.xlu0 28
    %1100 = vperm.xlu0 %1099, %v109
    %v1101 = vpop.permute.xlu0 %1100
    %1103 = vset.pattern.permute.xlu0 28
    %1104 = vperm.xlu0 %1103, %v110
    %v1105 = vpop.permute.xlu0 %1104
    %v1107 = vperm.slane %v105, 4
    %v1108 = vperm.slane %v106, 4
    %v1109 = vmul.f32 %v1093, %v1107
    %v1110 = vmul.f32 %v1093, %v1108
    %v1111 = vmul.f32 %v1097, %v1107
    %v1112 = vmul.f32 %v1097, %v1108
    %v1113 = vmul.f32 %v1101, %v1107
    %v1114 = vmul.f32 %v1101, %v1108
    %v1115 = vmul.f32 %v1105, %v1107
    %v1116 = vmul.f32 %v1105, %v1108
    %v1117 = vadd.f32 %v1083, %v1109
    %v1118 = vadd.f32 %v1084, %v1110
    %v1119 = vadd.f32 %v1085, %v1111
    %v1120 = vadd.f32 %v1086, %v1112
    %v1121 = vadd.f32 %v1087, %v1113
    %v1122 = vadd.f32 %v1088, %v1114
    %v1123 = vadd.f32 %v1089, %v1115
    %v1124 = vadd.f32 %v1090, %v1116
    %1125 = vset.pattern.permute.xlu0 29
    %1126 = vperm.xlu0 %1125, %v107
    %v1127 = vpop.permute.xlu0 %1126
    %1129 = vset.pattern.permute.xlu0 29
    %1130 = vperm.xlu0 %1129, %v108
    %v1131 = vpop.permute.xlu0 %1130
    %1133 = vset.pattern.permute.xlu0 29
    %1134 = vperm.xlu0 %1133, %v109
    %v1135 = vpop.permute.xlu0 %1134
    %1137 = vset.pattern.permute.xlu0 29
    %1138 = vperm.xlu0 %1137, %v110
    %v1139 = vpop.permute.xlu0 %1138
    %v1141 = vperm.slane %v105, 5
    %v1142 = vperm.slane %v106, 5
    %v1143 = vmul.f32 %v1127, %v1141
    %v1144 = vmul.f32 %v1127, %v1142
    %v1145 = vmul.f32 %v1131, %v1141
    %v1146 = vmul.f32 %v1131, %v1142
    %v1147 = vmul.f32 %v1135, %v1141
    %v1148 = vmul.f32 %v1135, %v1142
    %v1149 = vmul.f32 %v1139, %v1141
    %v1150 = vmul.f32 %v1139, %v1142
    %v1151 = vadd.f32 %v1117, %v1143
    %v1152 = vadd.f32 %v1118, %v1144
    %v1153 = vadd.f32 %v1119, %v1145
    %v1154 = vadd.f32 %v1120, %v1146
    %v1155 = vadd.f32 %v1121, %v1147
    %v1156 = vadd.f32 %v1122, %v1148
    %v1157 = vadd.f32 %v1123, %v1149
    %v1158 = vadd.f32 %v1124, %v1150
    %1159 = vset.pattern.permute.xlu0 30
    %1160 = vperm.xlu0 %1159, %v107
    %v1161 = vpop.permute.xlu0 %1160
    %1163 = vset.pattern.permute.xlu0 30
    %1164 = vperm.xlu0 %1163, %v108
    %v1165 = vpop.permute.xlu0 %1164
    %1167 = vset.pattern.permute.xlu0 30
    %1168 = vperm.xlu0 %1167, %v109
    %v1169 = vpop.permute.xlu0 %1168
    %1171 = vset.pattern.permute.xlu0 30
    %1172 = vperm.xlu0 %1171, %v110
    %v1173 = vpop.permute.xlu0 %1172
    %v1175 = vperm.slane %v105, 6
    %v1176 = vperm.slane %v106, 6
    %v1177 = vmul.f32 %v1161, %v1175
    %v1178 = vmul.f32 %v1161, %v1176
    %v1179 = vmul.f32 %v1165, %v1175
    %v1180 = vmul.f32 %v1165, %v1176
    %v1181 = vmul.f32 %v1169, %v1175
    %v1182 = vmul.f32 %v1169, %v1176
    %v1183 = vmul.f32 %v1173, %v1175
    %v1184 = vmul.f32 %v1173, %v1176
    %v1185 = vadd.f32 %v1151, %v1177
    %v1186 = vadd.f32 %v1152, %v1178
    %v1187 = vadd.f32 %v1153, %v1179
    %v1188 = vadd.f32 %v1154, %v1180
    %v1189 = vadd.f32 %v1155, %v1181
    %v1190 = vadd.f32 %v1156, %v1182
    %v1191 = vadd.f32 %v1157, %v1183
    %v1192 = vadd.f32 %v1158, %v1184
    %1193 = vset.pattern.permute.xlu0 31
    %1194 = vperm.xlu0 %1193, %v107
    %v1195 = vpop.permute.xlu0 %1194
    %1197 = vset.pattern.permute.xlu0 31
    %1198 = vperm.xlu0 %1197, %v108
    %v1199 = vpop.permute.xlu0 %1198
    %1201 = vset.pattern.permute.xlu0 31
    %1202 = vperm.xlu0 %1201, %v109
    %v1203 = vpop.permute.xlu0 %1202
    %1205 = vset.pattern.permute.xlu0 31
    %1206 = vperm.xlu0 %1205, %v110
    %v1207 = vpop.permute.xlu0 %1206
    %v1209 = vperm.slane %v105, 7
    %v1210 = vperm.slane %v106, 7
    %v1211 = vmul.f32 %v1195, %v1209
    %v1212 = vmul.f32 %v1195, %v1210
    %v1213 = vmul.f32 %v1199, %v1209
    %v1214 = vmul.f32 %v1199, %v1210
    %v1215 = vmul.f32 %v1203, %v1209
    %v1216 = vmul.f32 %v1203, %v1210
    %v1217 = vmul.f32 %v1207, %v1209
    %v1218 = vmul.f32 %v1207, %v1210
    %v1219 = vadd.f32 %v1185, %v1211
    %v1220 = vadd.f32 %v1186, %v1212
    %v1221 = vadd.f32 %v1187, %v1213
    %v1222 = vadd.f32 %v1188, %v1214
    %v1223 = vadd.f32 %v1189, %v1215
    %v1224 = vadd.f32 %v1190, %v1216
    %v1225 = vadd.f32 %v1191, %v1217
    %v1226 = vadd.f32 %v1192, %v1218
    %v1227 = vtanh.pop %v1219
    %v1228 = vtanh.pop %v1220
    %v1229 = vtanh.pop %v1221
    %v1230 = vtanh.pop %v1222
    %v1231 = vtanh.pop %v1223
    %v1232 = vtanh.pop %v1224
    %v1233 = vtanh.pop %v1225
    %v1234 = vtanh.pop %v1226
    %1235 = vset.pattern.permute.xlu0 32
    %1236 = vperm.xlu0 %1235, %v107
    %v1237 = vpop.permute.xlu0 %1236
    %1239 = vset.pattern.permute.xlu0 32
    %1240 = vperm.xlu0 %1239, %v108
    %v1241 = vpop.permute.xlu0 %1240
    %1243 = vset.pattern.permute.xlu0 32
    %1244 = vperm.xlu0 %1243, %v109
    %v1245 = vpop.permute.xlu0 %1244
    %1247 = vset.pattern.permute.xlu0 32
    %1248 = vperm.xlu0 %1247, %v110
    %v1249 = vpop.permute.xlu0 %1248
    %v1251 = vperm.slane %v1227, 0
    %v1252 = vperm.slane %v1228, 0
    %v1253 = vmul.f32 %v1237, %v1251
    %v1254 = vmul.f32 %v1237, %v1252
    %v1255 = vmul.f32 %v1241, %v1251
    %v1256 = vmul.f32 %v1241, %v1252
    %v1257 = vmul.f32 %v1245, %v1251
    %v1258 = vmul.f32 %v1245, %v1252
    %v1259 = vmul.f32 %v1249, %v1251
    %v1260 = vmul.f32 %v1249, %v1252
    %1261 = vset.pattern.permute.xlu0 1
    %1262 = vperm.xlu0 %1261, %v111
    %v1263 = vpop.permute.xlu0 %1262
    %1265 = vset.pattern.permute.xlu0 1
    %1266 = vperm.xlu0 %1265, %v112
    %v1267 = vpop.permute.xlu0 %1266
    %1269 = vset.pattern.permute.xlu0 1
    %1270 = vperm.xlu0 %1269, %v113
    %v1271 = vpop.permute.xlu0 %1270
    %1273 = vset.pattern.permute.xlu0 1
    %1274 = vperm.xlu0 %1273, %v114
    %v1275 = vpop.permute.xlu0 %1274
    %v1277 = vadd.f32 %v1263, %v1253
    %v1278 = vadd.f32 %v1263, %v1254
    %v1279 = vadd.f32 %v1267, %v1255
    %v1280 = vadd.f32 %v1267, %v1256
    %v1281 = vadd.f32 %v1271, %v1257
    %v1282 = vadd.f32 %v1271, %v1258
    %v1283 = vadd.f32 %v1275, %v1259
    %v1284 = vadd.f32 %v1275, %v1260
    %1285 = vset.pattern.permute.xlu0 33
    %1286 = vperm.xlu0 %1285, %v107
    %v1287 = vpop.permute.xlu0 %1286
    %1289 = vset.pattern.permute.xlu0 33
    %1290 = vperm.xlu0 %1289, %v108
    %v1291 = vpop.permute.xlu0 %1290
    %1293 = vset.pattern.permute.xlu0 33
    %1294 = vperm.xlu0 %1293, %v109
    %v1295 = vpop.permute.xlu0 %1294
    %1297 = vset.pattern.permute.xlu0 33
    %1298 = vperm.xlu0 %1297, %v110
    %v1299 = vpop.permute.xlu0 %1298
    %v1301 = vperm.slane %v1227, 1
    %v1302 = vperm.slane %v1228, 1
    %v1303 = vmul.f32 %v1287, %v1301
    %v1304 = vmul.f32 %v1287, %v1302
    %v1305 = vmul.f32 %v1291, %v1301
    %v1306 = vmul.f32 %v1291, %v1302
    %v1307 = vmul.f32 %v1295, %v1301
    %v1308 = vmul.f32 %v1295, %v1302
    %v1309 = vmul.f32 %v1299, %v1301
    %v1310 = vmul.f32 %v1299, %v1302
    %v1311 = vadd.f32 %v1277, %v1303
    %v1312 = vadd.f32 %v1278, %v1304
    %v1313 = vadd.f32 %v1279, %v1305
    %v1314 = vadd.f32 %v1280, %v1306
    %v1315 = vadd.f32 %v1281, %v1307
    %v1316 = vadd.f32 %v1282, %v1308
    %v1317 = vadd.f32 %v1283, %v1309
    %v1318 = vadd.f32 %v1284, %v1310
    %1319 = vset.pattern.permute.xlu0 34
    %1320 = vperm.xlu0 %1319, %v107
    %v1321 = vpop.permute.xlu0 %1320
    %1323 = vset.pattern.permute.xlu0 34
    %1324 = vperm.xlu0 %1323, %v108
    %v1325 = vpop.permute.xlu0 %1324
    %1327 = vset.pattern.permute.xlu0 34
    %1328 = vperm.xlu0 %1327, %v109
    %v1329 = vpop.permute.xlu0 %1328
    %1331 = vset.pattern.permute.xlu0 34
    %1332 = vperm.xlu0 %1331, %v110
    %v1333 = vpop.permute.xlu0 %1332
    %v1335 = vperm.slane %v1227, 2
    %v1336 = vperm.slane %v1228, 2
    %v1337 = vmul.f32 %v1321, %v1335
    %v1338 = vmul.f32 %v1321, %v1336
    %v1339 = vmul.f32 %v1325, %v1335
    %v1340 = vmul.f32 %v1325, %v1336
    %v1341 = vmul.f32 %v1329, %v1335
    %v1342 = vmul.f32 %v1329, %v1336
    %v1343 = vmul.f32 %v1333, %v1335
    %v1344 = vmul.f32 %v1333, %v1336
    %v1345 = vadd.f32 %v1311, %v1337
    %v1346 = vadd.f32 %v1312, %v1338
    %v1347 = vadd.f32 %v1313, %v1339
    %v1348 = vadd.f32 %v1314, %v1340
    %v1349 = vadd.f32 %v1315, %v1341
    %v1350 = vadd.f32 %v1316, %v1342
    %v1351 = vadd.f32 %v1317, %v1343
    %v1352 = vadd.f32 %v1318, %v1344
    %1353 = vset.pattern.permute.xlu0 35
    %1354 = vperm.xlu0 %1353, %v107
    %v1355 = vpop.permute.xlu0 %1354
    %1357 = vset.pattern.permute.xlu0 35
    %1358 = vperm.xlu0 %1357, %v108
    %v1359 = vpop.permute.xlu0 %1358
    %1361 = vset.pattern.permute.xlu0 35
    %1362 = vperm.xlu0 %1361, %v109
    %v1363 = vpop.permute.xlu0 %1362
    %1365 = vset.pattern.permute.xlu0 35
    %1366 = vperm.xlu0 %1365, %v110
    %v1367 = vpop.permute.xlu0 %1366
    %v1369 = vperm.slane %v1227, 3
    %v1370 = vperm.slane %v1228, 3
    %v1371 = vmul.f32 %v1355, %v1369
    %v1372 = vmul.f32 %v1355, %v1370
    %v1373 = vmul.f32 %v1359, %v1369
    %v1374 = vmul.f32 %v1359, %v1370
    %v1375 = vmul.f32 %v1363, %v1369
    %v1376 = vmul.f32 %v1363, %v1370
    %v1377 = vmul.f32 %v1367, %v1369
    %v1378 = vmul.f32 %v1367, %v1370
    %v1379 = vadd.f32 %v1345, %v1371
    %v1380 = vadd.f32 %v1346, %v1372
    %v1381 = vadd.f32 %v1347, %v1373
    %v1382 = vadd.f32 %v1348, %v1374
    %v1383 = vadd.f32 %v1349, %v1375
    %v1384 = vadd.f32 %v1350, %v1376
    %v1385 = vadd.f32 %v1351, %v1377
    %v1386 = vadd.f32 %v1352, %v1378
    %1387 = vset.pattern.permute.xlu0 36
    %1388 = vperm.xlu0 %1387, %v107
    %v1389 = vpop.permute.xlu0 %1388
    %1391 = vset.pattern.permute.xlu0 36
    %1392 = vperm.xlu0 %1391, %v108
    %v1393 = vpop.permute.xlu0 %1392
    %1395 = vset.pattern.permute.xlu0 36
    %1396 = vperm.xlu0 %1395, %v109
    %v1397 = vpop.permute.xlu0 %1396
    %1399 = vset.pattern.permute.xlu0 36
    %1400 = vperm.xlu0 %1399, %v110
    %v1401 = vpop.permute.xlu0 %1400
    %v1403 = vperm.slane %v1227, 4
    %v1404 = vperm.slane %v1228, 4
    %v1405 = vmul.f32 %v1389, %v1403
    %v1406 = vmul.f32 %v1389, %v1404
    %v1407 = vmul.f32 %v1393, %v1403
    %v1408 = vmul.f32 %v1393, %v1404
    %v1409 = vmul.f32 %v1397, %v1403
    %v1410 = vmul.f32 %v1397, %v1404
    %v1411 = vmul.f32 %v1401, %v1403
    %v1412 = vmul.f32 %v1401, %v1404
    %v1413 = vadd.f32 %v1379, %v1405
    %v1414 = vadd.f32 %v1380, %v1406
    %v1415 = vadd.f32 %v1381, %v1407
    %v1416 = vadd.f32 %v1382, %v1408
    %v1417 = vadd.f32 %v1383, %v1409
    %v1418 = vadd.f32 %v1384, %v1410
    %v1419 = vadd.f32 %v1385, %v1411
    %v1420 = vadd.f32 %v1386, %v1412
    %1421 = vset.pattern.permute.xlu0 37
    %1422 = vperm.xlu0 %1421, %v107
    %v1423 = vpop.permute.xlu0 %1422
    %1425 = vset.pattern.permute.xlu0 37
    %1426 = vperm.xlu0 %1425, %v108
    %v1427 = vpop.permute.xlu0 %1426
    %1429 = vset.pattern.permute.xlu0 37
    %1430 = vperm.xlu0 %1429, %v109
    %v1431 = vpop.permute.xlu0 %1430
    %1433 = vset.pattern.permute.xlu0 37
    %1434 = vperm.xlu0 %1433, %v110
    %v1435 = vpop.permute.xlu0 %1434
    %v1437 = vperm.slane %v1227, 5
    %v1438 = vperm.slane %v1228, 5
    %v1439 = vmul.f32 %v1423, %v1437
    %v1440 = vmul.f32 %v1423, %v1438
    %v1441 = vmul.f32 %v1427, %v1437
    %v1442 = vmul.f32 %v1427, %v1438
    %v1443 = vmul.f32 %v1431, %v1437
    %v1444 = vmul.f32 %v1431, %v1438
    %v1445 = vmul.f32 %v1435, %v1437
    %v1446 = vmul.f32 %v1435, %v1438
    %v1447 = vadd.f32 %v1413, %v1439
    %v1448 = vadd.f32 %v1414, %v1440
    %v1449 = vadd.f32 %v1415, %v1441
    %v1450 = vadd.f32 %v1416, %v1442
    %v1451 = vadd.f32 %v1417, %v1443
    %v1452 = vadd.f32 %v1418, %v1444
    %v1453 = vadd.f32 %v1419, %v1445
    %v1454 = vadd.f32 %v1420, %v1446
    %1455 = vset.pattern.permute.xlu0 38
    %1456 = vperm.xlu0 %1455, %v107
    %v1457 = vpop.permute.xlu0 %1456
    %1459 = vset.pattern.permute.xlu0 38
    %1460 = vperm.xlu0 %1459, %v108
    %v1461 = vpop.permute.xlu0 %1460
    %1463 = vset.pattern.permute.xlu0 38
    %1464 = vperm.xlu0 %1463, %v109
    %v1465 = vpop.permute.xlu0 %1464
    %1467 = vset.pattern.permute.xlu0 38
    %1468 = vperm.xlu0 %1467, %v110
    %v1469 = vpop.permute.xlu0 %1468
    %v1471 = vperm.slane %v1227, 6
    %v1472 = vperm.slane %v1228, 6
    %v1473 = vmul.f32 %v1457, %v1471
    %v1474 = vmul.f32 %v1457, %v1472
    %v1475 = vmul.f32 %v1461, %v1471
    %v1476 = vmul.f32 %v1461, %v1472
    %v1477 = vmul.f32 %v1465, %v1471
    %v1478 = vmul.f32 %v1465, %v1472
    %v1479 = vmul.f32 %v1469, %v1471
    %v1480 = vmul.f32 %v1469, %v1472
    %v1481 = vadd.f32 %v1447, %v1473
    %v1482 = vadd.f32 %v1448, %v1474
    %v1483 = vadd.f32 %v1449, %v1475
    %v1484 = vadd.f32 %v1450, %v1476
    %v1485 = vadd.f32 %v1451, %v1477
    %v1486 = vadd.f32 %v1452, %v1478
    %v1487 = vadd.f32 %v1453, %v1479
    %v1488 = vadd.f32 %v1454, %v1480
    %1489 = vset.pattern.permute.xlu0 39
    %1490 = vperm.xlu0 %1489, %v107
    %v1491 = vpop.permute.xlu0 %1490
    %1493 = vset.pattern.permute.xlu0 39
    %1494 = vperm.xlu0 %1493, %v108
    %v1495 = vpop.permute.xlu0 %1494
    %1497 = vset.pattern.permute.xlu0 39
    %1498 = vperm.xlu0 %1497, %v109
    %v1499 = vpop.permute.xlu0 %1498
    %1501 = vset.pattern.permute.xlu0 39
    %1502 = vperm.xlu0 %1501, %v110
    %v1503 = vpop.permute.xlu0 %1502
    %v1505 = vperm.slane %v1227, 7
    %v1506 = vperm.slane %v1228, 7
    %v1507 = vmul.f32 %v1491, %v1505
    %v1508 = vmul.f32 %v1491, %v1506
    %v1509 = vmul.f32 %v1495, %v1505
    %v1510 = vmul.f32 %v1495, %v1506
    %v1511 = vmul.f32 %v1499, %v1505
    %v1512 = vmul.f32 %v1499, %v1506
    %v1513 = vmul.f32 %v1503, %v1505
    %v1514 = vmul.f32 %v1503, %v1506
    %v1515 = vadd.f32 %v1481, %v1507
    %v1516 = vadd.f32 %v1482, %v1508
    %v1517 = vadd.f32 %v1483, %v1509
    %v1518 = vadd.f32 %v1484, %v1510
    %v1519 = vadd.f32 %v1485, %v1511
    %v1520 = vadd.f32 %v1486, %v1512
    %v1521 = vadd.f32 %v1487, %v1513
    %v1522 = vadd.f32 %v1488, %v1514
    %1523 = vset.pattern.permute.xlu0 40
    %1524 = vperm.xlu0 %1523, %v107
    %v1525 = vpop.permute.xlu0 %1524
    %1527 = vset.pattern.permute.xlu0 40
    %1528 = vperm.xlu0 %1527, %v108
    %v1529 = vpop.permute.xlu0 %1528
    %1531 = vset.pattern.permute.xlu0 40
    %1532 = vperm.xlu0 %1531, %v109
    %v1533 = vpop.permute.xlu0 %1532
    %1535 = vset.pattern.permute.xlu0 40
    %1536 = vperm.xlu0 %1535, %v110
    %v1537 = vpop.permute.xlu0 %1536
    %v1539 = vperm.slane %v1229, 0
    %v1540 = vperm.slane %v1230, 0
    %v1541 = vmul.f32 %v1525, %v1539
    %v1542 = vmul.f32 %v1525, %v1540
    %v1543 = vmul.f32 %v1529, %v1539
    %v1544 = vmul.f32 %v1529, %v1540
    %v1545 = vmul.f32 %v1533, %v1539
    %v1546 = vmul.f32 %v1533, %v1540
    %v1547 = vmul.f32 %v1537, %v1539
    %v1548 = vmul.f32 %v1537, %v1540
    %v1549 = vadd.f32 %v1515, %v1541
    %v1550 = vadd.f32 %v1516, %v1542
    %v1551 = vadd.f32 %v1517, %v1543
    %v1552 = vadd.f32 %v1518, %v1544
    %v1553 = vadd.f32 %v1519, %v1545
    %v1554 = vadd.f32 %v1520, %v1546
    %v1555 = vadd.f32 %v1521, %v1547
    %v1556 = vadd.f32 %v1522, %v1548
    %1557 = vset.pattern.permute.xlu0 41
    %1558 = vperm.xlu0 %1557, %v107
    %v1559 = vpop.permute.xlu0 %1558
    %1561 = vset.pattern.permute.xlu0 41
    %1562 = vperm.xlu0 %1561, %v108
    %v1563 = vpop.permute.xlu0 %1562
    %1565 = vset.pattern.permute.xlu0 41
    %1566 = vperm.xlu0 %1565, %v109
    %v1567 = vpop.permute.xlu0 %1566
    %1569 = vset.pattern.permute.xlu0 41
    %1570 = vperm.xlu0 %1569, %v110
    %v1571 = vpop.permute.xlu0 %1570
    %v1573 = vperm.slane %v1229, 1
    %v1574 = vperm.slane %v1230, 1
    %v1575 = vmul.f32 %v1559, %v1573
    %v1576 = vmul.f32 %v1559, %v1574
    %v1577 = vmul.f32 %v1563, %v1573
    %v1578 = vmul.f32 %v1563, %v1574
    %v1579 = vmul.f32 %v1567, %v1573
    %v1580 = vmul.f32 %v1567, %v1574
    %v1581 = vmul.f32 %v1571, %v1573
    %v1582 = vmul.f32 %v1571, %v1574
    %v1583 = vadd.f32 %v1549, %v1575
    %v1584 = vadd.f32 %v1550, %v1576
    %v1585 = vadd.f32 %v1551, %v1577
    %v1586 = vadd.f32 %v1552, %v1578
    %v1587 = vadd.f32 %v1553, %v1579
    %v1588 = vadd.f32 %v1554, %v1580
    %v1589 = vadd.f32 %v1555, %v1581
    %v1590 = vadd.f32 %v1556, %v1582
    %1591 = vset.pattern.permute.xlu0 42
    %1592 = vperm.xlu0 %1591, %v107
    %v1593 = vpop.permute.xlu0 %1592
    %1595 = vset.pattern.permute.xlu0 42
    %1596 = vperm.xlu0 %1595, %v108
    %v1597 = vpop.permute.xlu0 %1596
    %1599 = vset.pattern.permute.xlu0 42
    %1600 = vperm.xlu0 %1599, %v109
    %v1601 = vpop.permute.xlu0 %1600
    %1603 = vset.pattern.permute.xlu0 42
    %1604 = vperm.xlu0 %1603, %v110
    %v1605 = vpop.permute.xlu0 %1604
    %v1607 = vperm.slane %v1229, 2
    %v1608 = vperm.slane %v1230, 2
    %v1609 = vmul.f32 %v1593, %v1607
    %v1610 = vmul.f32 %v1593, %v1608
    %v1611 = vmul.f32 %v1597, %v1607
    %v1612 = vmul.f32 %v1597, %v1608
    %v1613 = vmul.f32 %v1601, %v1607
    %v1614 = vmul.f32 %v1601, %v1608
    %v1615 = vmul.f32 %v1605, %v1607
    %v1616 = vmul.f32 %v1605, %v1608
    %v1617 = vadd.f32 %v1583, %v1609
    %v1618 = vadd.f32 %v1584, %v1610
    %v1619 = vadd.f32 %v1585, %v1611
    %v1620 = vadd.f32 %v1586, %v1612
    %v1621 = vadd.f32 %v1587, %v1613
    %v1622 = vadd.f32 %v1588, %v1614
    %v1623 = vadd.f32 %v1589, %v1615
    %v1624 = vadd.f32 %v1590, %v1616
    %1625 = vset.pattern.permute.xlu0 43
    %1626 = vperm.xlu0 %1625, %v107
    %v1627 = vpop.permute.xlu0 %1626
    %1629 = vset.pattern.permute.xlu0 43
    %1630 = vperm.xlu0 %1629, %v108
    %v1631 = vpop.permute.xlu0 %1630
    %1633 = vset.pattern.permute.xlu0 43
    %1634 = vperm.xlu0 %1633, %v109
    %v1635 = vpop.permute.xlu0 %1634
    %1637 = vset.pattern.permute.xlu0 43
    %1638 = vperm.xlu0 %1637, %v110
    %v1639 = vpop.permute.xlu0 %1638
    %v1641 = vperm.slane %v1229, 3
    %v1642 = vperm.slane %v1230, 3
    %v1643 = vmul.f32 %v1627, %v1641
    %v1644 = vmul.f32 %v1627, %v1642
    %v1645 = vmul.f32 %v1631, %v1641
    %v1646 = vmul.f32 %v1631, %v1642
    %v1647 = vmul.f32 %v1635, %v1641
    %v1648 = vmul.f32 %v1635, %v1642
    %v1649 = vmul.f32 %v1639, %v1641
    %v1650 = vmul.f32 %v1639, %v1642
    %v1651 = vadd.f32 %v1617, %v1643
    %v1652 = vadd.f32 %v1618, %v1644
    %v1653 = vadd.f32 %v1619, %v1645
    %v1654 = vadd.f32 %v1620, %v1646
    %v1655 = vadd.f32 %v1621, %v1647
    %v1656 = vadd.f32 %v1622, %v1648
    %v1657 = vadd.f32 %v1623, %v1649
    %v1658 = vadd.f32 %v1624, %v1650
    %1659 = vset.pattern.permute.xlu0 44
    %1660 = vperm.xlu0 %1659, %v107
    %v1661 = vpop.permute.xlu0 %1660
    %1663 = vset.pattern.permute.xlu0 44
    %1664 = vperm.xlu0 %1663, %v108
    %v1665 = vpop.permute.xlu0 %1664
    %1667 = vset.pattern.permute.xlu0 44
    %1668 = vperm.xlu0 %1667, %v109
    %v1669 = vpop.permute.xlu0 %1668
    %1671 = vset.pattern.permute.xlu0 44
    %1672 = vperm.xlu0 %1671, %v110
    %v1673 = vpop.permute.xlu0 %1672
    %v1675 = vperm.slane %v1229, 4
    %v1676 = vperm.slane %v1230, 4
    %v1677 = vmul.f32 %v1661, %v1675
    %v1678 = vmul.f32 %v1661, %v1676
    %v1679 = vmul.f32 %v1665, %v1675
    %v1680 = vmul.f32 %v1665, %v1676
    %v1681 = vmul.f32 %v1669, %v1675
    %v1682 = vmul.f32 %v1669, %v1676
    %v1683 = vmul.f32 %v1673, %v1675
    %v1684 = vmul.f32 %v1673, %v1676
    %v1685 = vadd.f32 %v1651, %v1677
    %v1686 = vadd.f32 %v1652, %v1678
    %v1687 = vadd.f32 %v1653, %v1679
    %v1688 = vadd.f32 %v1654, %v1680
    %v1689 = vadd.f32 %v1655, %v1681
    %v1690 = vadd.f32 %v1656, %v1682
    %v1691 = vadd.f32 %v1657, %v1683
    %v1692 = vadd.f32 %v1658, %v1684
    %1693 = vset.pattern.permute.xlu0 45
    %1694 = vperm.xlu0 %1693, %v107
    %v1695 = vpop.permute.xlu0 %1694
    %1697 = vset.pattern.permute.xlu0 45
    %1698 = vperm.xlu0 %1697, %v108
    %v1699 = vpop.permute.xlu0 %1698
    %1701 = vset.pattern.permute.xlu0 45
    %1702 = vperm.xlu0 %1701, %v109
    %v1703 = vpop.permute.xlu0 %1702
    %1705 = vset.pattern.permute.xlu0 45
    %1706 = vperm.xlu0 %1705, %v110
    %v1707 = vpop.permute.xlu0 %1706
    %v1709 = vperm.slane %v1229, 5
    %v1710 = vperm.slane %v1230, 5
    %v1711 = vmul.f32 %v1695, %v1709
    %v1712 = vmul.f32 %v1695, %v1710
    %v1713 = vmul.f32 %v1699, %v1709
    %v1714 = vmul.f32 %v1699, %v1710
    %v1715 = vmul.f32 %v1703, %v1709
    %v1716 = vmul.f32 %v1703, %v1710
    %v1717 = vmul.f32 %v1707, %v1709
    %v1718 = vmul.f32 %v1707, %v1710
    %v1719 = vadd.f32 %v1685, %v1711
    %v1720 = vadd.f32 %v1686, %v1712
    %v1721 = vadd.f32 %v1687, %v1713
    %v1722 = vadd.f32 %v1688, %v1714
    %v1723 = vadd.f32 %v1689, %v1715
    %v1724 = vadd.f32 %v1690, %v1716
    %v1725 = vadd.f32 %v1691, %v1717
    %v1726 = vadd.f32 %v1692, %v1718
    %1727 = vset.pattern.permute.xlu0 46
    %1728 = vperm.xlu0 %1727, %v107
    %v1729 = vpop.permute.xlu0 %1728
    %1731 = vset.pattern.permute.xlu0 46
    %1732 = vperm.xlu0 %1731, %v108
    %v1733 = vpop.permute.xlu0 %1732
    %1735 = vset.pattern.permute.xlu0 46
    %1736 = vperm.xlu0 %1735, %v109
    %v1737 = vpop.permute.xlu0 %1736
    %1739 = vset.pattern.permute.xlu0 46
    %1740 = vperm.xlu0 %1739, %v110
    %v1741 = vpop.permute.xlu0 %1740
    %v1743 = vperm.slane %v1229, 6
    %v1744 = vperm.slane %v1230, 6
    %v1745 = vmul.f32 %v1729, %v1743
    %v1746 = vmul.f32 %v1729, %v1744
    %v1747 = vmul.f32 %v1733, %v1743
    %v1748 = vmul.f32 %v1733, %v1744
    %v1749 = vmul.f32 %v1737, %v1743
    %v1750 = vmul.f32 %v1737, %v1744
    %v1751 = vmul.f32 %v1741, %v1743
    %v1752 = vmul.f32 %v1741, %v1744
    %v1753 = vadd.f32 %v1719, %v1745
    %v1754 = vadd.f32 %v1720, %v1746
    %v1755 = vadd.f32 %v1721, %v1747
    %v1756 = vadd.f32 %v1722, %v1748
    %v1757 = vadd.f32 %v1723, %v1749
    %v1758 = vadd.f32 %v1724, %v1750
    %v1759 = vadd.f32 %v1725, %v1751
    %v1760 = vadd.f32 %v1726, %v1752
    %1761 = vset.pattern.permute.xlu0 47
    %1762 = vperm.xlu0 %1761, %v107
    %v1763 = vpop.permute.xlu0 %1762
    %1765 = vset.pattern.permute.xlu0 47
    %1766 = vperm.xlu0 %1765, %v108
    %v1767 = vpop.permute.xlu0 %1766
    %1769 = vset.pattern.permute.xlu0 47
    %1770 = vperm.xlu0 %1769, %v109
    %v1771 = vpop.permute.xlu0 %1770
    %1773 = vset.pattern.permute.xlu0 47
    %1774 = vperm.xlu0 %1773, %v110
    %v1775 = vpop.permute.xlu0 %1774
    %v1777 = vperm.slane %v1229, 7
    %v1778 = vperm.slane %v1230, 7
    %v1779 = vmul.f32 %v1763, %v1777
    %v1780 = vmul.f32 %v1763, %v1778
    %v1781 = vmul.f32 %v1767, %v1777
    %v1782 = vmul.f32 %v1767, %v1778
    %v1783 = vmul.f32 %v1771, %v1777
    %v1784 = vmul.f32 %v1771, %v1778
    %v1785 = vmul.f32 %v1775, %v1777
    %v1786 = vmul.f32 %v1775, %v1778
    %v1787 = vadd.f32 %v1753, %v1779
    %v1788 = vadd.f32 %v1754, %v1780
    %v1789 = vadd.f32 %v1755, %v1781
    %v1790 = vadd.f32 %v1756, %v1782
    %v1791 = vadd.f32 %v1757, %v1783
    %v1792 = vadd.f32 %v1758, %v1784
    %v1793 = vadd.f32 %v1759, %v1785
    %v1794 = vadd.f32 %v1760, %v1786
    %1795 = vset.pattern.permute.xlu0 48
    %1796 = vperm.xlu0 %1795, %v107
    %v1797 = vpop.permute.xlu0 %1796
    %1799 = vset.pattern.permute.xlu0 48
    %1800 = vperm.xlu0 %1799, %v108
    %v1801 = vpop.permute.xlu0 %1800
    %1803 = vset.pattern.permute.xlu0 48
    %1804 = vperm.xlu0 %1803, %v109
    %v1805 = vpop.permute.xlu0 %1804
    %1807 = vset.pattern.permute.xlu0 48
    %1808 = vperm.xlu0 %1807, %v110
    %v1809 = vpop.permute.xlu0 %1808
    %v1811 = vperm.slane %v1231, 0
    %v1812 = vperm.slane %v1232, 0
    %v1813 = vmul.f32 %v1797, %v1811
    %v1814 = vmul.f32 %v1797, %v1812
    %v1815 = vmul.f32 %v1801, %v1811
    %v1816 = vmul.f32 %v1801, %v1812
    %v1817 = vmul.f32 %v1805, %v1811
    %v1818 = vmul.f32 %v1805, %v1812
    %v1819 = vmul.f32 %v1809, %v1811
    %v1820 = vmul.f32 %v1809, %v1812
    %v1821 = vadd.f32 %v1787, %v1813
    %v1822 = vadd.f32 %v1788, %v1814
    %v1823 = vadd.f32 %v1789, %v1815
    %v1824 = vadd.f32 %v1790, %v1816
    %v1825 = vadd.f32 %v1791, %v1817
    %v1826 = vadd.f32 %v1792, %v1818
    %v1827 = vadd.f32 %v1793, %v1819
    %v1828 = vadd.f32 %v1794, %v1820
    %1829 = vset.pattern.permute.xlu0 49
    %1830 = vperm.xlu0 %1829, %v107
    %v1831 = vpop.permute.xlu0 %1830
    %1833 = vset.pattern.permute.xlu0 49
    %1834 = vperm.xlu0 %1833, %v108
    %v1835 = vpop.permute.xlu0 %1834
    %1837 = vset.pattern.permute.xlu0 49
    %1838 = vperm.xlu0 %1837, %v109
    %v1839 = vpop.permute.xlu0 %1838
    %1841 = vset.pattern.permute.xlu0 49
    %1842 = vperm.xlu0 %1841, %v110
    %v1843 = vpop.permute.xlu0 %1842
    %v1845 = vperm.slane %v1231, 1
    %v1846 = vperm.slane %v1232, 1
    %v1847 = vmul.f32 %v1831, %v1845
    %v1848 = vmul.f32 %v1831, %v1846
    %v1849 = vmul.f32 %v1835, %v1845
    %v1850 = vmul.f32 %v1835, %v1846
    %v1851 = vmul.f32 %v1839, %v1845
    %v1852 = vmul.f32 %v1839, %v1846
    %v1853 = vmul.f32 %v1843, %v1845
    %v1854 = vmul.f32 %v1843, %v1846
    %v1855 = vadd.f32 %v1821, %v1847
    %v1856 = vadd.f32 %v1822, %v1848
    %v1857 = vadd.f32 %v1823, %v1849
    %v1858 = vadd.f32 %v1824, %v1850
    %v1859 = vadd.f32 %v1825, %v1851
    %v1860 = vadd.f32 %v1826, %v1852
    %v1861 = vadd.f32 %v1827, %v1853
    %v1862 = vadd.f32 %v1828, %v1854
    %1863 = vset.pattern.permute.xlu0 50
    %1864 = vperm.xlu0 %1863, %v107
    %v1865 = vpop.permute.xlu0 %1864
    %1867 = vset.pattern.permute.xlu0 50
    %1868 = vperm.xlu0 %1867, %v108
    %v1869 = vpop.permute.xlu0 %1868
    %1871 = vset.pattern.permute.xlu0 50
    %1872 = vperm.xlu0 %1871, %v109
    %v1873 = vpop.permute.xlu0 %1872
    %1875 = vset.pattern.permute.xlu0 50
    %1876 = vperm.xlu0 %1875, %v110
    %v1877 = vpop.permute.xlu0 %1876
    %v1879 = vperm.slane %v1231, 2
    %v1880 = vperm.slane %v1232, 2
    %v1881 = vmul.f32 %v1865, %v1879
    %v1882 = vmul.f32 %v1865, %v1880
    %v1883 = vmul.f32 %v1869, %v1879
    %v1884 = vmul.f32 %v1869, %v1880
    %v1885 = vmul.f32 %v1873, %v1879
    %v1886 = vmul.f32 %v1873, %v1880
    %v1887 = vmul.f32 %v1877, %v1879
    %v1888 = vmul.f32 %v1877, %v1880
    %v1889 = vadd.f32 %v1855, %v1881
    %v1890 = vadd.f32 %v1856, %v1882
    %v1891 = vadd.f32 %v1857, %v1883
    %v1892 = vadd.f32 %v1858, %v1884
    %v1893 = vadd.f32 %v1859, %v1885
    %v1894 = vadd.f32 %v1860, %v1886
    %v1895 = vadd.f32 %v1861, %v1887
    %v1896 = vadd.f32 %v1862, %v1888
    %1897 = vset.pattern.permute.xlu0 51
    %1898 = vperm.xlu0 %1897, %v107
    %v1899 = vpop.permute.xlu0 %1898
    %1901 = vset.pattern.permute.xlu0 51
    %1902 = vperm.xlu0 %1901, %v108
    %v1903 = vpop.permute.xlu0 %1902
    %1905 = vset.pattern.permute.xlu0 51
    %1906 = vperm.xlu0 %1905, %v109
    %v1907 = vpop.permute.xlu0 %1906
    %1909 = vset.pattern.permute.xlu0 51
    %1910 = vperm.xlu0 %1909, %v110
    %v1911 = vpop.permute.xlu0 %1910
    %v1913 = vperm.slane %v1231, 3
    %v1914 = vperm.slane %v1232, 3
    %v1915 = vmul.f32 %v1899, %v1913
    %v1916 = vmul.f32 %v1899, %v1914
    %v1917 = vmul.f32 %v1903, %v1913
    %v1918 = vmul.f32 %v1903, %v1914
    %v1919 = vmul.f32 %v1907, %v1913
    %v1920 = vmul.f32 %v1907, %v1914
    %v1921 = vmul.f32 %v1911, %v1913
    %v1922 = vmul.f32 %v1911, %v1914
    %v1923 = vadd.f32 %v1889, %v1915
    %v1924 = vadd.f32 %v1890, %v1916
    %v1925 = vadd.f32 %v1891, %v1917
    %v1926 = vadd.f32 %v1892, %v1918
    %v1927 = vadd.f32 %v1893, %v1919
    %v1928 = vadd.f32 %v1894, %v1920
    %v1929 = vadd.f32 %v1895, %v1921
    %v1930 = vadd.f32 %v1896, %v1922
    %1931 = vset.pattern.permute.xlu0 52
    %1932 = vperm.xlu0 %1931, %v107
    %v1933 = vpop.permute.xlu0 %1932
    %1935 = vset.pattern.permute.xlu0 52
    %1936 = vperm.xlu0 %1935, %v108
    %v1937 = vpop.permute.xlu0 %1936
    %1939 = vset.pattern.permute.xlu0 52
    %1940 = vperm.xlu0 %1939, %v109
    %v1941 = vpop.permute.xlu0 %1940
    %1943 = vset.pattern.permute.xlu0 52
    %1944 = vperm.xlu0 %1943, %v110
    %v1945 = vpop.permute.xlu0 %1944
    %v1947 = vperm.slane %v1231, 4
    %v1948 = vperm.slane %v1232, 4
    %v1949 = vmul.f32 %v1933, %v1947
    %v1950 = vmul.f32 %v1933, %v1948
    %v1951 = vmul.f32 %v1937, %v1947
    %v1952 = vmul.f32 %v1937, %v1948
    %v1953 = vmul.f32 %v1941, %v1947
    %v1954 = vmul.f32 %v1941, %v1948
    %v1955 = vmul.f32 %v1945, %v1947
    %v1956 = vmul.f32 %v1945, %v1948
    %v1957 = vadd.f32 %v1923, %v1949
    %v1958 = vadd.f32 %v1924, %v1950
    %v1959 = vadd.f32 %v1925, %v1951
    %v1960 = vadd.f32 %v1926, %v1952
    %v1961 = vadd.f32 %v1927, %v1953
    %v1962 = vadd.f32 %v1928, %v1954
    %v1963 = vadd.f32 %v1929, %v1955
    %v1964 = vadd.f32 %v1930, %v1956
    %1965 = vset.pattern.permute.xlu0 53
    %1966 = vperm.xlu0 %1965, %v107
    %v1967 = vpop.permute.xlu0 %1966
    %1969 = vset.pattern.permute.xlu0 53
    %1970 = vperm.xlu0 %1969, %v108
    %v1971 = vpop.permute.xlu0 %1970
    %1973 = vset.pattern.permute.xlu0 53
    %1974 = vperm.xlu0 %1973, %v109
    %v1975 = vpop.permute.xlu0 %1974
    %1977 = vset.pattern.permute.xlu0 53
    %1978 = vperm.xlu0 %1977, %v110
    %v1979 = vpop.permute.xlu0 %1978
    %v1981 = vperm.slane %v1231, 5
    %v1982 = vperm.slane %v1232, 5
    %v1983 = vmul.f32 %v1967, %v1981
    %v1984 = vmul.f32 %v1967, %v1982
    %v1985 = vmul.f32 %v1971, %v1981
    %v1986 = vmul.f32 %v1971, %v1982
    %v1987 = vmul.f32 %v1975, %v1981
    %v1988 = vmul.f32 %v1975, %v1982
    %v1989 = vmul.f32 %v1979, %v1981
    %v1990 = vmul.f32 %v1979, %v1982
    %v1991 = vadd.f32 %v1957, %v1983
    %v1992 = vadd.f32 %v1958, %v1984
    %v1993 = vadd.f32 %v1959, %v1985
    %v1994 = vadd.f32 %v1960, %v1986
    %v1995 = vadd.f32 %v1961, %v1987
    %v1996 = vadd.f32 %v1962, %v1988
    %v1997 = vadd.f32 %v1963, %v1989
    %v1998 = vadd.f32 %v1964, %v1990
    %1999 = vset.pattern.permute.xlu0 54
    %2000 = vperm.xlu0 %1999, %v107
    %v2001 = vpop.permute.xlu0 %2000
    %2003 = vset.pattern.permute.xlu0 54
    %2004 = vperm.xlu0 %2003, %v108
    %v2005 = vpop.permute.xlu0 %2004
    %2007 = vset.pattern.permute.xlu0 54
    %2008 = vperm.xlu0 %2007, %v109
    %v2009 = vpop.permute.xlu0 %2008
    %2011 = vset.pattern.permute.xlu0 54
    %2012 = vperm.xlu0 %2011, %v110
    %v2013 = vpop.permute.xlu0 %2012
    %v2015 = vperm.slane %v1231, 6
    %v2016 = vperm.slane %v1232, 6
    %v2017 = vmul.f32 %v2001, %v2015
    %v2018 = vmul.f32 %v2001, %v2016
    %v2019 = vmul.f32 %v2005, %v2015
    %v2020 = vmul.f32 %v2005, %v2016
    %v2021 = vmul.f32 %v2009, %v2015
    %v2022 = vmul.f32 %v2009, %v2016
    %v2023 = vmul.f32 %v2013, %v2015
    %v2024 = vmul.f32 %v2013, %v2016
    %v2025 = vadd.f32 %v1991, %v2017
    %v2026 = vadd.f32 %v1992, %v2018
    %v2027 = vadd.f32 %v1993, %v2019
    %v2028 = vadd.f32 %v1994, %v2020
    %v2029 = vadd.f32 %v1995, %v2021
    %v2030 = vadd.f32 %v1996, %v2022
    %v2031 = vadd.f32 %v1997, %v2023
    %v2032 = vadd.f32 %v1998, %v2024
    %2033 = vset.pattern.permute.xlu0 55
    %2034 = vperm.xlu0 %2033, %v107
    %v2035 = vpop.permute.xlu0 %2034
    %2037 = vset.pattern.permute.xlu0 55
    %2038 = vperm.xlu0 %2037, %v108
    %v2039 = vpop.permute.xlu0 %2038
    %2041 = vset.pattern.permute.xlu0 55
    %2042 = vperm.xlu0 %2041, %v109
    %v2043 = vpop.permute.xlu0 %2042
    %2045 = vset.pattern.permute.xlu0 55
    %2046 = vperm.xlu0 %2045, %v110
    %v2047 = vpop.permute.xlu0 %2046
    %v2049 = vperm.slane %v1231, 7
    %v2050 = vperm.slane %v1232, 7
    %v2051 = vmul.f32 %v2035, %v2049
    %v2052 = vmul.f32 %v2035, %v2050
    %v2053 = vmul.f32 %v2039, %v2049
    %v2054 = vmul.f32 %v2039, %v2050
    %v2055 = vmul.f32 %v2043, %v2049
    %v2056 = vmul.f32 %v2043, %v2050
    %v2057 = vmul.f32 %v2047, %v2049
    %v2058 = vmul.f32 %v2047, %v2050
    %v2059 = vadd.f32 %v2025, %v2051
    %v2060 = vadd.f32 %v2026, %v2052
    %v2061 = vadd.f32 %v2027, %v2053
    %v2062 = vadd.f32 %v2028, %v2054
    %v2063 = vadd.f32 %v2029, %v2055
    %v2064 = vadd.f32 %v2030, %v2056
    %v2065 = vadd.f32 %v2031, %v2057
    %v2066 = vadd.f32 %v2032, %v2058
    %2067 = vset.pattern.permute.xlu0 56
    %2068 = vperm.xlu0 %2067, %v107
    %v2069 = vpop.permute.xlu0 %2068
    %2071 = vset.pattern.permute.xlu0 56
    %2072 = vperm.xlu0 %2071, %v108
    %v2073 = vpop.permute.xlu0 %2072
    %2075 = vset.pattern.permute.xlu0 56
    %2076 = vperm.xlu0 %2075, %v109
    %v2077 = vpop.permute.xlu0 %2076
    %2079 = vset.pattern.permute.xlu0 56
    %2080 = vperm.xlu0 %2079, %v110
    %v2081 = vpop.permute.xlu0 %2080
    %v2083 = vperm.slane %v1233, 0
    %v2084 = vperm.slane %v1234, 0
    %v2085 = vmul.f32 %v2069, %v2083
    %v2086 = vmul.f32 %v2069, %v2084
    %v2087 = vmul.f32 %v2073, %v2083
    %v2088 = vmul.f32 %v2073, %v2084
    %v2089 = vmul.f32 %v2077, %v2083
    %v2090 = vmul.f32 %v2077, %v2084
    %v2091 = vmul.f32 %v2081, %v2083
    %v2092 = vmul.f32 %v2081, %v2084
    %v2093 = vadd.f32 %v2059, %v2085
    %v2094 = vadd.f32 %v2060, %v2086
    %v2095 = vadd.f32 %v2061, %v2087
    %v2096 = vadd.f32 %v2062, %v2088
    %v2097 = vadd.f32 %v2063, %v2089
    %v2098 = vadd.f32 %v2064, %v2090
    %v2099 = vadd.f32 %v2065, %v2091
    %v2100 = vadd.f32 %v2066, %v2092
    %2101 = vset.pattern.permute.xlu0 57
    %2102 = vperm.xlu0 %2101, %v107
    %v2103 = vpop.permute.xlu0 %2102
    %2105 = vset.pattern.permute.xlu0 57
    %2106 = vperm.xlu0 %2105, %v108
    %v2107 = vpop.permute.xlu0 %2106
    %2109 = vset.pattern.permute.xlu0 57
    %2110 = vperm.xlu0 %2109, %v109
    %v2111 = vpop.permute.xlu0 %2110
    %2113 = vset.pattern.permute.xlu0 57
    %2114 = vperm.xlu0 %2113, %v110
    %v2115 = vpop.permute.xlu0 %2114
    %v2117 = vperm.slane %v1233, 1
    %v2118 = vperm.slane %v1234, 1
    %v2119 = vmul.f32 %v2103, %v2117
    %v2120 = vmul.f32 %v2103, %v2118
    %v2121 = vmul.f32 %v2107, %v2117
    %v2122 = vmul.f32 %v2107, %v2118
    %v2123 = vmul.f32 %v2111, %v2117
    %v2124 = vmul.f32 %v2111, %v2118
    %v2125 = vmul.f32 %v2115, %v2117
    %v2126 = vmul.f32 %v2115, %v2118
    %v2127 = vadd.f32 %v2093, %v2119
    %v2128 = vadd.f32 %v2094, %v2120
    %v2129 = vadd.f32 %v2095, %v2121
    %v2130 = vadd.f32 %v2096, %v2122
    %v2131 = vadd.f32 %v2097, %v2123
    %v2132 = vadd.f32 %v2098, %v2124
    %v2133 = vadd.f32 %v2099, %v2125
    %v2134 = vadd.f32 %v2100, %v2126
    %2135 = vset.pattern.permute.xlu0 58
    %2136 = vperm.xlu0 %2135, %v107
    %v2137 = vpop.permute.xlu0 %2136
    %2139 = vset.pattern.permute.xlu0 58
    %2140 = vperm.xlu0 %2139, %v108
    %v2141 = vpop.permute.xlu0 %2140
    %2143 = vset.pattern.permute.xlu0 58
    %2144 = vperm.xlu0 %2143, %v109
    %v2145 = vpop.permute.xlu0 %2144
    %2147 = vset.pattern.permute.xlu0 58
    %2148 = vperm.xlu0 %2147, %v110
    %v2149 = vpop.permute.xlu0 %2148
    %v2151 = vperm.slane %v1233, 2
    %v2152 = vperm.slane %v1234, 2
    %v2153 = vmul.f32 %v2137, %v2151
    %v2154 = vmul.f32 %v2137, %v2152
    %v2155 = vmul.f32 %v2141, %v2151
    %v2156 = vmul.f32 %v2141, %v2152
    %v2157 = vmul.f32 %v2145, %v2151
    %v2158 = vmul.f32 %v2145, %v2152
    %v2159 = vmul.f32 %v2149, %v2151
    %v2160 = vmul.f32 %v2149, %v2152
    %v2161 = vadd.f32 %v2127, %v2153
    %v2162 = vadd.f32 %v2128, %v2154
    %v2163 = vadd.f32 %v2129, %v2155
    %v2164 = vadd.f32 %v2130, %v2156
    %v2165 = vadd.f32 %v2131, %v2157
    %v2166 = vadd.f32 %v2132, %v2158
    %v2167 = vadd.f32 %v2133, %v2159
    %v2168 = vadd.f32 %v2134, %v2160
    %2169 = vset.pattern.permute.xlu0 59
    %2170 = vperm.xlu0 %2169, %v107
    %v2171 = vpop.permute.xlu0 %2170
    %2173 = vset.pattern.permute.xlu0 59
    %2174 = vperm.xlu0 %2173, %v108
    %v2175 = vpop.permute.xlu0 %2174
    %2177 = vset.pattern.permute.xlu0 59
    %2178 = vperm.xlu0 %2177, %v109
    %v2179 = vpop.permute.xlu0 %2178
    %2181 = vset.pattern.permute.xlu0 59
    %2182 = vperm.xlu0 %2181, %v110
    %v2183 = vpop.permute.xlu0 %2182
    %v2185 = vperm.slane %v1233, 3
    %v2186 = vperm.slane %v1234, 3
    %v2187 = vmul.f32 %v2171, %v2185
    %v2188 = vmul.f32 %v2171, %v2186
    %v2189 = vmul.f32 %v2175, %v2185
    %v2190 = vmul.f32 %v2175, %v2186
    %v2191 = vmul.f32 %v2179, %v2185
    %v2192 = vmul.f32 %v2179, %v2186
    %v2193 = vmul.f32 %v2183, %v2185
    %v2194 = vmul.f32 %v2183, %v2186
    %v2195 = vadd.f32 %v2161, %v2187
    %v2196 = vadd.f32 %v2162, %v2188
    %v2197 = vadd.f32 %v2163, %v2189
    %v2198 = vadd.f32 %v2164, %v2190
    %v2199 = vadd.f32 %v2165, %v2191
    %v2200 = vadd.f32 %v2166, %v2192
    %v2201 = vadd.f32 %v2167, %v2193
    %v2202 = vadd.f32 %v2168, %v2194
    %2203 = vset.pattern.permute.xlu0 60
    %2204 = vperm.xlu0 %2203, %v107
    %v2205 = vpop.permute.xlu0 %2204
    %2207 = vset.pattern.permute.xlu0 60
    %2208 = vperm.xlu0 %2207, %v108
    %v2209 = vpop.permute.xlu0 %2208
    %2211 = vset.pattern.permute.xlu0 60
    %2212 = vperm.xlu0 %2211, %v109
    %v2213 = vpop.permute.xlu0 %2212
    %2215 = vset.pattern.permute.xlu0 60
    %2216 = vperm.xlu0 %2215, %v110
    %v2217 = vpop.permute.xlu0 %2216
    %v2219 = vperm.slane %v1233, 4
    %v2220 = vperm.slane %v1234, 4
    %v2221 = vmul.f32 %v2205, %v2219
    %v2222 = vmul.f32 %v2205, %v2220
    %v2223 = vmul.f32 %v2209, %v2219
    %v2224 = vmul.f32 %v2209, %v2220
    %v2225 = vmul.f32 %v2213, %v2219
    %v2226 = vmul.f32 %v2213, %v2220
    %v2227 = vmul.f32 %v2217, %v2219
    %v2228 = vmul.f32 %v2217, %v2220
    %v2229 = vadd.f32 %v2195, %v2221
    %v2230 = vadd.f32 %v2196, %v2222
    %v2231 = vadd.f32 %v2197, %v2223
    %v2232 = vadd.f32 %v2198, %v2224
    %v2233 = vadd.f32 %v2199, %v2225
    %v2234 = vadd.f32 %v2200, %v2226
    %v2235 = vadd.f32 %v2201, %v2227
    %v2236 = vadd.f32 %v2202, %v2228
    %2237 = vset.pattern.permute.xlu0 61
    %2238 = vperm.xlu0 %2237, %v107
    %v2239 = vpop.permute.xlu0 %2238
    %2241 = vset.pattern.permute.xlu0 61
    %2242 = vperm.xlu0 %2241, %v108
    %v2243 = vpop.permute.xlu0 %2242
    %2245 = vset.pattern.permute.xlu0 61
    %2246 = vperm.xlu0 %2245, %v109
    %v2247 = vpop.permute.xlu0 %2246
    %2249 = vset.pattern.permute.xlu0 61
    %2250 = vperm.xlu0 %2249, %v110
    %v2251 = vpop.permute.xlu0 %2250
    %v2253 = vperm.slane %v1233, 5
    %v2254 = vperm.slane %v1234, 5
    %v2255 = vmul.f32 %v2239, %v2253
    %v2256 = vmul.f32 %v2239, %v2254
    %v2257 = vmul.f32 %v2243, %v2253
    %v2258 = vmul.f32 %v2243, %v2254
    %v2259 = vmul.f32 %v2247, %v2253
    %v2260 = vmul.f32 %v2247, %v2254
    %v2261 = vmul.f32 %v2251, %v2253
    %v2262 = vmul.f32 %v2251, %v2254
    %v2263 = vadd.f32 %v2229, %v2255
    %v2264 = vadd.f32 %v2230, %v2256
    %v2265 = vadd.f32 %v2231, %v2257
    %v2266 = vadd.f32 %v2232, %v2258
    %v2267 = vadd.f32 %v2233, %v2259
    %v2268 = vadd.f32 %v2234, %v2260
    %v2269 = vadd.f32 %v2235, %v2261
    %v2270 = vadd.f32 %v2236, %v2262
    %2271 = vset.pattern.permute.xlu0 62
    %2272 = vperm.xlu0 %2271, %v107
    %v2273 = vpop.permute.xlu0 %2272
    %2275 = vset.pattern.permute.xlu0 62
    %2276 = vperm.xlu0 %2275, %v108
    %v2277 = vpop.permute.xlu0 %2276
    %2279 = vset.pattern.permute.xlu0 62
    %2280 = vperm.xlu0 %2279, %v109
    %v2281 = vpop.permute.xlu0 %2280
    %2283 = vset.pattern.permute.xlu0 62
    %2284 = vperm.xlu0 %2283, %v110
    %v2285 = vpop.permute.xlu0 %2284
    %v2287 = vperm.slane %v1233, 6
    %v2288 = vperm.slane %v1234, 6
    %v2289 = vmul.f32 %v2273, %v2287
    %v2290 = vmul.f32 %v2273, %v2288
    %v2291 = vmul.f32 %v2277, %v2287
    %v2292 = vmul.f32 %v2277, %v2288
    %v2293 = vmul.f32 %v2281, %v2287
    %v2294 = vmul.f32 %v2281, %v2288
    %v2295 = vmul.f32 %v2285, %v2287
    %v2296 = vmul.f32 %v2285, %v2288
    %v2297 = vadd.f32 %v2263, %v2289
    %v2298 = vadd.f32 %v2264, %v2290
    %v2299 = vadd.f32 %v2265, %v2291
    %v2300 = vadd.f32 %v2266, %v2292
    %v2301 = vadd.f32 %v2267, %v2293
    %v2302 = vadd.f32 %v2268, %v2294
    %v2303 = vadd.f32 %v2269, %v2295
    %v2304 = vadd.f32 %v2270, %v2296
    %2305 = vset.pattern.permute.xlu0 63
    %2306 = vperm.xlu0 %2305, %v107
    %v2307 = vpop.permute.xlu0 %2306
    %2309 = vset.pattern.permute.xlu0 63
    %2310 = vperm.xlu0 %2309, %v108
    %v2311 = vpop.permute.xlu0 %2310
    %2313 = vset.pattern.permute.xlu0 63
    %2314 = vperm.xlu0 %2313, %v109
    %v2315 = vpop.permute.xlu0 %2314
    %2317 = vset.pattern.permute.xlu0 63
    %2318 = vperm.xlu0 %2317, %v110
    %v2319 = vpop.permute.xlu0 %2318
    %v2321 = vperm.slane %v1233, 7
    %v2322 = vperm.slane %v1234, 7
    %v2323 = vmul.f32 %v2307, %v2321
    %v2324 = vmul.f32 %v2307, %v2322
    %v2325 = vmul.f32 %v2311, %v2321
    %v2326 = vmul.f32 %v2311, %v2322
    %v2327 = vmul.f32 %v2315, %v2321
    %v2328 = vmul.f32 %v2315, %v2322
    %v2329 = vmul.f32 %v2319, %v2321
    %v2330 = vmul.f32 %v2319, %v2322
    %v2331 = vadd.f32 %v2297, %v2323
    %v2332 = vadd.f32 %v2298, %v2324
    %v2333 = vadd.f32 %v2299, %v2325
    %v2334 = vadd.f32 %v2300, %v2326
    %v2335 = vadd.f32 %v2301, %v2327
    %v2336 = vadd.f32 %v2302, %v2328
    %v2337 = vadd.f32 %v2303, %v2329
    %v2338 = vadd.f32 %v2304, %v2330
    %v2339 = vtanh.pop %v2331
    %v2340 = vtanh.pop %v2332
    %v2341 = vtanh.pop %v2333
    %v2342 = vtanh.pop %v2334
    %v2343 = vtanh.pop %v2335
    %v2344 = vtanh.pop %v2336
    %v2345 = vtanh.pop %v2337
    %v2346 = vtanh.pop %v2338
    %v2347 = vld [vmem:[%s5] sm:$0x1]
    %v2348 = vld [vmem:[#allocation2] sm:$0x1]
    %2350 = vset.pattern.permute.xlu0 0
    %2351 = vperm.xlu0 %2350, %v2347
    %v2352 = vpop.permute.xlu0 %2351
    %v2354 = vperm.slane %v2352, 0
    %v2355 = vmul.f32 %v2354, %v2339
    %v2356 = vmul.f32 %v2354, %v2340
    %2358 = vset.pattern.permute.xlu0 0
    %2359 = vperm.xlu0 %2358, %v2348
    %v2360 = vpop.permute.xlu0 %2359
    %v2362 = vperm.slane %v2360, 0
    %v2363 = vadd.f32 %v2362, %v2355
    %v2364 = vadd.f32 %v2362, %v2356
    %2365 = vset.pattern.permute.xlu0 1
    %2366 = vperm.xlu0 %2365, %v2347
    %v2367 = vpop.permute.xlu0 %2366
    %v2369 = vperm.slane %v2367, 0
    %v2370 = vmul.f32 %v2369, %v2339
    %v2371 = vmul.f32 %v2369, %v2340
    %v2374 = vrot.slane %v2370, 1
    %v2375 = vrot.slane %v2371, 1
    %v2378 = vadd.f32 %v2363, %v2374
    %v2379 = vadd.f32 %v2364, %v2375
    %2380 = vset.pattern.permute.xlu0 2
    %2381 = vperm.xlu0 %2380, %v2347
    %v2382 = vpop.permute.xlu0 %2381
    %v2384 = vperm.slane %v2382, 0
    %v2385 = vmul.f32 %v2384, %v2339
    %v2386 = vmul.f32 %v2384, %v2340
    %v2389 = vrot.slane %v2385, 2
    %v2390 = vrot.slane %v2386, 2
    %v2393 = vadd.f32 %v2378, %v2389
    %v2394 = vadd.f32 %v2379, %v2390
    %2395 = vset.pattern.permute.xlu0 3
    %2396 = vperm.xlu0 %2395, %v2347
    %v2397 = vpop.permute.xlu0 %2396
    %v2399 = vperm.slane %v2397, 0
    %v2400 = vmul.f32 %v2399, %v2339
    %v2401 = vmul.f32 %v2399, %v2340
    %v2404 = vrot.slane %v2400, 3
    %v2405 = vrot.slane %v2401, 3
    %v2408 = vadd.f32 %v2393, %v2404
    %v2409 = vadd.f32 %v2394, %v2405
    %2410 = vset.pattern.permute.xlu0 4
    %2411 = vperm.xlu0 %2410, %v2347
    %v2412 = vpop.permute.xlu0 %2411
    %v2414 = vperm.slane %v2412, 0
    %v2415 = vmul.f32 %v2414, %v2339
    %v2416 = vmul.f32 %v2414, %v2340
    %v2419 = vrot.slane %v2415, 4
    %v2420 = vrot.slane %v2416, 4
    %v2423 = vadd.f32 %v2408, %v2419
    %v2424 = vadd.f32 %v2409, %v2420
    %2425 = vset.pattern.permute.xlu0 5
    %2426 = vperm.xlu0 %2425, %v2347
    %v2427 = vpop.permute.xlu0 %2426
    %v2429 = vperm.slane %v2427, 0
    %v2430 = vmul.f32 %v2429, %v2339
    %v2431 = vmul.f32 %v2429, %v2340
    %v2434 = vrot.slane %v2430, 5
    %v2435 = vrot.slane %v2431, 5
    %v2438 = vadd.f32 %v2423, %v2434
    %v2439 = vadd.f32 %v2424, %v2435
    %2440 = vset.pattern.permute.xlu0 6
    %2441 = vperm.xlu0 %2440, %v2347
    %v2442 = vpop.permute.xlu0 %2441
    %v2444 = vperm.slane %v2442, 0
    %v2445 = vmul.f32 %v2444, %v2339
    %v2446 = vmul.f32 %v2444, %v2340
    %v2449 = vrot.slane %v2445, 6
    %v2450 = vrot.slane %v2446, 6
    %v2453 = vadd.f32 %v2438, %v2449
    %v2454 = vadd.f32 %v2439, %v2450
    %2455 = vset.pattern.permute.xlu0 7
    %2456 = vperm.xlu0 %2455, %v2347
    %v2457 = vpop.permute.xlu0 %2456
    %v2459 = vperm.slane %v2457, 0
    %v2460 = vmul.f32 %v2459, %v2339
    %v2461 = vmul.f32 %v2459, %v2340
    %v2464 = vrot.slane %v2460, 7
    %v2465 = vrot.slane %v2461, 7
    %v2468 = vadd.f32 %v2453, %v2464
    %v2469 = vadd.f32 %v2454, %v2465
    %2470 = vset.pattern.permute.xlu0 8
    %2471 = vperm.xlu0 %2470, %v2347
    %v2472 = vpop.permute.xlu0 %2471
    %v2474 = vperm.slane %v2472, 0
    %v2475 = vmul.f32 %v2474, %v2341
    %v2476 = vmul.f32 %v2474, %v2342
    %v2477 = vadd.f32 %v2468, %v2475
    %v2478 = vadd.f32 %v2469, %v2476
    %2479 = vset.pattern.permute.xlu0 9
    %2480 = vperm.xlu0 %2479, %v2347
    %v2481 = vpop.permute.xlu0 %2480
    %v2483 = vperm.slane %v2481, 0
    %v2484 = vmul.f32 %v2483, %v2341
    %v2485 = vmul.f32 %v2483, %v2342
    %v2488 = vrot.slane %v2484, 1
    %v2489 = vrot.slane %v2485, 1
    %v2492 = vadd.f32 %v2477, %v2488
    %v2493 = vadd.f32 %v2478, %v2489
    %2494 = vset.pattern.permute.xlu0 10
    %2495 = vperm.xlu0 %2494, %v2347
    %v2496 = vpop.permute.xlu0 %2495
    %v2498 = vperm.slane %v2496, 0
    %v2499 = vmul.f32 %v2498, %v2341
    %v2500 = vmul.f32 %v2498, %v2342
    %v2503 = vrot.slane %v2499, 2
    %v2504 = vrot.slane %v2500, 2
    %v2507 = vadd.f32 %v2492, %v2503
    %v2508 = vadd.f32 %v2493, %v2504
    %2509 = vset.pattern.permute.xlu0 11
    %2510 = vperm.xlu0 %2509, %v2347
    %v2511 = vpop.permute.xlu0 %2510
    %v2513 = vperm.slane %v2511, 0
    %v2514 = vmul.f32 %v2513, %v2341
    %v2515 = vmul.f32 %v2513, %v2342
    %v2518 = vrot.slane %v2514, 3
    %v2519 = vrot.slane %v2515, 3
    %v2522 = vadd.f32 %v2507, %v2518
    %v2523 = vadd.f32 %v2508, %v2519
    %2524 = vset.pattern.permute.xlu0 12
    %2525 = vperm.xlu0 %2524, %v2347
    %v2526 = vpop.permute.xlu0 %2525
    %v2528 = vperm.slane %v2526, 0
    %v2529 = vmul.f32 %v2528, %v2341
    %v2530 = vmul.f32 %v2528, %v2342
    %v2533 = vrot.slane %v2529, 4
    %v2534 = vrot.slane %v2530, 4
    %v2537 = vadd.f32 %v2522, %v2533
    %v2538 = vadd.f32 %v2523, %v2534
    %2539 = vset.pattern.permute.xlu0 13
    %2540 = vperm.xlu0 %2539, %v2347
    %v2541 = vpop.permute.xlu0 %2540
    %v2543 = vperm.slane %v2541, 0
    %v2544 = vmul.f32 %v2543, %v2341
    %v2545 = vmul.f32 %v2543, %v2342
    %v2548 = vrot.slane %v2544, 5
    %v2549 = vrot.slane %v2545, 5
    %v2552 = vadd.f32 %v2537, %v2548
    %v2553 = vadd.f32 %v2538, %v2549
    %2554 = vset.pattern.permute.xlu0 14
    %2555 = vperm.xlu0 %2554, %v2347
    %v2556 = vpop.permute.xlu0 %2555
    %v2558 = vperm.slane %v2556, 0
    %v2559 = vmul.f32 %v2558, %v2341
    %v2560 = vmul.f32 %v2558, %v2342
    %v2563 = vrot.slane %v2559, 6
    %v2564 = vrot.slane %v2560, 6
    %v2567 = vadd.f32 %v2552, %v2563
    %v2568 = vadd.f32 %v2553, %v2564
    %2569 = vset.pattern.permute.xlu0 15
    %2570 = vperm.xlu0 %2569, %v2347
    %v2571 = vpop.permute.xlu0 %2570
    %v2573 = vperm.slane %v2571, 0
    %v2574 = vmul.f32 %v2573, %v2341
    %v2575 = vmul.f32 %v2573, %v2342
    %v2578 = vrot.slane %v2574, 7
    %v2579 = vrot.slane %v2575, 7
    %v2582 = vadd.f32 %v2567, %v2578
    %v2583 = vadd.f32 %v2568, %v2579
    %2584 = vset.pattern.permute.xlu0 16
    %2585 = vperm.xlu0 %2584, %v2347
    %v2586 = vpop.permute.xlu0 %2585
    %v2588 = vperm.slane %v2586, 0
    %v2589 = vmul.f32 %v2588, %v2343
    %v2590 = vmul.f32 %v2588, %v2344
    %v2591 = vadd.f32 %v2582, %v2589
    %v2592 = vadd.f32 %v2583, %v2590
    %2593 = vset.pattern.permute.xlu0 17
    %2594 = vperm.xlu0 %2593, %v2347
    %v2595 = vpop.permute.xlu0 %2594
    %v2597 = vperm.slane %v2595, 0
    %v2598 = vmul.f32 %v2597, %v2343
    %v2599 = vmul.f32 %v2597, %v2344
    %v2602 = vrot.slane %v2598, 1
    %v2603 = vrot.slane %v2599, 1
    %v2606 = vadd.f32 %v2591, %v2602
    %v2607 = vadd.f32 %v2592, %v2603
    %2608 = vset.pattern.permute.xlu0 18
    %2609 = vperm.xlu0 %2608, %v2347
    %v2610 = vpop.permute.xlu0 %2609
    %v2612 = vperm.slane %v2610, 0
    %v2613 = vmul.f32 %v2612, %v2343
    %v2614 = vmul.f32 %v2612, %v2344
    %v2617 = vrot.slane %v2613, 2
    %v2618 = vrot.slane %v2614, 2
    %v2621 = vadd.f32 %v2606, %v2617
    %v2622 = vadd.f32 %v2607, %v2618
    %2623 = vset.pattern.permute.xlu0 19
    %2624 = vperm.xlu0 %2623, %v2347
    %v2625 = vpop.permute.xlu0 %2624
    %v2627 = vperm.slane %v2625, 0
    %v2628 = vmul.f32 %v2627, %v2343
    %v2629 = vmul.f32 %v2627, %v2344
    %v2632 = vrot.slane %v2628, 3
    %v2633 = vrot.slane %v2629, 3
    %v2636 = vadd.f32 %v2621, %v2632
    %v2637 = vadd.f32 %v2622, %v2633
    %2638 = vset.pattern.permute.xlu0 20
    %2639 = vperm.xlu0 %2638, %v2347
    %v2640 = vpop.permute.xlu0 %2639
    %v2642 = vperm.slane %v2640, 0
    %v2643 = vmul.f32 %v2642, %v2343
    %v2644 = vmul.f32 %v2642, %v2344
    %v2647 = vrot.slane %v2643, 4
    %v2648 = vrot.slane %v2644, 4
    %v2651 = vadd.f32 %v2636, %v2647
    %v2652 = vadd.f32 %v2637, %v2648
    %2653 = vset.pattern.permute.xlu0 21
    %2654 = vperm.xlu0 %2653, %v2347
    %v2655 = vpop.permute.xlu0 %2654
    %v2657 = vperm.slane %v2655, 0
    %v2658 = vmul.f32 %v2657, %v2343
    %v2659 = vmul.f32 %v2657, %v2344
    %v2662 = vrot.slane %v2658, 5
    %v2663 = vrot.slane %v2659, 5
    %v2666 = vadd.f32 %v2651, %v2662
    %v2667 = vadd.f32 %v2652, %v2663
    %2668 = vset.pattern.permute.xlu0 22
    %2669 = vperm.xlu0 %2668, %v2347
    %v2670 = vpop.permute.xlu0 %2669
    %v2672 = vperm.slane %v2670, 0
    %v2673 = vmul.f32 %v2672, %v2343
    %v2674 = vmul.f32 %v2672, %v2344
    %v2677 = vrot.slane %v2673, 6
    %v2678 = vrot.slane %v2674, 6
    %v2681 = vadd.f32 %v2666, %v2677
    %v2682 = vadd.f32 %v2667, %v2678
    %2683 = vset.pattern.permute.xlu0 23
    %2684 = vperm.xlu0 %2683, %v2347
    %v2685 = vpop.permute.xlu0 %2684
    %v2687 = vperm.slane %v2685, 0
    %v2688 = vmul.f32 %v2687, %v2343
    %v2689 = vmul.f32 %v2687, %v2344
    %v2692 = vrot.slane %v2688, 7
    %v2693 = vrot.slane %v2689, 7
    %v2696 = vadd.f32 %v2681, %v2692
    %v2697 = vadd.f32 %v2682, %v2693
    %2698 = vset.pattern.permute.xlu0 24
    %2699 = vperm.xlu0 %2698, %v2347
    %v2700 = vpop.permute.xlu0 %2699
    %v2702 = vperm.slane %v2700, 0
    %v2703 = vmul.f32 %v2702, %v2345
    %v2704 = vmul.f32 %v2702, %v2346
    %v2705 = vadd.f32 %v2696, %v2703
    %v2706 = vadd.f32 %v2697, %v2704
    %2707 = vset.pattern.permute.xlu0 25
    %2708 = vperm.xlu0 %2707, %v2347
    %v2709 = vpop.permute.xlu0 %2708
    %v2711 = vperm.slane %v2709, 0
    %v2712 = vmul.f32 %v2711, %v2345
    %v2713 = vmul.f32 %v2711, %v2346
    %v2716 = vrot.slane %v2712, 1
    %v2717 = vrot.slane %v2713, 1
    %v2720 = vadd.f32 %v2705, %v2716
    %v2721 = vadd.f32 %v2706, %v2717
    %2722 = vset.pattern.permute.xlu0 26
    %2723 = vperm.xlu0 %2722, %v2347
    %v2724 = vpop.permute.xlu0 %2723
    %v2726 = vperm.slane %v2724, 0
    %v2727 = vmul.f32 %v2726, %v2345
    %v2728 = vmul.f32 %v2726, %v2346
    %v2731 = vrot.slane %v2727, 2
    %v2732 = vrot.slane %v2728, 2
    %v2735 = vadd.f32 %v2720, %v2731
    %v2736 = vadd.f32 %v2721, %v2732
    %2737 = vset.pattern.permute.xlu0 27
    %2738 = vperm.xlu0 %2737, %v2347
    %v2739 = vpop.permute.xlu0 %2738
    %v2741 = vperm.slane %v2739, 0
    %v2742 = vmul.f32 %v2741, %v2345
    %v2743 = vmul.f32 %v2741, %v2346
    %v2746 = vrot.slane %v2742, 3
    %v2747 = vrot.slane %v2743, 3
    %v2750 = vadd.f32 %v2735, %v2746
    %v2751 = vadd.f32 %v2736, %v2747
    %2752 = vset.pattern.permute.xlu0 28
    %2753 = vperm.xlu0 %2752, %v2347
    %v2754 = vpop.permute.xlu0 %2753
    %v2756 = vperm.slane %v2754, 0
    %v2757 = vmul.f32 %v2756, %v2345
    %v2758 = vmul.f32 %v2756, %v2346
    %v2761 = vrot.slane %v2757, 4
    %v2762 = vrot.slane %v2758, 4
    %v2765 = vadd.f32 %v2750, %v2761
    %v2766 = vadd.f32 %v2751, %v2762
    %2767 = vset.pattern.permute.xlu0 29
    %2768 = vperm.xlu0 %2767, %v2347
    %v2769 = vpop.permute.xlu0 %2768
    %v2771 = vperm.slane %v2769, 0
    %v2772 = vmul.f32 %v2771, %v2345
    %v2773 = vmul.f32 %v2771, %v2346
    %v2776 = vrot.slane %v2772, 5
    %v2777 = vrot.slane %v2773, 5
    %v2780 = vadd.f32 %v2765, %v2776
    %v2781 = vadd.f32 %v2766, %v2777
    %2782 = vset.pattern.permute.xlu0 30
    %2783 = vperm.xlu0 %2782, %v2347
    %v2784 = vpop.permute.xlu0 %2783
    %v2786 = vperm.slane %v2784, 0
    %v2787 = vmul.f32 %v2786, %v2345
    %v2788 = vmul.f32 %v2786, %v2346
    %v2791 = vrot.slane %v2787, 6
    %v2792 = vrot.slane %v2788, 6
    %v2795 = vadd.f32 %v2780, %v2791
    %v2796 = vadd.f32 %v2781, %v2792
    %2797 = vset.pattern.permute.xlu0 31
    %2798 = vperm.xlu0 %2797, %v2347
    %v2799 = vpop.permute.xlu0 %2798
    %v2801 = vperm.slane %v2799, 0
    %v2802 = vmul.f32 %v2801, %v2345
    %v2803 = vmul.f32 %v2801, %v2346
    %v2806 = vrot.slane %v2802, 7
    %v2807 = vrot.slane %v2803, 7
    %v2810 = vadd.f32 %v2795, %v2806
    %v2811 = vadd.f32 %v2796, %v2807
    %v2814 = vrot.slane %v2811, 7
    %vm2815 = vcmask 1040384
    %v2816 = vsel %vm2815, %v2810, %v2814
    %v2818 = vlaneseq
    %vm2819 = vcmp.ge.s32.totalorder %v2818, 0
    %vm2820 = vcmp.lt.s32.totalorder %v2818, 256
    %vm2821 = vmand %vm2819, %vm2820
    %2822 = vst.msk [vmem:[#allocation3] sm:$0x3] %vm2821, %v2816
    // Predicated region
    $region30: #{tpu_custom_call.1} parent=1 // pred_check
      _
    $region31: #{tpu_custom_call.1} parent=1 // pred_check_branch
      %2824 = sbr.rel (0) target = $region33
    $region32: #{tpu_custom_call.1} parent=1 // pred_region
      %2826 = vsyncadd [#allocation4], 0
      %s2828 = sshll.u32 [#allocation3], 4
      %s2829 = int_to_ptr.vmem [resolvable:$true] %s2828
      %s2830 = sshll.u32 %s7, 4
      %s2831 = int_to_ptr.hbm [resolvable:$true] %s2830
      %2833 = dma.vmem_to_hbm [thread:$0]  %s2829, 32, %s2831, [#allocation4]
    $region33: #{tpu_custom_call.1} parent=1 // pred_fallthru
      _
    // Predicated region
    $region34: #{tpu_custom_call.1} parent=1 // pred_check
      _
    $region35: #{tpu_custom_call.1} parent=1 // pred_check_branch
      %2835 = sbr.rel (0) target = $region37
    $region36: #{tpu_custom_call.1} parent=1 // pred_region
      %2837 = dma.done [#allocation4], 32
    $region37: #{tpu_custom_call.1} parent=1 // pred_fallthru
      _
    %2838 = vsyncpa [#allocation4], 1

</llo_original>
